<compile_context>
chip_gen: v7x
topology: tpu7x:2x2x1
jax: 0.10.0
libtpu: 0.0.40
codegen_flags: <defaults>
</compile_context>

<pallas_src>
import functools

import jax
import jax.numpy as jnp
from jax import lax
from jax.experimental import pallas as pl
from jax.experimental.pallas import tpu as pltpu

LN_EPS = 1e-5  # torch.nn.LayerNorm default
_F32 = jnp.float32
_BF16 = jnp.bfloat16


# ---------------------------------------------------------------------------
# Shared math (used both inside the Pallas kernel and in the pure-JAX ref).
# ---------------------------------------------------------------------------
def _layernorm(x, gamma, beta):
    x = x.astype(_F32)
    mean = jnp.mean(x, axis=-1, keepdims=True)
    var = jnp.mean((x - mean) ** 2, axis=-1, keepdims=True)
    inv = lax.rsqrt(var + LN_EPS)
    return (x - mean) * inv * gamma + beta


def _softmax(s, *, in_kernel):
    m = jnp.max(s, axis=-1, keepdims=True)
    e = jnp.exp(s - m)
    denom = jnp.sum(e, axis=-1, keepdims=True)
    if in_kernel:
        return e * pl.reciprocal(denom, approx=True)   # EUP slot, nearly free
    return e / denom


def _gelu(x):
    # tanh-approx GELU (EUP friendly). Small deviation vs torch's exact erf GELU.
    return jax.nn.gelu(x, approximate=True)


def _bdot(a, b):
    """bf16-operand matmul with f32 accumulation on the MXU."""
    return jnp.dot(a.astype(_BF16), b.astype(_BF16), preferred_element_type=_F32)


def _mha(q_in, kv_in, T, p, pre, scale, in_kernel):
    """Single-head attention, batched over T (batch, group) pairs.

    q_in:  (T*Lq, C)   flat queries
    kv_in: (T*Lk, Dkv) flat keys/values
    """
    Lq = q_in.shape[0] // T
    Lk = kv_in.shape[0] // T
    q = _bdot(q_in, p[pre + "wq"]) + p[pre + "bq"]     # (T*Lq, C)
    k = _bdot(kv_in, p[pre + "wk"]) + p[pre + "bk"]    # (T*Lk, C)
    v = _bdot(kv_in, p[pre + "wv"]) + p[pre + "bv"]    # (T*Lk, C)
    C = q.shape[-1]

    q = q * scale                                      # scale the smaller tensor
    q3 = q.reshape(T, Lq, C).astype(_BF16)
    k3 = k.reshape(T, Lk, C).astype(_BF16)
    v3 = v.reshape(T, Lk, C).astype(_BF16)

    # Contraction consumes K directly (no k.T / XLU transpose).
    scores = jnp.einsum("tqc,tkc->tqk", q3, k3, preferred_element_type=_F32)
    attn = _softmax(scores, in_kernel=in_kernel)
    out = jnp.einsum("tqk,tkc->tqc", attn.astype(_BF16), v3,
                     preferred_element_type=_F32).reshape(T * Lq, C)
    return _bdot(out, p[pre + "wo"]) + p[pre + "bo"]


def _mlp(x, p, pre):
    h = _bdot(x, p[pre + "w1"]) + p[pre + "b1"]
    h = _gelu(h)
    return _bdot(h, p[pre + "w2"]) + p[pre + "b2"]


def _block_math(x, lat, T, p, scale_ca, scale_sa, in_kernel):
    """Cross-attention + 1 self-attention layer for T stacked (batch, group) pairs.

    x:   (T*S, Din)  flat key/value inputs
    lat: (T*L, C)    flat learned latents
    """
    # ---- CrossAttention ----
    kv_n = _layernorm(x, p["ca_ln_kv_g"], p["ca_ln_kv_b"])
    q_n = _layernorm(lat, p["ca_ln_q_g"], p["ca_ln_q_b"])
    z = lat + _mha(q_n, kv_n, T, p, "ca_", scale_ca, in_kernel)   # use_query_residual
    z = z + _mlp(_layernorm(z, p["ca_ln_qkv_g"], p["ca_ln_qkv_b"]), p, "ca_")

    # ---- SelfAttention (num_self_attn_layers = 1) ----
    zn = _layernorm(z, p["sa_ln1_g"], p["sa_ln1_b"])
    z = z + _mha(zn, zn, T, p, "sa_", scale_sa, in_kernel)
    z = z + _mlp(_layernorm(z, p["sa_ln2_g"], p["sa_ln2_b"]), p, "sa_")
    return z


# ---------------------------------------------------------------------------
# Parameters
# ---------------------------------------------------------------------------
def _param_defs(din, c, h):
    return [
        ("ca_ln_kv_g", (1, din)), ("ca_ln_kv_b", (1, din)),
        ("ca_ln_q_g", (1, c)), ("ca_ln_q_b", (1, c)),
        ("ca_ln_qkv_g", (1, c)), ("ca_ln_qkv_b", (1, c)),
        ("ca_wq", (c, c)), ("ca_bq", (1, c)),
        ("ca_wk", (din, c)), ("ca_bk", (1, c)),
        ("ca_wv", (din, c)), ("ca_bv", (1, c)),
        ("ca_wo", (c, c)), ("ca_bo", (1, c)),
        ("ca_w1", (c, h)), ("ca_b1", (1, h)),
        ("ca_w2", (h, c)), ("ca_b2", (1, c)),
        ("sa_ln1_g", (1, c)), ("sa_ln1_b", (1, c)),
        ("sa_ln2_g", (1, c)), ("sa_ln2_b", (1, c)),
        ("sa_wq", (c, c)), ("sa_bq", (1, c)),
        ("sa_wk", (c, c)), ("sa_bk", (1, c)),
        ("sa_wv", (c, c)), ("sa_bv", (1, c)),
        ("sa_wo", (c, c)), ("sa_bo", (1, c)),
        ("sa_w1", (c, h)), ("sa_b1", (1, h)),
        ("sa_w2", (h, c)), ("sa_b2", (1, c)),
    ]


def init_params(key, din, c, h):
    defs = _param_defs(din, c, h)
    params = {}
    keys = jax.random.split(key, len(defs))
    for (name, shape), k in zip(defs, keys):
        if name.endswith("_g"):                        # LayerNorm weight
            params[name] = jnp.ones(shape, _F32) + 0.1 * jax.random.normal(k, shape)
        elif name.endswith("_b") or name[-2] == "b":   # biases / LN bias
            params[name] = 0.1 * jax.random.normal(k, shape, _F32)
        else:                                          # Linear weights, stored (in, out)
            params[name] = jax.random.normal(k, shape, _F32) / jnp.sqrt(shape[0])
    return params


# --- weight packing: 32 tensors -> 7 slabs (concatenated along rows) ---------
_W_DIN = ("ca_wk", "ca_wv")                                       # (Din, C)
_W_CC = ("ca_wq", "ca_wo", "sa_wq", "sa_wk", "sa_wv", "sa_wo")    # (C, C)
_W_CH = ("ca_w1", "sa_w1")                                        # (C, H)
_W_HC = ("ca_w2", "sa_w2")                                        # (H, C)
_V_DIN = ("ca_ln_kv_g", "ca_ln_kv_b")                             # (1, Din)
_V_C = ("ca_ln_q_g", "ca_ln_q_b", "ca_ln_qkv_g", "ca_ln_qkv_b",
        "ca_bq", "ca_bk", "ca_bv", "ca_bo", "ca_b2",
        "sa_ln1_g", "sa_ln1_b", "sa_ln2_g", "sa_ln2_b",
        "sa_bq", "sa_bk", "sa_bv", "sa_bo", "sa_b2")              # (1, C)
_V_H = ("ca_b1", "sa_b1")                                         # (1, H)


def pack_params(params):
    """Pack weights (bf16) and bias/LN vectors (f32) into 7 row-stacked slabs."""
    w_din = jnp.concatenate([params[n] for n in _W_DIN], axis=0).astype(_BF16)
    w_cc = jnp.concatenate([params[n] for n in _W_CC], axis=0).astype(_BF16)
    w_ch = jnp.concatenate([params[n] for n in _W_CH], axis=0).astype(_BF16)
    w_hc = jnp.concatenate([params[n] for n in _W_HC], axis=0).astype(_BF16)
    v_din = jnp.concatenate([params[n] for n in _V_DIN], axis=0).astype(_F32)
    v_c = jnp.concatenate([params[n] for n in _V_C], axis=0).astype(_F32)
    v_h = jnp.concatenate([params[n] for n in _V_H], axis=0).astype(_F32)
    return (w_din, w_cc, w_ch, w_hc, v_din, v_c, v_h)


def _unpack(w_din, w_cc, w_ch, w_hc, v_din, v_c, v_h, din, c, h):
    p = {}

    def rows(arr, names, r):
        for i, n in enumerate(names):
            p[n] = arr[i * r:(i + 1) * r]

    rows(w_din, _W_DIN, din)
    rows(w_cc, _W_CC, c)
    rows(w_ch, _W_CH, c)
    rows(w_hc, _W_HC, h)
    rows(v_din, _V_DIN, 1)
    rows(v_c, _V_C, 1)
    rows(v_h, _V_H, 1)
    return p


# ---------------------------------------------------------------------------
# Pallas kernel + wrapper
# ---------------------------------------------------------------------------
def _kernel(T, din, c, h, scale_ca, scale_sa,
            x_ref, lat_ref, w_din_ref, w_cc_ref, w_ch_ref, w_hc_ref,
            v_din_ref, v_c_ref, v_h_ref, o_ref):
    p = _unpack(w_din_ref[...], w_cc_ref[...], w_ch_ref[...], w_hc_ref[...],
                v_din_ref[...], v_c_ref[...], v_h_ref[...], din, c, h)
    x = x_ref[...]      # (T*S, Din) f32
    lat = lat_ref[...]  # (T*L, C)  f32
    z = _block_math(x, lat, T, p, scale_ca, scale_sa, in_kernel=True)
    o_ref[...] = z.astype(o_ref.dtype)


def _choose_pairs_per_step(num_pairs, L, S, din, c, h,
                           target_rows=256, vmem_budget_bytes=8 << 20):
    """Largest divisor of num_pairs whose f32 working set fits a VMEM budget,
    stopping once the batched latent M dimension reaches ~target_rows."""
    per_pair = 4 * (S * din + 4 * S * c + 12 * L * c + 4 * L * h + 2 * L * S + L * L)
    best = 1
    for tp in range(1, num_pairs + 1):
        if num_pairs % tp:
            continue
        if tp > 1 and tp * per_pair > vmem_budget_bytes:
            break
        best = tp
        if tp * L >= target_rows:
            break
    return best


def _cost_estimate(num_pairs, S, L, din, C, H):
    per_pair_flops = (
        2 * S * din * C * 2        # CA k,v projections
        + L * C * C * 2            # CA q projection
        + 2 * L * S * C * 2        # CA scores + attn @ v
        + L * C * C * 2            # CA out projection
        + 2 * L * C * H * 2        # CA MLP
        + 4 * L * C * C * 2        # SA q,k,v,out projections
        + 2 * L * L * C * 2        # SA scores + attn @ v
        + 2 * L * C * H * 2        # SA MLP
    )
    transcendentals = num_pairs * (L * S + L * L + 2 * L * H + 6 * L + 2 * S)
    weight_bytes = 2 * (2 * din * C + 6 * C * C + 2 * C * H + 2 * H * C)
    vec_bytes = 4 * (2 * din + 18 * C + 2 * H)
    bytes_accessed = (4 * num_pairs * S * din + 2 * 4 * num_pairs * L * C
                      + weight_bytes + vec_bytes)
    return pl.CostEstimate(flops=int(num_pairs * per_pair_flops),
                           transcendentals=int(transcendentals),
                           bytes_accessed=int(bytes_accessed))


def perceiver_block_forward(inputs, latents, params, *, pairs_per_step=None):
    """inputs: (B, seq_len, input_dim); latents: (G, L, C) -> (B, G*L, C)."""
    B, seq_len, din = inputs.shape
    G, L, C = latents.shape
    S = seq_len // G
    H = params["ca_w1"].shape[1]
    num_pairs = B * G

    if pairs_per_step is None:
        pairs_per_step = _choose_pairs_per_step(num_pairs, L, S, din, C, H)
    TP = pairs_per_step
    assert num_pairs % TP == 0

    # Flatten to pair-major 2-D slabs so projections are large MXU matmuls.
    x2 = inputs.reshape(num_pairs * S, din)
    lat2 = jnp.broadcast_to(latents[None], (B, G, L, C)).reshape(num_pairs * L, C)
    slabs = pack_params(params)

    scale = float(C) ** -0.5  # qk_head_dim = channels (1 head, qk_out_dim=None)

    in_specs = [
        pl.BlockSpec((TP * S, din), lambda i: (i, 0)),
        pl.BlockSpec((TP * L, C), lambda i: (i, 0)),
    ] + [pl.BlockSpec(s.shape, lambda i: (0, 0)) for s in slabs]
    out_specs = pl.BlockSpec((TP * L, C), lambda i: (i, 0))

    kernel = functools.partial(_kernel, TP, din, C, H, scale, scale)
    out = pl.pallas_call(
        kernel,
        out_shape=jax.ShapeDtypeStruct((num_pairs * L, C), jnp.float32),
        grid=(num_pairs // TP,),
        in_specs=in_specs,
        out_specs=out_specs,
        compiler_params=pltpu.CompilerParams(
            dimension_semantics=("parallel",),
            vmem_limit_bytes=32 * 1024 * 1024,
        ),
        cost_estimate=_cost_estimate(num_pairs, S, L, din, C, H),
    )(x2, lat2, *slabs)
    return out.reshape(B, G * L, C)


# ---------------------------------------------------------------------------
# Pure-JAX reference (same math, no Pallas) for correctness checking.
# ---------------------------------------------------------------------------
def reference_forward(inputs, latents, params):
    B, seq_len, din = inputs.shape
    G, L, C = latents.shape
    num_pairs = B * G
    x = inputs.reshape(num_pairs * (seq_len // G), din)
    lat = jnp.broadcast_to(latents[None], (B, G, L, C)).reshape(num_pairs * L, C)
    p = {}
    for n in _W_DIN + _W_CC + _W_CH + _W_HC:
        p[n] = params[n].astype(_BF16)
    for n in _V_DIN + _V_C + _V_H:
        p[n] = params[n].astype(_F32)
    scale = float(C) ** -0.5
    z = _block_math(x, lat, num_pairs, p, scale, scale, in_kernel=False)
    return z.reshape(B, G * L, C)


# ---------------------------------------------------------------------------
if __name__ == "__main__":
    B = 2
    num_groups = 4
    group_len = 16                         # S per group
    seq_len = num_groups * group_len       # 64
    input_dim = 16
    num_latents = 8
    channels = 32
    widening = 1                           # MLP hidden = channels

    key = jax.random.PRNGKey(0)
    k_in, k_lat, k_par = jax.random.split(key, 3)

    inputs = jax.random.normal(k_in, (B, seq_len, input_dim), jnp.float32)
    latents = jax.random.normal(k_lat, (num_groups, num_latents, channels), jnp.float32)
    params = init_params(k_par, input_dim, channels, channels * widening)

    out = jax.block_until_ready(perceiver_block_forward(inputs, latents, params))
    ref = jax.block_until_ready(reference_forward(inputs, latents, params))

    assert out.shape == (B, num_groups * num_latents, channels), out.shape
    max_err = float(jnp.max(jnp.abs(out - ref)))
    assert jnp.allclose(out, ref, atol=2e-2, rtol=2e-2), max_err

    print("KERNEL_OK")
</pallas_src>

<mosaic_0001>
module attributes {stable_mosaic.version = 11 : i64} {
  func.func @_kernel(%arg0: i32, %arg1: memref<128x16xf32, #tpu.memory_space<vmem>>, %arg2: memref<64x32xf32, #tpu.memory_space<vmem>>, %arg3: memref<32x32xbf16, #tpu.memory_space<vmem>>, %arg4: memref<192x32xbf16, #tpu.memory_space<vmem>>, %arg5: memref<64x32xbf16, #tpu.memory_space<vmem>>, %arg6: memref<64x32xbf16, #tpu.memory_space<vmem>>, %arg7: memref<2x16xf32, #tpu.memory_space<vmem>>, %arg8: memref<18x32xf32, #tpu.memory_space<vmem>>, %arg9: memref<2x32xf32, #tpu.memory_space<vmem>>, %arg10: memref<64x32xf32, #tpu.memory_space<vmem>>) attributes {dimension_semantics = [#tpu.dimension_semantics<parallel>], iteration_bounds = array<i64: 1>, scalar_prefetch = 0 : i64, scratch_operands = 0 : i64, tpu.core_type = #tpu.core_type<tc>, window_params = [{transform_indices = @transform_0, window_bounds = array<i64: 128, 16>}, {transform_indices = @transform_1, window_bounds = array<i64: 64, 32>}, {pipeline_mode = #tpu.pipeline_mode<synchronous>, transform_indices = @transform_2, window_bounds = array<i64: 32, 32>}, {pipeline_mode = #tpu.pipeline_mode<synchronous>, transform_indices = @transform_3, window_bounds = array<i64: 192, 32>}, {pipeline_mode = #tpu.pipeline_mode<synchronous>, transform_indices = @transform_4, window_bounds = array<i64: 64, 32>}, {pipeline_mode = #tpu.pipeline_mode<synchronous>, transform_indices = @transform_5, window_bounds = array<i64: 64, 32>}, {pipeline_mode = #tpu.pipeline_mode<synchronous>, transform_indices = @transform_6, window_bounds = array<i64: 2, 16>}, {pipeline_mode = #tpu.pipeline_mode<synchronous>, transform_indices = @transform_7, window_bounds = array<i64: 18, 32>}, {pipeline_mode = #tpu.pipeline_mode<synchronous>, transform_indices = @transform_8, window_bounds = array<i64: 2, 32>}, {transform_indices = @transform_9, window_bounds = array<i64: 64, 32>}]} {
    %c0 = arith.constant 0 : index
    %c0_0 = arith.constant 0 : index
    %0 = vector.load %arg3[%c0, %c0_0] : memref<32x32xbf16, #tpu.memory_space<vmem>>, vector<32x32xbf16>
    %c0_1 = arith.constant 0 : index
    %c0_2 = arith.constant 0 : index
    %1 = vector.load %arg4[%c0_1, %c0_2] : memref<192x32xbf16, #tpu.memory_space<vmem>>, vector<192x32xbf16>
    %c0_3 = arith.constant 0 : index
    %c0_4 = arith.constant 0 : index
    %2 = vector.load %arg5[%c0_3, %c0_4] : memref<64x32xbf16, #tpu.memory_space<vmem>>, vector<64x32xbf16>
    %c0_5 = arith.constant 0 : index
    %c0_6 = arith.constant 0 : index
    %3 = vector.load %arg6[%c0_5, %c0_6] : memref<64x32xbf16, #tpu.memory_space<vmem>>, vector<64x32xbf16>
    %c0_7 = arith.constant 0 : index
    %c0_8 = arith.constant 0 : index
    %4 = vector.load %arg7[%c0_7, %c0_8] : memref<2x16xf32, #tpu.memory_space<vmem>>, vector<2x16xf32>
    %c0_9 = arith.constant 0 : index
    %c0_10 = arith.constant 0 : index
    %5 = vector.load %arg8[%c0_9, %c0_10] : memref<18x32xf32, #tpu.memory_space<vmem>>, vector<18x32xf32>
    %c0_11 = arith.constant 0 : index
    %c0_12 = arith.constant 0 : index
    %6 = vector.load %arg9[%c0_11, %c0_12] : memref<2x32xf32, #tpu.memory_space<vmem>>, vector<2x32xf32>
    %7 = vector.extract_strided_slice %0 {offsets = [0, 0], sizes = [16, 32], strides = [1, 1]} : vector<32x32xbf16> to vector<16x32xbf16>
    %8 = vector.extract_strided_slice %0 {offsets = [16, 0], sizes = [16, 32], strides = [1, 1]} : vector<32x32xbf16> to vector<16x32xbf16>
    %9 = vector.extract_strided_slice %1 {offsets = [0, 0], sizes = [32, 32], strides = [1, 1]} : vector<192x32xbf16> to vector<32x32xbf16>
    %10 = vector.extract_strided_slice %1 {offsets = [32, 0], sizes = [32, 32], strides = [1, 1]} : vector<192x32xbf16> to vector<32x32xbf16>
    %11 = vector.extract_strided_slice %1 {offsets = [64, 0], sizes = [32, 32], strides = [1, 1]} : vector<192x32xbf16> to vector<32x32xbf16>
    %12 = vector.extract_strided_slice %1 {offsets = [96, 0], sizes = [32, 32], strides = [1, 1]} : vector<192x32xbf16> to vector<32x32xbf16>
    %13 = vector.extract_strided_slice %1 {offsets = [128, 0], sizes = [32, 32], strides = [1, 1]} : vector<192x32xbf16> to vector<32x32xbf16>
    %14 = vector.extract_strided_slice %1 {offsets = [160, 0], sizes = [32, 32], strides = [1, 1]} : vector<192x32xbf16> to vector<32x32xbf16>
    %15 = vector.extract_strided_slice %2 {offsets = [0, 0], sizes = [32, 32], strides = [1, 1]} : vector<64x32xbf16> to vector<32x32xbf16>
    %16 = vector.extract_strided_slice %2 {offsets = [32, 0], sizes = [32, 32], strides = [1, 1]} : vector<64x32xbf16> to vector<32x32xbf16>
    %17 = vector.extract_strided_slice %3 {offsets = [0, 0], sizes = [32, 32], strides = [1, 1]} : vector<64x32xbf16> to vector<32x32xbf16>
    %18 = vector.extract_strided_slice %3 {offsets = [32, 0], sizes = [32, 32], strides = [1, 1]} : vector<64x32xbf16> to vector<32x32xbf16>
    %19 = vector.extract_strided_slice %4 {offsets = [0, 0], sizes = [1, 16], strides = [1, 1]} : vector<2x16xf32> to vector<1x16xf32>
    %20 = vector.extract_strided_slice %4 {offsets = [1, 0], sizes = [1, 16], strides = [1, 1]} : vector<2x16xf32> to vector<1x16xf32>
    %21 = vector.extract_strided_slice %5 {offsets = [0, 0], sizes = [1, 32], strides = [1, 1]} : vector<18x32xf32> to vector<1x32xf32>
    %22 = vector.extract_strided_slice %5 {offsets = [1, 0], sizes = [1, 32], strides = [1, 1]} : vector<18x32xf32> to vector<1x32xf32>
    %23 = vector.extract_strided_slice %5 {offsets = [2, 0], sizes = [1, 32], strides = [1, 1]} : vector<18x32xf32> to vector<1x32xf32>
    %24 = vector.extract_strided_slice %5 {offsets = [3, 0], sizes = [1, 32], strides = [1, 1]} : vector<18x32xf32> to vector<1x32xf32>
    %25 = vector.extract_strided_slice %5 {offsets = [4, 0], sizes = [1, 32], strides = [1, 1]} : vector<18x32xf32> to vector<1x32xf32>
    %26 = vector.extract_strided_slice %5 {offsets = [5, 0], sizes = [1, 32], strides = [1, 1]} : vector<18x32xf32> to vector<1x32xf32>
    %27 = vector.extract_strided_slice %5 {offsets = [6, 0], sizes = [1, 32], strides = [1, 1]} : vector<18x32xf32> to vector<1x32xf32>
    %28 = vector.extract_strided_slice %5 {offsets = [7, 0], sizes = [1, 32], strides = [1, 1]} : vector<18x32xf32> to vector<1x32xf32>
    %29 = vector.extract_strided_slice %5 {offsets = [8, 0], sizes = [1, 32], strides = [1, 1]} : vector<18x32xf32> to vector<1x32xf32>
    %30 = vector.extract_strided_slice %5 {offsets = [9, 0], sizes = [1, 32], strides = [1, 1]} : vector<18x32xf32> to vector<1x32xf32>
    %31 = vector.extract_strided_slice %5 {offsets = [10, 0], sizes = [1, 32], strides = [1, 1]} : vector<18x32xf32> to vector<1x32xf32>
    %32 = vector.extract_strided_slice %5 {offsets = [11, 0], sizes = [1, 32], strides = [1, 1]} : vector<18x32xf32> to vector<1x32xf32>
    %33 = vector.extract_strided_slice %5 {offsets = [12, 0], sizes = [1, 32], strides = [1, 1]} : vector<18x32xf32> to vector<1x32xf32>
    %34 = vector.extract_strided_slice %5 {offsets = [13, 0], sizes = [1, 32], strides = [1, 1]} : vector<18x32xf32> to vector<1x32xf32>
    %35 = vector.extract_strided_slice %5 {offsets = [14, 0], sizes = [1, 32], strides = [1, 1]} : vector<18x32xf32> to vector<1x32xf32>
    %36 = vector.extract_strided_slice %5 {offsets = [15, 0], sizes = [1, 32], strides = [1, 1]} : vector<18x32xf32> to vector<1x32xf32>
    %37 = vector.extract_strided_slice %5 {offsets = [16, 0], sizes = [1, 32], strides = [1, 1]} : vector<18x32xf32> to vector<1x32xf32>
    %38 = vector.extract_strided_slice %5 {offsets = [17, 0], sizes = [1, 32], strides = [1, 1]} : vector<18x32xf32> to vector<1x32xf32>
    %39 = vector.extract_strided_slice %6 {offsets = [0, 0], sizes = [1, 32], strides = [1, 1]} : vector<2x32xf32> to vector<1x32xf32>
    %40 = vector.extract_strided_slice %6 {offsets = [1, 0], sizes = [1, 32], strides = [1, 1]} : vector<2x32xf32> to vector<1x32xf32>
    %c0_13 = arith.constant 0 : index
    %c0_14 = arith.constant 0 : index
    %41 = vector.load %arg1[%c0_13, %c0_14] : memref<128x16xf32, #tpu.memory_space<vmem>>, vector<128x16xf32>
    %c0_15 = arith.constant 0 : index
    %c0_16 = arith.constant 0 : index
    %42 = vector.load %arg2[%c0_15, %c0_16] : memref<64x32xf32, #tpu.memory_space<vmem>>, vector<64x32xf32>
    %cst = arith.constant dense<0.000000e+00> : vector<128xf32>
    %43 = vector.multi_reduction <add>, %41, %cst [1] : vector<128x16xf32> to vector<128xf32>
    %44 = vector.shape_cast %43 : vector<128xf32> to vector<128x1xf32>
    %cst_17 = arith.constant 1.600000e+01 : f32
    %45 = vector.broadcast %cst_17 : f32 to vector<128x1xf32>
    %46 = arith.divf %44, %45 : vector<128x1xf32>
    %47 = vector.broadcast %46 : vector<128x1xf32> to vector<128x16xf32>
    %48 = arith.subf %41, %47 : vector<128x16xf32>
    %49 = arith.mulf %48, %48 : vector<128x16xf32>
    %cst_18 = arith.constant dense<0.000000e+00> : vector<128xf32>
    %50 = vector.multi_reduction <add>, %49, %cst_18 [1] : vector<128x16xf32> to vector<128xf32>
    %51 = vector.shape_cast %50 : vector<128xf32> to vector<128x1xf32>
    %cst_19 = arith.constant 1.600000e+01 : f32
    %52 = vector.broadcast %cst_19 : f32 to vector<128x1xf32>
    %53 = arith.divf %51, %52 : vector<128x1xf32>
    %cst_20 = arith.constant 9.99999974E-6 : f32
    %54 = vector.broadcast %cst_20 : f32 to vector<128x1xf32>
    %55 = arith.addf %53, %54 : vector<128x1xf32>
    %56 = math.rsqrt %55 : vector<128x1xf32>
    %57 = vector.broadcast %46 : vector<128x1xf32> to vector<128x16xf32>
    %58 = arith.subf %41, %57 : vector<128x16xf32>
    %59 = vector.broadcast %56 : vector<128x1xf32> to vector<128x16xf32>
    %60 = arith.mulf %58, %59 : vector<128x16xf32>
    %61 = vector.broadcast %19 : vector<1x16xf32> to vector<128x16xf32>
    %62 = arith.mulf %60, %61 : vector<128x16xf32>
    %63 = vector.broadcast %20 : vector<1x16xf32> to vector<128x16xf32>
    %64 = arith.addf %62, %63 : vector<128x16xf32>
    %cst_21 = arith.constant dense<0.000000e+00> : vector<64xf32>
    %65 = vector.multi_reduction <add>, %42, %cst_21 [1] : vector<64x32xf32> to vector<64xf32>
    %66 = vector.shape_cast %65 : vector<64xf32> to vector<64x1xf32>
    %cst_22 = arith.constant 3.200000e+01 : f32
    %67 = vector.broadcast %cst_22 : f32 to vector<64x1xf32>
    %68 = arith.divf %66, %67 : vector<64x1xf32>
    %69 = vector.broadcast %68 : vector<64x1xf32> to vector<64x32xf32>
    %70 = arith.subf %42, %69 : vector<64x32xf32>
    %71 = arith.mulf %70, %70 : vector<64x32xf32>
    %cst_23 = arith.constant dense<0.000000e+00> : vector<64xf32>
    %72 = vector.multi_reduction <add>, %71, %cst_23 [1] : vector<64x32xf32> to vector<64xf32>
    %73 = vector.shape_cast %72 : vector<64xf32> to vector<64x1xf32>
    %cst_24 = arith.constant 3.200000e+01 : f32
    %74 = vector.broadcast %cst_24 : f32 to vector<64x1xf32>
    %75 = arith.divf %73, %74 : vector<64x1xf32>
    %cst_25 = arith.constant 9.99999974E-6 : f32
    %76 = vector.broadcast %cst_25 : f32 to vector<64x1xf32>
    %77 = arith.addf %75, %76 : vector<64x1xf32>
    %78 = math.rsqrt %77 : vector<64x1xf32>
    %79 = vector.broadcast %68 : vector<64x1xf32> to vector<64x32xf32>
    %80 = arith.subf %42, %79 : vector<64x32xf32>
    %81 = vector.broadcast %78 : vector<64x1xf32> to vector<64x32xf32>
    %82 = arith.mulf %80, %81 : vector<64x32xf32>
    %83 = vector.broadcast %21 : vector<1x32xf32> to vector<64x32xf32>
    %84 = arith.mulf %82, %83 : vector<64x32xf32>
    %85 = vector.broadcast %22 : vector<1x32xf32> to vector<64x32xf32>
    %86 = arith.addf %84, %85 : vector<64x32xf32>
    %87 = arith.truncf %86 : vector<64x32xf32> to vector<64x32xbf16>
    %cst_26 = arith.constant dense<0.000000e+00> : vector<64x32xf32>
    %88 = tpu.matmul %87, %9, %cst_26 {dimension_numbers = #tpu.dot_dimension_numbers<[1], [0], [0], [1], [0, 0, 1, 1], [], []>} : vector<64x32xbf16>, vector<32x32xbf16>, vector<64x32xf32> -> vector<64x32xf32>
    %89 = vector.broadcast %25 : vector<1x32xf32> to vector<64x32xf32>
    %90 = arith.addf %88, %89 : vector<64x32xf32>
    %91 = arith.truncf %64 : vector<128x16xf32> to vector<128x16xbf16>
    %cst_27 = arith.constant dense<0.000000e+00> : vector<128x32xf32>
    %92 = tpu.matmul %91, %7, %cst_27 {dimension_numbers = #tpu.dot_dimension_numbers<[1], [0], [0], [1], [0, 0, 1, 1], [], []>} : vector<128x16xbf16>, vector<16x32xbf16>, vector<128x32xf32> -> vector<128x32xf32>
    %93 = vector.broadcast %26 : vector<1x32xf32> to vector<128x32xf32>
    %94 = arith.addf %92, %93 : vector<128x32xf32>
    %95 = arith.truncf %64 : vector<128x16xf32> to vector<128x16xbf16>
    %cst_28 = arith.constant dense<0.000000e+00> : vector<128x32xf32>
    %96 = tpu.matmul %95, %8, %cst_28 {dimension_numbers = #tpu.dot_dimension_numbers<[1], [0], [0], [1], [0, 0, 1, 1], [], []>} : vector<128x16xbf16>, vector<16x32xbf16>, vector<128x32xf32> -> vector<128x32xf32>
    %97 = vector.broadcast %27 : vector<1x32xf32> to vector<128x32xf32>
    %98 = arith.addf %96, %97 : vector<128x32xf32>
    %cst_29 = arith.constant 0.176776692 : f32
    %99 = vector.broadcast %cst_29 : f32 to vector<64x32xf32>
    %100 = arith.mulf %90, %99 : vector<64x32xf32>
    %101 = vector.shape_cast %100 : vector<64x32xf32> to vector<8x8x32xf32>
    %102 = arith.truncf %101 : vector<8x8x32xf32> to vector<8x8x32xbf16>
    %103 = vector.shape_cast %94 : vector<128x32xf32> to vector<8x16x32xf32>
    %104 = arith.truncf %103 : vector<8x16x32xf32> to vector<8x16x32xbf16>
    %105 = vector.shape_cast %98 : vector<128x32xf32> to vector<8x16x32xf32>
    %106 = arith.truncf %105 : vector<8x16x32xf32> to vector<8x16x32xbf16>
    "tpu.trace_start"() <{level = 10 : i32, message = "tqc,tkc->tqk"}> : () -> ()
    %cst_30 = arith.constant dense<0.000000e+00> : vector<8x8x16xf32>
    %107 = tpu.matmul %102, %104, %cst_30 {dimension_numbers = #tpu.dot_dimension_numbers<[2], [2], [1], [1], [0, 0, 0, 1, 1, 1], [0], [0]>} : vector<8x8x32xbf16>, vector<8x16x32xbf16>, vector<8x8x16xf32> -> vector<8x8x16xf32>
    "tpu.trace_stop"() : () -> ()
    %cst_31 = arith.constant dense<0xFF800000> : vector<8x8xf32>
    %108 = vector.multi_reduction <maximumf>, %107, %cst_31 [2] : vector<8x8x16xf32> to vector<8x8xf32>
    %109 = vector.shape_cast %108 : vector<8x8xf32> to vector<8x8x1xf32>
    %110 = vector.broadcast %109 : vector<8x8x1xf32> to vector<8x8x16xf32>
    %111 = arith.subf %107, %110 : vector<8x8x16xf32>
    %112 = math.exp %111 : vector<8x8x16xf32>
    %cst_32 = arith.constant dense<0.000000e+00> : vector<8x8xf32>
    %113 = vector.multi_reduction <add>, %112, %cst_32 [2] : vector<8x8x16xf32> to vector<8x8xf32>
    %114 = vector.shape_cast %113 : vector<8x8xf32> to vector<8x8x1xf32>
    %115 = tpu.reciprocal %114 {approx = true} : vector<8x8x1xf32> -> vector<8x8x1xf32>
    %116 = vector.broadcast %115 : vector<8x8x1xf32> to vector<8x8x16xf32>
    %117 = arith.mulf %112, %116 : vector<8x8x16xf32>
    %118 = arith.truncf %117 : vector<8x8x16xf32> to vector<8x8x16xbf16>
    "tpu.trace_start"() <{level = 10 : i32, message = "tqk,tkc->tqc"}> : () -> ()
    %cst_33 = arith.constant dense<0.000000e+00> : vector<8x8x32xf32>
    %119 = tpu.matmul %118, %106, %cst_33 {dimension_numbers = #tpu.dot_dimension_numbers<[2], [1], [1], [2], [0, 0, 0, 1, 1, 2], [0], [0]>} : vector<8x8x16xbf16>, vector<8x16x32xbf16>, vector<8x8x32xf32> -> vector<8x8x32xf32>
    "tpu.trace_stop"() : () -> ()
    %120 = vector.shape_cast %119 : vector<8x8x32xf32> to vector<64x32xf32>
    %121 = arith.truncf %120 : vector<64x32xf32> to vector<64x32xbf16>
    %cst_34 = arith.constant dense<0.000000e+00> : vector<64x32xf32>
    %122 = tpu.matmul %121, %10, %cst_34 {dimension_numbers = #tpu.dot_dimension_numbers<[1], [0], [0], [1], [0, 0, 1, 1], [], []>} : vector<64x32xbf16>, vector<32x32xbf16>, vector<64x32xf32> -> vector<64x32xf32>
    %123 = vector.broadcast %28 : vector<1x32xf32> to vector<64x32xf32>
    %124 = arith.addf %122, %123 : vector<64x32xf32>
    %125 = arith.addf %42, %124 : vector<64x32xf32>
    %cst_35 = arith.constant dense<0.000000e+00> : vector<64xf32>
    %126 = vector.multi_reduction <add>, %125, %cst_35 [1] : vector<64x32xf32> to vector<64xf32>
    %127 = vector.shape_cast %126 : vector<64xf32> to vector<64x1xf32>
    %cst_36 = arith.constant 3.200000e+01 : f32
    %128 = vector.broadcast %cst_36 : f32 to vector<64x1xf32>
    %129 = arith.divf %127, %128 : vector<64x1xf32>
    %130 = vector.broadcast %129 : vector<64x1xf32> to vector<64x32xf32>
    %131 = arith.subf %125, %130 : vector<64x32xf32>
    %132 = arith.mulf %131, %131 : vector<64x32xf32>
    %cst_37 = arith.constant dense<0.000000e+00> : vector<64xf32>
    %133 = vector.multi_reduction <add>, %132, %cst_37 [1] : vector<64x32xf32> to vector<64xf32>
    %134 = vector.shape_cast %133 : vector<64xf32> to vector<64x1xf32>
    %cst_38 = arith.constant 3.200000e+01 : f32
    %135 = vector.broadcast %cst_38 : f32 to vector<64x1xf32>
    %136 = arith.divf %134, %135 : vector<64x1xf32>
    %cst_39 = arith.constant 9.99999974E-6 : f32
    %137 = vector.broadcast %cst_39 : f32 to vector<64x1xf32>
    %138 = arith.addf %136, %137 : vector<64x1xf32>
    %139 = math.rsqrt %138 : vector<64x1xf32>
    %140 = vector.broadcast %129 : vector<64x1xf32> to vector<64x32xf32>
    %141 = arith.subf %125, %140 : vector<64x32xf32>
    %142 = vector.broadcast %139 : vector<64x1xf32> to vector<64x32xf32>
    %143 = arith.mulf %141, %142 : vector<64x32xf32>
    %144 = vector.broadcast %23 : vector<1x32xf32> to vector<64x32xf32>
    %145 = arith.mulf %143, %144 : vector<64x32xf32>
    %146 = vector.broadcast %24 : vector<1x32xf32> to vector<64x32xf32>
    %147 = arith.addf %145, %146 : vector<64x32xf32>
    %148 = arith.truncf %147 : vector<64x32xf32> to vector<64x32xbf16>
    %cst_40 = arith.constant dense<0.000000e+00> : vector<64x32xf32>
    %149 = tpu.matmul %148, %15, %cst_40 {dimension_numbers = #tpu.dot_dimension_numbers<[1], [0], [0], [1], [0, 0, 1, 1], [], []>} : vector<64x32xbf16>, vector<32x32xbf16>, vector<64x32xf32> -> vector<64x32xf32>
    %150 = vector.broadcast %39 : vector<1x32xf32> to vector<64x32xf32>
    %151 = arith.addf %149, %150 : vector<64x32xf32>
    %152 = arith.mulf %151, %151 : vector<64x32xf32>
    %153 = arith.mulf %151, %152 : vector<64x32xf32>
    %cst_41 = arith.constant 4.471500e-02 : f32
    %154 = vector.broadcast %cst_41 : f32 to vector<64x32xf32>
    %155 = arith.mulf %154, %153 : vector<64x32xf32>
    %156 = arith.addf %151, %155 : vector<64x32xf32>
    %cst_42 = arith.constant 0.797884583 : f32
    %157 = vector.broadcast %cst_42 : f32 to vector<64x32xf32>
    %158 = arith.mulf %157, %156 : vector<64x32xf32>
    %159 = math.tanh %158 : vector<64x32xf32>
    %cst_43 = arith.constant 1.000000e+00 : f32
    %160 = vector.broadcast %cst_43 : f32 to vector<64x32xf32>
    %161 = arith.addf %160, %159 : vector<64x32xf32>
    %cst_44 = arith.constant 5.000000e-01 : f32
    %162 = vector.broadcast %cst_44 : f32 to vector<64x32xf32>
    %163 = arith.mulf %162, %161 : vector<64x32xf32>
    %164 = arith.mulf %151, %163 : vector<64x32xf32>
    %165 = arith.truncf %164 : vector<64x32xf32> to vector<64x32xbf16>
    %cst_45 = arith.constant dense<0.000000e+00> : vector<64x32xf32>
    %166 = tpu.matmul %165, %17, %cst_45 {dimension_numbers = #tpu.dot_dimension_numbers<[1], [0], [0], [1], [0, 0, 1, 1], [], []>} : vector<64x32xbf16>, vector<32x32xbf16>, vector<64x32xf32> -> vector<64x32xf32>
    %167 = vector.broadcast %29 : vector<1x32xf32> to vector<64x32xf32>
    %168 = arith.addf %166, %167 : vector<64x32xf32>
    %169 = arith.addf %125, %168 : vector<64x32xf32>
    %cst_46 = arith.constant dense<0.000000e+00> : vector<64xf32>
    %170 = vector.multi_reduction <add>, %169, %cst_46 [1] : vector<64x32xf32> to vector<64xf32>
    %171 = vector.shape_cast %170 : vector<64xf32> to vector<64x1xf32>
    %cst_47 = arith.constant 3.200000e+01 : f32
    %172 = vector.broadcast %cst_47 : f32 to vector<64x1xf32>
    %173 = arith.divf %171, %172 : vector<64x1xf32>
    %174 = vector.broadcast %173 : vector<64x1xf32> to vector<64x32xf32>
    %175 = arith.subf %169, %174 : vector<64x32xf32>
    %176 = arith.mulf %175, %175 : vector<64x32xf32>
    %cst_48 = arith.constant dense<0.000000e+00> : vector<64xf32>
    %177 = vector.multi_reduction <add>, %176, %cst_48 [1] : vector<64x32xf32> to vector<64xf32>
    %178 = vector.shape_cast %177 : vector<64xf32> to vector<64x1xf32>
    %cst_49 = arith.constant 3.200000e+01 : f32
    %179 = vector.broadcast %cst_49 : f32 to vector<64x1xf32>
    %180 = arith.divf %178, %179 : vector<64x1xf32>
    %cst_50 = arith.constant 9.99999974E-6 : f32
    %181 = vector.broadcast %cst_50 : f32 to vector<64x1xf32>
    %182 = arith.addf %180, %181 : vector<64x1xf32>
    %183 = math.rsqrt %182 : vector<64x1xf32>
    %184 = vector.broadcast %173 : vector<64x1xf32> to vector<64x32xf32>
    %185 = arith.subf %169, %184 : vector<64x32xf32>
    %186 = vector.broadcast %183 : vector<64x1xf32> to vector<64x32xf32>
    %187 = arith.mulf %185, %186 : vector<64x32xf32>
    %188 = vector.broadcast %30 : vector<1x32xf32> to vector<64x32xf32>
    %189 = arith.mulf %187, %188 : vector<64x32xf32>
    %190 = vector.broadcast %31 : vector<1x32xf32> to vector<64x32xf32>
    %191 = arith.addf %189, %190 : vector<64x32xf32>
    %192 = arith.truncf %191 : vector<64x32xf32> to vector<64x32xbf16>
    %cst_51 = arith.constant dense<0.000000e+00> : vector<64x32xf32>
    %193 = tpu.matmul %192, %11, %cst_51 {dimension_numbers = #tpu.dot_dimension_numbers<[1], [0], [0], [1], [0, 0, 1, 1], [], []>} : vector<64x32xbf16>, vector<32x32xbf16>, vector<64x32xf32> -> vector<64x32xf32>
    %194 = vector.broadcast %34 : vector<1x32xf32> to vector<64x32xf32>
    %195 = arith.addf %193, %194 : vector<64x32xf32>
    %196 = arith.truncf %191 : vector<64x32xf32> to vector<64x32xbf16>
    %cst_52 = arith.constant dense<0.000000e+00> : vector<64x32xf32>
    %197 = tpu.matmul %196, %12, %cst_52 {dimension_numbers = #tpu.dot_dimension_numbers<[1], [0], [0], [1], [0, 0, 1, 1], [], []>} : vector<64x32xbf16>, vector<32x32xbf16>, vector<64x32xf32> -> vector<64x32xf32>
    %198 = vector.broadcast %35 : vector<1x32xf32> to vector<64x32xf32>
    %199 = arith.addf %197, %198 : vector<64x32xf32>
    %200 = arith.truncf %191 : vector<64x32xf32> to vector<64x32xbf16>
    %cst_53 = arith.constant dense<0.000000e+00> : vector<64x32xf32>
    %201 = tpu.matmul %200, %13, %cst_53 {dimension_numbers = #tpu.dot_dimension_numbers<[1], [0], [0], [1], [0, 0, 1, 1], [], []>} : vector<64x32xbf16>, vector<32x32xbf16>, vector<64x32xf32> -> vector<64x32xf32>
    %202 = vector.broadcast %36 : vector<1x32xf32> to vector<64x32xf32>
    %203 = arith.addf %201, %202 : vector<64x32xf32>
    %cst_54 = arith.constant 0.176776692 : f32
    %204 = vector.broadcast %cst_54 : f32 to vector<64x32xf32>
    %205 = arith.mulf %195, %204 : vector<64x32xf32>
    %206 = vector.shape_cast %205 : vector<64x32xf32> to vector<8x8x32xf32>
    %207 = arith.truncf %206 : vector<8x8x32xf32> to vector<8x8x32xbf16>
    %208 = vector.shape_cast %199 : vector<64x32xf32> to vector<8x8x32xf32>
    %209 = arith.truncf %208 : vector<8x8x32xf32> to vector<8x8x32xbf16>
    %210 = vector.shape_cast %203 : vector<64x32xf32> to vector<8x8x32xf32>
    %211 = arith.truncf %210 : vector<8x8x32xf32> to vector<8x8x32xbf16>
    "tpu.trace_start"() <{level = 10 : i32, message = "tqc,tkc->tqk"}> : () -> ()
    %cst_55 = arith.constant dense<0.000000e+00> : vector<8x8x8xf32>
    %212 = tpu.matmul %207, %209, %cst_55 {dimension_numbers = #tpu.dot_dimension_numbers<[2], [2], [1], [1], [0, 0, 0, 1, 1, 1], [0], [0]>} : vector<8x8x32xbf16>, vector<8x8x32xbf16>, vector<8x8x8xf32> -> vector<8x8x8xf32>
    "tpu.trace_stop"() : () -> ()
    %cst_56 = arith.constant dense<0xFF800000> : vector<8x8xf32>
    %213 = vector.multi_reduction <maximumf>, %212, %cst_56 [2] : vector<8x8x8xf32> to vector<8x8xf32>
    %214 = vector.shape_cast %213 : vector<8x8xf32> to vector<8x8x1xf32>
    %215 = vector.broadcast %214 : vector<8x8x1xf32> to vector<8x8x8xf32>
    %216 = arith.subf %212, %215 : vector<8x8x8xf32>
    %217 = math.exp %216 : vector<8x8x8xf32>
    %cst_57 = arith.constant dense<0.000000e+00> : vector<8x8xf32>
    %218 = vector.multi_reduction <add>, %217, %cst_57 [2] : vector<8x8x8xf32> to vector<8x8xf32>
    %219 = vector.shape_cast %218 : vector<8x8xf32> to vector<8x8x1xf32>
    %220 = tpu.reciprocal %219 {approx = true} : vector<8x8x1xf32> -> vector<8x8x1xf32>
    %221 = vector.broadcast %220 : vector<8x8x1xf32> to vector<8x8x8xf32>
    %222 = arith.mulf %217, %221 : vector<8x8x8xf32>
    %223 = arith.truncf %222 : vector<8x8x8xf32> to vector<8x8x8xbf16>
    "tpu.trace_start"() <{level = 10 : i32, message = "tqk,tkc->tqc"}> : () -> ()
    %cst_58 = arith.constant dense<0.000000e+00> : vector<8x8x32xf32>
    %224 = tpu.matmul %223, %211, %cst_58 {dimension_numbers = #tpu.dot_dimension_numbers<[2], [1], [1], [2], [0, 0, 0, 1, 1, 2], [0], [0]>} : vector<8x8x8xbf16>, vector<8x8x32xbf16>, vector<8x8x32xf32> -> vector<8x8x32xf32>
    "tpu.trace_stop"() : () -> ()
    %225 = vector.shape_cast %224 : vector<8x8x32xf32> to vector<64x32xf32>
    %226 = arith.truncf %225 : vector<64x32xf32> to vector<64x32xbf16>
    %cst_59 = arith.constant dense<0.000000e+00> : vector<64x32xf32>
    %227 = tpu.matmul %226, %14, %cst_59 {dimension_numbers = #tpu.dot_dimension_numbers<[1], [0], [0], [1], [0, 0, 1, 1], [], []>} : vector<64x32xbf16>, vector<32x32xbf16>, vector<64x32xf32> -> vector<64x32xf32>
    %228 = vector.broadcast %37 : vector<1x32xf32> to vector<64x32xf32>
    %229 = arith.addf %227, %228 : vector<64x32xf32>
    %230 = arith.addf %169, %229 : vector<64x32xf32>
    %cst_60 = arith.constant dense<0.000000e+00> : vector<64xf32>
    %231 = vector.multi_reduction <add>, %230, %cst_60 [1] : vector<64x32xf32> to vector<64xf32>
    %232 = vector.shape_cast %231 : vector<64xf32> to vector<64x1xf32>
    %cst_61 = arith.constant 3.200000e+01 : f32
    %233 = vector.broadcast %cst_61 : f32 to vector<64x1xf32>
    %234 = arith.divf %232, %233 : vector<64x1xf32>
    %235 = vector.broadcast %234 : vector<64x1xf32> to vector<64x32xf32>
    %236 = arith.subf %230, %235 : vector<64x32xf32>
    %237 = arith.mulf %236, %236 : vector<64x32xf32>
    %cst_62 = arith.constant dense<0.000000e+00> : vector<64xf32>
    %238 = vector.multi_reduction <add>, %237, %cst_62 [1] : vector<64x32xf32> to vector<64xf32>
    %239 = vector.shape_cast %238 : vector<64xf32> to vector<64x1xf32>
    %cst_63 = arith.constant 3.200000e+01 : f32
    %240 = vector.broadcast %cst_63 : f32 to vector<64x1xf32>
    %241 = arith.divf %239, %240 : vector<64x1xf32>
    %cst_64 = arith.constant 9.99999974E-6 : f32
    %242 = vector.broadcast %cst_64 : f32 to vector<64x1xf32>
    %243 = arith.addf %241, %242 : vector<64x1xf32>
    %244 = math.rsqrt %243 : vector<64x1xf32>
    %245 = vector.broadcast %234 : vector<64x1xf32> to vector<64x32xf32>
    %246 = arith.subf %230, %245 : vector<64x32xf32>
    %247 = vector.broadcast %244 : vector<64x1xf32> to vector<64x32xf32>
    %248 = arith.mulf %246, %247 : vector<64x32xf32>
    %249 = vector.broadcast %32 : vector<1x32xf32> to vector<64x32xf32>
    %250 = arith.mulf %248, %249 : vector<64x32xf32>
    %251 = vector.broadcast %33 : vector<1x32xf32> to vector<64x32xf32>
    %252 = arith.addf %250, %251 : vector<64x32xf32>
    %253 = arith.truncf %252 : vector<64x32xf32> to vector<64x32xbf16>
    %cst_65 = arith.constant dense<0.000000e+00> : vector<64x32xf32>
    %254 = tpu.matmul %253, %16, %cst_65 {dimension_numbers = #tpu.dot_dimension_numbers<[1], [0], [0], [1], [0, 0, 1, 1], [], []>} : vector<64x32xbf16>, vector<32x32xbf16>, vector<64x32xf32> -> vector<64x32xf32>
    %255 = vector.broadcast %40 : vector<1x32xf32> to vector<64x32xf32>
    %256 = arith.addf %254, %255 : vector<64x32xf32>
    %257 = arith.mulf %256, %256 : vector<64x32xf32>
    %258 = arith.mulf %256, %257 : vector<64x32xf32>
    %cst_66 = arith.constant 4.471500e-02 : f32
    %259 = vector.broadcast %cst_66 : f32 to vector<64x32xf32>
    %260 = arith.mulf %259, %258 : vector<64x32xf32>
    %261 = arith.addf %256, %260 : vector<64x32xf32>
    %cst_67 = arith.constant 0.797884583 : f32
    %262 = vector.broadcast %cst_67 : f32 to vector<64x32xf32>
    %263 = arith.mulf %262, %261 : vector<64x32xf32>
    %264 = math.tanh %263 : vector<64x32xf32>
    %cst_68 = arith.constant 1.000000e+00 : f32
    %265 = vector.broadcast %cst_68 : f32 to vector<64x32xf32>
    %266 = arith.addf %265, %264 : vector<64x32xf32>
    %cst_69 = arith.constant 5.000000e-01 : f32
    %267 = vector.broadcast %cst_69 : f32 to vector<64x32xf32>
    %268 = arith.mulf %267, %266 : vector<64x32xf32>
    %269 = arith.mulf %256, %268 : vector<64x32xf32>
    %270 = arith.truncf %269 : vector<64x32xf32> to vector<64x32xbf16>
    %cst_70 = arith.constant dense<0.000000e+00> : vector<64x32xf32>
    %271 = tpu.matmul %270, %18, %cst_70 {dimension_numbers = #tpu.dot_dimension_numbers<[1], [0], [0], [1], [0, 0, 1, 1], [], []>} : vector<64x32xbf16>, vector<32x32xbf16>, vector<64x32xf32> -> vector<64x32xf32>
    %272 = vector.broadcast %38 : vector<1x32xf32> to vector<64x32xf32>
    %273 = arith.addf %271, %272 : vector<64x32xf32>
    %274 = arith.addf %230, %273 : vector<64x32xf32>
    %c0_71 = arith.constant 0 : index
    %c0_72 = arith.constant 0 : index
    %275 = vector.load %arg10[%c0_71, %c0_72] : memref<64x32xf32, #tpu.memory_space<vmem>>, vector<64x32xf32>
    tpu.vector_store %arg10[%c0_71, %c0_72], %274 {strides = array<i32>} : memref<64x32xf32, #tpu.memory_space<vmem>>, vector<64x32xf32>,
    return
  }
  func.func @transform_0(%arg0: i32) -> (i32, i32) {
    %c0_i32 = arith.constant 0 : i32
    %c0_i32_0 = arith.constant 0 : i32
    return %arg0, %c0_i32 : i32, i32
  }
  func.func @transform_1(%arg0: i32) -> (i32, i32) {
    %c0_i32 = arith.constant 0 : i32
    %c0_i32_0 = arith.constant 0 : i32
    return %arg0, %c0_i32 : i32, i32
  }
  func.func @transform_2(%arg0: i32) -> (i32, i32) {
    %c0_i32 = arith.constant 0 : i32
    %c0_i32_0 = arith.constant 0 : i32
    %c0_i32_1 = arith.constant 0 : i32
    return %c0_i32, %c0_i32_0 : i32, i32
  }
  func.func @transform_3(%arg0: i32) -> (i32, i32) {
    %c0_i32 = arith.constant 0 : i32
    %c0_i32_0 = arith.constant 0 : i32
    %c0_i32_1 = arith.constant 0 : i32
    return %c0_i32, %c0_i32_0 : i32, i32
  }
  func.func @transform_4(%arg0: i32) -> (i32, i32) {
    %c0_i32 = arith.constant 0 : i32
    %c0_i32_0 = arith.constant 0 : i32
    %c0_i32_1 = arith.constant 0 : i32
    return %c0_i32, %c0_i32_0 : i32, i32
  }
  func.func @transform_5(%arg0: i32) -> (i32, i32) {
    %c0_i32 = arith.constant 0 : i32
    %c0_i32_0 = arith.constant 0 : i32
    %c0_i32_1 = arith.constant 0 : i32
    return %c0_i32, %c0_i32_0 : i32, i32
  }
  func.func @transform_6(%arg0: i32) -> (i32, i32) {
    %c0_i32 = arith.constant 0 : i32
    %c0_i32_0 = arith.constant 0 : i32
    %c0_i32_1 = arith.constant 0 : i32
    return %c0_i32, %c0_i32_0 : i32, i32
  }
  func.func @transform_7(%arg0: i32) -> (i32, i32) {
    %c0_i32 = arith.constant 0 : i32
    %c0_i32_0 = arith.constant 0 : i32
    %c0_i32_1 = arith.constant 0 : i32
    return %c0_i32, %c0_i32_0 : i32, i32
  }
  func.func @transform_8(%arg0: i32) -> (i32, i32) {
    %c0_i32 = arith.constant 0 : i32
    %c0_i32_0 = arith.constant 0 : i32
    %c0_i32_1 = arith.constant 0 : i32
    return %c0_i32, %c0_i32_0 : i32, i32
  }
  func.func @transform_9(%arg0: i32) -> (i32, i32) {
    %c0_i32 = arith.constant 0 : i32
    %c0_i32_0 = arith.constant 0 : i32
    return %arg0, %c0_i32 : i32, i32
  }
}

</mosaic_0001>

<llo_original>
// kernel: tpu_custom_call.1
$region0: #{tpu_custom_call.1}
  #allocation0 [shape = 'u32[]', space=smem, size = 0x4, offset = 0x4, fixed_abs, tag = 'smem constant byte address 0x4 - core index']
  #allocation1 [shape = 'u32[144,128]{1,0:T(1,128)}', space=vmem, size = 0x12000, scoped, tag = 'internal scratch']
  %s0 = inlined_call_operand.vmem [shape: f32[128,16], index: 0, kind: input, shape index: {}]
  %s1 = inlined_call_operand.vmem [shape: f32[64,32], index: 1, kind: input, shape index: {}]
  %s2 = inlined_call_operand.vmem [shape: bf16[32,32], index: 2, kind: input, shape index: {}]
  %s3 = inlined_call_operand.vmem [shape: bf16[192,32], index: 3, kind: input, shape index: {}]
  %s4 = inlined_call_operand.vmem [shape: bf16[64,32], index: 4, kind: input, shape index: {}]
  %s5 = inlined_call_operand.vmem [shape: bf16[64,32], index: 5, kind: input, shape index: {}]
  %s6 = inlined_call_operand.vmem [shape: f32[2,16], index: 6, kind: input, shape index: {}]
  %s7 = inlined_call_operand.vmem [shape: f32[18,32], index: 7, kind: input, shape index: {}]
  %s8 = inlined_call_operand.vmem [shape: f32[2,32], index: 8, kind: input, shape index: {}]
  %s9 = inlined_call_operand.vmem [shape: f32[64,32], index: 9, kind: output, shape index: {}]
  %s10 = sld [smem:[#allocation0]]
  $region46: #{tpu_custom_call.1} parent=0
    _
  %s12 = ssub.s32 1, %s10
  %s13 = scalar_select 0, %s12, %s10
  // Predicated region
  $region2: #{tpu_custom_call.1} parent=0 // pred_check
    _
  $region3: #{tpu_custom_call.1} parent=0 // pred_check_branch
    %15 = sbr.rel (0) target = $region5
  $region4: #{tpu_custom_call.1} parent=0 // pred_region
    _
  $region5: #{tpu_custom_call.1} parent=0 // pred_fallthru
    _
  // Predicated region
  $region6: #{tpu_custom_call.1} parent=0 // pred_check
    _
  $region7: #{tpu_custom_call.1} parent=0 // pred_check_branch
    %17 = sbr.rel (0) target = $region9
  $region8: #{tpu_custom_call.1} parent=0 // pred_region
    _
  $region9: #{tpu_custom_call.1} parent=0 // pred_fallthru
    _
  // Predicated region
  $region10: #{tpu_custom_call.1} parent=0 // pred_check
    _
  $region11: #{tpu_custom_call.1} parent=0 // pred_check_branch
    %19 = sbr.rel (0) target = $region13
  $region12: #{tpu_custom_call.1} parent=0 // pred_region
    _
  $region13: #{tpu_custom_call.1} parent=0 // pred_fallthru
    _
  // Predicated region
  $region14: #{tpu_custom_call.1} parent=0 // pred_check
    _
  $region15: #{tpu_custom_call.1} parent=0 // pred_check_branch
    %21 = sbr.rel (0) target = $region17
  $region16: #{tpu_custom_call.1} parent=0 // pred_region
    _
  $region17: #{tpu_custom_call.1} parent=0 // pred_fallthru
    _
  // Predicated region
  $region18: #{tpu_custom_call.1} parent=0 // pred_check
    _
  $region19: #{tpu_custom_call.1} parent=0 // pred_check_branch
    %23 = sbr.rel (0) target = $region21
  $region20: #{tpu_custom_call.1} parent=0 // pred_region
    _
  $region21: #{tpu_custom_call.1} parent=0 // pred_fallthru
    _
  // Predicated region
  $region22: #{tpu_custom_call.1} parent=0 // pred_check
    _
  $region23: #{tpu_custom_call.1} parent=0 // pred_check_branch
    %25 = sbr.rel (0) target = $region25
  $region24: #{tpu_custom_call.1} parent=0 // pred_region
    _
  $region25: #{tpu_custom_call.1} parent=0 // pred_fallthru
    _
  // Predicated region
  $region26: #{tpu_custom_call.1} parent=0 // pred_check
    _
  $region27: #{tpu_custom_call.1} parent=0 // pred_check_branch
    %27 = sbr.rel (0) target = $region29
  $region28: #{tpu_custom_call.1} parent=0 // pred_region
    _
  $region29: #{tpu_custom_call.1} parent=0 // pred_fallthru
    _
  // Predicated region
  $region30: #{tpu_custom_call.1} parent=0 // pred_check
    _
  $region31: #{tpu_custom_call.1} parent=0 // pred_check_branch
    %29 = sbr.rel (0) target = $region33
  $region32: #{tpu_custom_call.1} parent=0 // pred_region
    _
  $region33: #{tpu_custom_call.1} parent=0 // pred_fallthru
    _
  // Predicated region
  $region34: #{tpu_custom_call.1} parent=0 // pred_check
    _
  $region35: #{tpu_custom_call.1} parent=0 // pred_check_branch
    %31 = sbr.rel (0) target = $region37
  $region36: #{tpu_custom_call.1} parent=0 // pred_region
    _
  $region37: #{tpu_custom_call.1} parent=0 // pred_fallthru
    _
  %v33 = vld [vmem:[%s2] sm:$0xf]
  %v34 = vld [vmem:[%s2 + $0x4] sm:$0xf]
  %v35 = vld [vmem:[%s2 + $0x8] sm:$0xf]
  %v36 = vld [vmem:[%s2 + $0xc] sm:$0xf]
  %v37 = vld [vmem:[%s3] sm:$0xf]
  %v38 = vld [vmem:[%s3 + $0x4] sm:$0xf]
  %v39 = vld [vmem:[%s3 + $0x8] sm:$0xf]
  %v40 = vld [vmem:[%s3 + $0xc] sm:$0xf]
  %v41 = vld [vmem:[%s3 + $0x10] sm:$0xf]
  %v42 = vld [vmem:[%s3 + $0x14] sm:$0xf]
  %v43 = vld [vmem:[%s3 + $0x18] sm:$0xf]
  %v44 = vld [vmem:[%s3 + $0x1c] sm:$0xf]
  %v45 = vld [vmem:[%s3 + $0x20] sm:$0xf]
  %v46 = vld [vmem:[%s3 + $0x24] sm:$0xf]
  %v47 = vld [vmem:[%s3 + $0x28] sm:$0xf]
  %v48 = vld [vmem:[%s3 + $0x2c] sm:$0xf]
  %v49 = vld [vmem:[%s3 + $0x30] sm:$0xf]
  %v50 = vld [vmem:[%s3 + $0x34] sm:$0xf]
  %v51 = vld [vmem:[%s3 + $0x38] sm:$0xf]
  %v52 = vld [vmem:[%s3 + $0x3c] sm:$0xf]
  %v53 = vld [vmem:[%s3 + $0x40] sm:$0xf]
  %v54 = vld [vmem:[%s3 + $0x44] sm:$0xf]
  %v55 = vld [vmem:[%s3 + $0x48] sm:$0xf]
  %v56 = vld [vmem:[%s3 + $0x4c] sm:$0xf]
  %v57 = vld [vmem:[%s3 + $0x50] sm:$0xf]
  %v58 = vld [vmem:[%s3 + $0x54] sm:$0xf]
  %v59 = vld [vmem:[%s3 + $0x58] sm:$0xf]
  %v60 = vld [vmem:[%s3 + $0x5c] sm:$0xf]
  %v61 = vld [vmem:[%s4] sm:$0xf]
  %v62 = vld [vmem:[%s4 + $0x4] sm:$0xf]
  %v63 = vld [vmem:[%s4 + $0x8] sm:$0xf]
  %v64 = vld [vmem:[%s4 + $0xc] sm:$0xf]
  %v65 = vld [vmem:[%s4 + $0x10] sm:$0xf]
  %v66 = vld [vmem:[%s4 + $0x14] sm:$0xf]
  %v67 = vld [vmem:[%s4 + $0x18] sm:$0xf]
  %v68 = vld [vmem:[%s4 + $0x1c] sm:$0xf]
  %v69 = vld [vmem:[%s5] sm:$0xf]
  %v70 = vld [vmem:[%s5 + $0x4] sm:$0xf]
  %v71 = vld [vmem:[%s5 + $0x8] sm:$0xf]
  %v72 = vld [vmem:[%s5 + $0xc] sm:$0xf]
  %v73 = vld [vmem:[%s5 + $0x10] sm:$0xf]
  %v74 = vld [vmem:[%s5 + $0x14] sm:$0xf]
  %v75 = vld [vmem:[%s5 + $0x18] sm:$0xf]
  %v76 = vld [vmem:[%s5 + $0x1c] sm:$0xf]
  %v77 = vld [vmem:[%s6] sm:$0x3]
  %v78 = vld [vmem:[%s7] sm:$0xff]
  %v79 = vld [vmem:[%s7 + $0x8] sm:$0xff]
  %v80 = vld [vmem:[%s7 + $0x10] sm:$0x3]
  %v81 = vld [vmem:[%s8] sm:$0x3]
  %v82 = vld [vmem:[%s0] sm:$0xff]
  %v83 = vld [vmem:[%s0 + $0x8] sm:$0xff]
  %v84 = vld [vmem:[%s0 + $0x10] sm:$0xff]
  %v85 = vld [vmem:[%s0 + $0x18] sm:$0xff]
  %v86 = vld [vmem:[%s0 + $0x20] sm:$0xff]
  %v87 = vld [vmem:[%s0 + $0x28] sm:$0xff]
  %v88 = vld [vmem:[%s0 + $0x30] sm:$0xff]
  %v89 = vld [vmem:[%s0 + $0x38] sm:$0xff]
  %v90 = vld [vmem:[%s0 + $0x40] sm:$0xff]
  %v91 = vld [vmem:[%s0 + $0x48] sm:$0xff]
  %v92 = vld [vmem:[%s0 + $0x50] sm:$0xff]
  %v93 = vld [vmem:[%s0 + $0x58] sm:$0xff]
  %v94 = vld [vmem:[%s0 + $0x60] sm:$0xff]
  %v95 = vld [vmem:[%s0 + $0x68] sm:$0xff]
  %v96 = vld [vmem:[%s0 + $0x70] sm:$0xff]
  %v97 = vld [vmem:[%s0 + $0x78] sm:$0xff]
  %v98 = vld [vmem:[%s1] sm:$0xff]
  %v99 = vld [vmem:[%s1 + $0x8] sm:$0xff]
  %v100 = vld [vmem:[%s1 + $0x10] sm:$0xff]
  %v101 = vld [vmem:[%s1 + $0x18] sm:$0xff]
  %v102 = vld [vmem:[%s1 + $0x20] sm:$0xff]
  %v103 = vld [vmem:[%s1 + $0x28] sm:$0xff]
  %v104 = vld [vmem:[%s1 + $0x30] sm:$0xff]
  %v105 = vld [vmem:[%s1 + $0x38] sm:$0xff]
  %vm106 = vcmask 130048
  %v107 = vsel %vm106, %v82, 0.0
  %108 = vadd.xlane.f32.xlu0 %v107
  %v109 = vpop.xlane.xlu0 %108
  %v110 = vsel %vm106, %v83, 0.0
  %111 = vadd.xlane.f32.xlu0 %v110
  %v112 = vpop.xlane.xlu0 %111
  %v113 = vsel %vm106, %v84, 0.0
  %114 = vadd.xlane.f32.xlu0 %v113
  %v115 = vpop.xlane.xlu0 %114
  %v116 = vsel %vm106, %v85, 0.0
  %117 = vadd.xlane.f32.xlu0 %v116
  %v118 = vpop.xlane.xlu0 %117
  %v119 = vsel %vm106, %v86, 0.0
  %120 = vadd.xlane.f32.xlu0 %v119
  %v121 = vpop.xlane.xlu0 %120
  %v122 = vsel %vm106, %v87, 0.0
  %123 = vadd.xlane.f32.xlu0 %v122
  %v124 = vpop.xlane.xlu0 %123
  %v125 = vsel %vm106, %v88, 0.0
  %126 = vadd.xlane.f32.xlu0 %v125
  %v127 = vpop.xlane.xlu0 %126
  %v128 = vsel %vm106, %v89, 0.0
  %129 = vadd.xlane.f32.xlu0 %v128
  %v130 = vpop.xlane.xlu0 %129
  %v131 = vsel %vm106, %v90, 0.0
  %132 = vadd.xlane.f32.xlu0 %v131
  %v133 = vpop.xlane.xlu0 %132
  %v134 = vsel %vm106, %v91, 0.0
  %135 = vadd.xlane.f32.xlu0 %v134
  %v136 = vpop.xlane.xlu0 %135
  %v137 = vsel %vm106, %v92, 0.0
  %138 = vadd.xlane.f32.xlu0 %v137
  %v139 = vpop.xlane.xlu0 %138
  %v140 = vsel %vm106, %v93, 0.0
  %141 = vadd.xlane.f32.xlu0 %v140
  %v142 = vpop.xlane.xlu0 %141
  %v143 = vsel %vm106, %v94, 0.0
  %144 = vadd.xlane.f32.xlu0 %v143
  %v145 = vpop.xlane.xlu0 %144
  %v146 = vsel %vm106, %v95, 0.0
  %147 = vadd.xlane.f32.xlu0 %v146
  %v148 = vpop.xlane.xlu0 %147
  %v149 = vsel %vm106, %v96, 0.0
  %150 = vadd.xlane.f32.xlu0 %v149
  %v151 = vpop.xlane.xlu0 %150
  %v152 = vsel %vm106, %v97, 0.0
  %153 = vadd.xlane.f32.xlu0 %v152
  %v154 = vpop.xlane.xlu0 %153
  %v155 = vrcp.pop 16.0
  %v156 = vmul.f32 %v109, %v155
  %v157 = vmul.f32 %v112, %v155
  %v158 = vmul.f32 %v115, %v155
  %v159 = vmul.f32 %v118, %v155
  %v160 = vmul.f32 %v121, %v155
  %v161 = vmul.f32 %v124, %v155
  %v162 = vmul.f32 %v127, %v155
  %v163 = vmul.f32 %v130, %v155
  %v164 = vmul.f32 %v133, %v155
  %v165 = vmul.f32 %v136, %v155
  %v166 = vmul.f32 %v139, %v155
  %v167 = vmul.f32 %v142, %v155
  %v168 = vmul.f32 %v145, %v155
  %v169 = vmul.f32 %v148, %v155
  %v170 = vmul.f32 %v151, %v155
  %v171 = vmul.f32 %v154, %v155
  %v172 = vsub.f32 %v82, %v156
  %v173 = vsub.f32 %v83, %v157
  %v174 = vsub.f32 %v84, %v158
  %v175 = vsub.f32 %v85, %v159
  %v176 = vsub.f32 %v86, %v160
  %v177 = vsub.f32 %v87, %v161
  %v178 = vsub.f32 %v88, %v162
  %v179 = vsub.f32 %v89, %v163
  %v180 = vsub.f32 %v90, %v164
  %v181 = vsub.f32 %v91, %v165
  %v182 = vsub.f32 %v92, %v166
  %v183 = vsub.f32 %v93, %v167
  %v184 = vsub.f32 %v94, %v168
  %v185 = vsub.f32 %v95, %v169
  %v186 = vsub.f32 %v96, %v170
  %v187 = vsub.f32 %v97, %v171
  %v188 = vmul.f32 %v172, %v172
  %v189 = vmul.f32 %v173, %v173
  %v190 = vmul.f32 %v174, %v174
  %v191 = vmul.f32 %v175, %v175
  %v192 = vmul.f32 %v176, %v176
  %v193 = vmul.f32 %v177, %v177
  %v194 = vmul.f32 %v178, %v178
  %v195 = vmul.f32 %v179, %v179
  %v196 = vmul.f32 %v180, %v180
  %v197 = vmul.f32 %v181, %v181
  %v198 = vmul.f32 %v182, %v182
  %v199 = vmul.f32 %v183, %v183
  %v200 = vmul.f32 %v184, %v184
  %v201 = vmul.f32 %v185, %v185
  %v202 = vmul.f32 %v186, %v186
  %v203 = vmul.f32 %v187, %v187
  %v204 = vsel %vm106, %v188, 0.0
  %205 = vadd.xlane.f32.xlu0 %v204
  %v206 = vpop.xlane.xlu0 %205
  %v207 = vsel %vm106, %v189, 0.0
  %208 = vadd.xlane.f32.xlu0 %v207
  %v209 = vpop.xlane.xlu0 %208
  %v210 = vsel %vm106, %v190, 0.0
  %211 = vadd.xlane.f32.xlu0 %v210
  %v212 = vpop.xlane.xlu0 %211
  %v213 = vsel %vm106, %v191, 0.0
  %214 = vadd.xlane.f32.xlu0 %v213
  %v215 = vpop.xlane.xlu0 %214
  %v216 = vsel %vm106, %v192, 0.0
  %217 = vadd.xlane.f32.xlu0 %v216
  %v218 = vpop.xlane.xlu0 %217
  %v219 = vsel %vm106, %v193, 0.0
  %220 = vadd.xlane.f32.xlu0 %v219
  %v221 = vpop.xlane.xlu0 %220
  %v222 = vsel %vm106, %v194, 0.0
  %223 = vadd.xlane.f32.xlu0 %v222
  %v224 = vpop.xlane.xlu0 %223
  %v225 = vsel %vm106, %v195, 0.0
  %226 = vadd.xlane.f32.xlu0 %v225
  %v227 = vpop.xlane.xlu0 %226
  %v228 = vsel %vm106, %v196, 0.0
  %229 = vadd.xlane.f32.xlu0 %v228
  %v230 = vpop.xlane.xlu0 %229
  %v231 = vsel %vm106, %v197, 0.0
  %232 = vadd.xlane.f32.xlu0 %v231
  %v233 = vpop.xlane.xlu0 %232
  %v234 = vsel %vm106, %v198, 0.0
  %235 = vadd.xlane.f32.xlu0 %v234
  %v236 = vpop.xlane.xlu0 %235
  %v237 = vsel %vm106, %v199, 0.0
  %238 = vadd.xlane.f32.xlu0 %v237
  %v239 = vpop.xlane.xlu0 %238
  %v240 = vsel %vm106, %v200, 0.0
  %241 = vadd.xlane.f32.xlu0 %v240
  %v242 = vpop.xlane.xlu0 %241
  %v243 = vsel %vm106, %v201, 0.0
  %244 = vadd.xlane.f32.xlu0 %v243
  %v245 = vpop.xlane.xlu0 %244
  %v246 = vsel %vm106, %v202, 0.0
  %247 = vadd.xlane.f32.xlu0 %v246
  %v248 = vpop.xlane.xlu0 %247
  %v249 = vsel %vm106, %v203, 0.0
  %250 = vadd.xlane.f32.xlu0 %v249
  %v251 = vpop.xlane.xlu0 %250
  %v252 = vmul.f32 %v206, %v155
  %v253 = vmul.f32 %v209, %v155
  %v254 = vmul.f32 %v212, %v155
  %v255 = vmul.f32 %v215, %v155
  %v256 = vmul.f32 %v218, %v155
  %v257 = vmul.f32 %v221, %v155
  %v258 = vmul.f32 %v224, %v155
  %v259 = vmul.f32 %v227, %v155
  %v260 = vmul.f32 %v230, %v155
  %v261 = vmul.f32 %v233, %v155
  %v262 = vmul.f32 %v236, %v155
  %v263 = vmul.f32 %v239, %v155
  %v264 = vmul.f32 %v242, %v155
  %v265 = vmul.f32 %v245, %v155
  %v266 = vmul.f32 %v248, %v155
  %v267 = vmul.f32 %v251, %v155
  %v268 = vadd.f32 %v252, 1e-05
  %v269 = vadd.f32 %v253, 1e-05
  %v270 = vadd.f32 %v254, 1e-05
  %v271 = vadd.f32 %v255, 1e-05
  %v272 = vadd.f32 %v256, 1e-05
  %v273 = vadd.f32 %v257, 1e-05
  %v274 = vadd.f32 %v258, 1e-05
  %v275 = vadd.f32 %v259, 1e-05
  %v276 = vadd.f32 %v260, 1e-05
  %v277 = vadd.f32 %v261, 1e-05
  %v278 = vadd.f32 %v262, 1e-05
  %v279 = vadd.f32 %v263, 1e-05
  %v280 = vadd.f32 %v264, 1e-05
  %v281 = vadd.f32 %v265, 1e-05
  %v282 = vadd.f32 %v266, 1e-05
  %v283 = vadd.f32 %v267, 1e-05
  %v284 = vrsqrt.pop %v268
  %v285 = vrsqrt.pop %v269
  %v286 = vrsqrt.pop %v270
  %v287 = vrsqrt.pop %v271
  %v288 = vrsqrt.pop %v272
  %v289 = vrsqrt.pop %v273
  %v290 = vrsqrt.pop %v274
  %v291 = vrsqrt.pop %v275
  %v292 = vrsqrt.pop %v276
  %v293 = vrsqrt.pop %v277
  %v294 = vrsqrt.pop %v278
  %v295 = vrsqrt.pop %v279
  %v296 = vrsqrt.pop %v280
  %v297 = vrsqrt.pop %v281
  %v298 = vrsqrt.pop %v282
  %v299 = vrsqrt.pop %v283
  %v300 = vmul.f32 %v172, %v284
  %v301 = vmul.f32 %v173, %v285
  %v302 = vmul.f32 %v174, %v286
  %v303 = vmul.f32 %v175, %v287
  %v304 = vmul.f32 %v176, %v288
  %v305 = vmul.f32 %v177, %v289
  %v306 = vmul.f32 %v178, %v290
  %v307 = vmul.f32 %v179, %v291
  %v308 = vmul.f32 %v180, %v292
  %v309 = vmul.f32 %v181, %v293
  %v310 = vmul.f32 %v182, %v294
  %v311 = vmul.f32 %v183, %v295
  %v312 = vmul.f32 %v184, %v296
  %v313 = vmul.f32 %v185, %v297
  %v314 = vmul.f32 %v186, %v298
  %v315 = vmul.f32 %v187, %v299
  %v316 = vlaneseq
  %v317 = vshrl.u32 %v316, 7
  %v318 = vsub.s32 0, %v317
  %v319 = vrot.slane %v77, %v318
  %v320 = vmul.f32 %v300, %v319
  %v321 = vmul.f32 %v301, %v319
  %v322 = vmul.f32 %v302, %v319
  %v323 = vmul.f32 %v303, %v319
  %v324 = vmul.f32 %v304, %v319
  %v325 = vmul.f32 %v305, %v319
  %v326 = vmul.f32 %v306, %v319
  %v327 = vmul.f32 %v307, %v319
  %v328 = vmul.f32 %v308, %v319
  %v329 = vmul.f32 %v309, %v319
  %v330 = vmul.f32 %v310, %v319
  %v331 = vmul.f32 %v311, %v319
  %v332 = vmul.f32 %v312, %v319
  %v333 = vmul.f32 %v313, %v319
  %v334 = vmul.f32 %v314, %v319
  %v335 = vmul.f32 %v315, %v319
  %v336 = vlaneseq
  %v337 = vshrl.u32 %v336, 7
  %v338 = vsub.s32 1, %v337
  %v339 = vrot.slane %v77, %v338
  %v340 = vadd.f32 %v320, %v339
  %v341 = vadd.f32 %v321, %v339
  %v342 = vadd.f32 %v322, %v339
  %v343 = vadd.f32 %v323, %v339
  %v344 = vadd.f32 %v324, %v339
  %v345 = vadd.f32 %v325, %v339
  %v346 = vadd.f32 %v326, %v339
  %v347 = vadd.f32 %v327, %v339
  %v348 = vadd.f32 %v328, %v339
  %v349 = vadd.f32 %v329, %v339
  %v350 = vadd.f32 %v330, %v339
  %v351 = vadd.f32 %v331, %v339
  %v352 = vadd.f32 %v332, %v339
  %v353 = vadd.f32 %v333, %v339
  %v354 = vadd.f32 %v334, %v339
  %v355 = vadd.f32 %v335, %v339
  %vm356 = vcmask 261120
  %v357 = vsel %vm356, %v98, 0.0
  %358 = vadd.xlane.f32.xlu0 %v357
  %v359 = vpop.xlane.xlu0 %358
  %v360 = vsel %vm356, %v99, 0.0
  %361 = vadd.xlane.f32.xlu0 %v360
  %v362 = vpop.xlane.xlu0 %361
  %v363 = vsel %vm356, %v100, 0.0
  %364 = vadd.xlane.f32.xlu0 %v363
  %v365 = vpop.xlane.xlu0 %364
  %v366 = vsel %vm356, %v101, 0.0
  %367 = vadd.xlane.f32.xlu0 %v366
  %v368 = vpop.xlane.xlu0 %367
  %v369 = vsel %vm356, %v102, 0.0
  %370 = vadd.xlane.f32.xlu0 %v369
  %v371 = vpop.xlane.xlu0 %370
  %v372 = vsel %vm356, %v103, 0.0
  %373 = vadd.xlane.f32.xlu0 %v372
  %v374 = vpop.xlane.xlu0 %373
  %v375 = vsel %vm356, %v104, 0.0
  %376 = vadd.xlane.f32.xlu0 %v375
  %v377 = vpop.xlane.xlu0 %376
  %v378 = vsel %vm356, %v105, 0.0
  %379 = vadd.xlane.f32.xlu0 %v378
  %v380 = vpop.xlane.xlu0 %379
  %v381 = vrcp.pop 32.0
  %v382 = vmul.f32 %v359, %v381
  %v383 = vmul.f32 %v362, %v381
  %v384 = vmul.f32 %v365, %v381
  %v385 = vmul.f32 %v368, %v381
  %v386 = vmul.f32 %v371, %v381
  %v387 = vmul.f32 %v374, %v381
  %v388 = vmul.f32 %v377, %v381
  %v389 = vmul.f32 %v380, %v381
  %v390 = vsub.f32 %v98, %v382
  %v391 = vsub.f32 %v99, %v383
  %v392 = vsub.f32 %v100, %v384
  %v393 = vsub.f32 %v101, %v385
  %v394 = vsub.f32 %v102, %v386
  %v395 = vsub.f32 %v103, %v387
  %v396 = vsub.f32 %v104, %v388
  %v397 = vsub.f32 %v105, %v389
  %v398 = vmul.f32 %v390, %v390
  %v399 = vmul.f32 %v391, %v391
  %v400 = vmul.f32 %v392, %v392
  %v401 = vmul.f32 %v393, %v393
  %v402 = vmul.f32 %v394, %v394
  %v403 = vmul.f32 %v395, %v395
  %v404 = vmul.f32 %v396, %v396
  %v405 = vmul.f32 %v397, %v397
  %v406 = vsel %vm356, %v398, 0.0
  %407 = vadd.xlane.f32.xlu0 %v406
  %v408 = vpop.xlane.xlu0 %407
  %v409 = vsel %vm356, %v399, 0.0
  %410 = vadd.xlane.f32.xlu0 %v409
  %v411 = vpop.xlane.xlu0 %410
  %v412 = vsel %vm356, %v400, 0.0
  %413 = vadd.xlane.f32.xlu0 %v412
  %v414 = vpop.xlane.xlu0 %413
  %v415 = vsel %vm356, %v401, 0.0
  %416 = vadd.xlane.f32.xlu0 %v415
  %v417 = vpop.xlane.xlu0 %416
  %v418 = vsel %vm356, %v402, 0.0
  %419 = vadd.xlane.f32.xlu0 %v418
  %v420 = vpop.xlane.xlu0 %419
  %v421 = vsel %vm356, %v403, 0.0
  %422 = vadd.xlane.f32.xlu0 %v421
  %v423 = vpop.xlane.xlu0 %422
  %v424 = vsel %vm356, %v404, 0.0
  %425 = vadd.xlane.f32.xlu0 %v424
  %v426 = vpop.xlane.xlu0 %425
  %v427 = vsel %vm356, %v405, 0.0
  %428 = vadd.xlane.f32.xlu0 %v427
  %v429 = vpop.xlane.xlu0 %428
  %v430 = vmul.f32 %v408, %v381
  %v431 = vmul.f32 %v411, %v381
  %v432 = vmul.f32 %v414, %v381
  %v433 = vmul.f32 %v417, %v381
  %v434 = vmul.f32 %v420, %v381
  %v435 = vmul.f32 %v423, %v381
  %v436 = vmul.f32 %v426, %v381
  %v437 = vmul.f32 %v429, %v381
  %v438 = vadd.f32 %v430, 1e-05
  %v439 = vadd.f32 %v431, 1e-05
  %v440 = vadd.f32 %v432, 1e-05
  %v441 = vadd.f32 %v433, 1e-05
  %v442 = vadd.f32 %v434, 1e-05
  %v443 = vadd.f32 %v435, 1e-05
  %v444 = vadd.f32 %v436, 1e-05
  %v445 = vadd.f32 %v437, 1e-05
  %v446 = vrsqrt.pop %v438
  %v447 = vrsqrt.pop %v439
  %v448 = vrsqrt.pop %v440
  %v449 = vrsqrt.pop %v441
  %v450 = vrsqrt.pop %v442
  %v451 = vrsqrt.pop %v443
  %v452 = vrsqrt.pop %v444
  %v453 = vrsqrt.pop %v445
  %v454 = vmul.f32 %v390, %v446
  %v455 = vmul.f32 %v391, %v447
  %v456 = vmul.f32 %v392, %v448
  %v457 = vmul.f32 %v393, %v449
  %v458 = vmul.f32 %v394, %v450
  %v459 = vmul.f32 %v395, %v451
  %v460 = vmul.f32 %v396, %v452
  %v461 = vmul.f32 %v397, %v453
  %v462 = vlaneseq
  %v463 = vshrl.u32 %v462, 7
  %v464 = vsub.s32 0, %v463
  %v465 = vrot.slane %v78, %v464
  %v466 = vmul.f32 %v454, %v465
  %v467 = vmul.f32 %v455, %v465
  %v468 = vmul.f32 %v456, %v465
  %v469 = vmul.f32 %v457, %v465
  %v470 = vmul.f32 %v458, %v465
  %v471 = vmul.f32 %v459, %v465
  %v472 = vmul.f32 %v460, %v465
  %v473 = vmul.f32 %v461, %v465
  %v474 = vlaneseq
  %v475 = vshrl.u32 %v474, 7
  %v476 = vsub.s32 1, %v475
  %v477 = vrot.slane %v78, %v476
  %v478 = vadd.f32 %v466, %v477
  %v479 = vadd.f32 %v467, %v477
  %v480 = vadd.f32 %v468, %v477
  %v481 = vadd.f32 %v469, %v477
  %v482 = vadd.f32 %v470, %v477
  %v483 = vadd.f32 %v471, %v477
  %v484 = vadd.f32 %v472, %v477
  %v485 = vadd.f32 %v473, %v477
  %v486 = vpack.c.bf16 %v479, %v478
  %v487 = vpack.c.bf16 %v481, %v480
  %v488 = vpack.c.bf16 %v483, %v482
  %v489 = vpack.c.bf16 %v485, %v484
  %v490 = vlaneseq
  %v491 = vshrl.u32 %v490, 7
  %v492 = vsub.s32 4, %v491
  %v493 = vrot.slane %v78, %v492
  %v498 = vunpack.c.l.b16 %v37
  %v499 = vunpack.c.l.b16 %v38
  %v500 = vunpack.c.l.b16 %v39
  %v501 = vunpack.c.l.b16 %v40
  %v502 = vpack.c.b16 %v499, %v498
  %v503 = vpack.c.b16 %v501, %v500
  %v507 = vsel %vm356, %v486, 0
  %v510 = vsel %vm356, %v487, 0
  %v513 = vsel %vm356, %v488, 0
  %v516 = vsel %vm356, %v489, 0
  %518 = vmatprep.subr.bf16.mxu0 0
  %519 = vmatpush1.bf16.msra.mxu0 %v502
  %520 = vmatprep.subr.bf16.mxu0 0
  %521 = vmatpush1.bf16.msra.mxu0 %v503
  %522 = vmatprep.subr.bf16.mxu0 0
  %523 = vmatpush1.bf16.msra.mxu0 0
  %524 = vmatprep.subr.bf16.mxu0 0
  %525 = vmatpush1.bf16.msra.mxu0 0
  %526 = vmatprep.subr.bf16.mxu0 0
  %527 = vmatpush1.bf16.msra.mxu0 0
  %528 = vmatprep.subr.bf16.mxu0 0
  %529 = vmatpush1.bf16.msra.mxu0 0
  %530 = vmatprep.subr.bf16.mxu0 0
  %531 = vmatpush1.bf16.msra.mxu0 0
  %532 = vmatprep.subr.bf16.mxu0 0
  %533 = vmatpush1.bf16.msra.mxu0 0
  %534 = vmatprep.subr.bf16.mxu0 0
  %535 = vmatpush1.bf16.msra.mxu0 0
  %536 = vmatprep.subr.bf16.mxu0 0
  %537 = vmatpush1.bf16.msra.mxu0 0
  %538 = vmatprep.subr.bf16.mxu0 0
  %539 = vmatpush1.bf16.msra.mxu0 0
  %540 = vmatprep.subr.bf16.mxu0 0
  %541 = vmatpush1.bf16.msra.mxu0 0
  %542 = vmatprep.subr.bf16.mxu0 0
  %543 = vmatpush1.bf16.msra.mxu0 0
  %544 = vmatprep.subr.bf16.mxu0 0
  %545 = vmatpush1.bf16.msra.mxu0 0
  %546 = vmatprep.subr.bf16.mxu0 0
  %547 = vmatpush1.bf16.msra.mxu0 0
  %548 = vmatprep.subr.bf16.mxu0 0
  %549 = vmatpush1.bf16.msra.mxu0 0
  %550 = vmatprep.mubr.bf16.mxu0 0
  %551 = vmatmul.mubr.bf16.gmra.mrb[0].mxu0 %v507
  %v552 = vpop.f32.mrb[0].mxu0
  %v553 = vadd.f32 %v493, %v552
  %v554 = vpop.f32.mrb[0].mxu0
  %v555 = vpop.f32.mrb[0].mxu0
  %v556 = vadd.f32 %v493, %v555
  %v557 = vpop.f32.mrb[0].mxu0
  %558 = vmatprep.mubr.bf16.mxu0 0
  %559 = vmatmul.mubr.bf16.gmra.mrb[0].mxu0 %v510
  %v560 = vpop.f32.mrb[0].mxu0
  %v561 = vadd.f32 %v493, %v560
  %v562 = vpop.f32.mrb[0].mxu0
  %v563 = vpop.f32.mrb[0].mxu0
  %v564 = vadd.f32 %v493, %v563
  %v565 = vpop.f32.mrb[0].mxu0
  %566 = vmatprep.mubr.bf16.mxu0 0
  %567 = vmatmul.mubr.bf16.gmra.mrb[0].mxu0 %v513
  %v568 = vpop.f32.mrb[0].mxu0
  %v569 = vadd.f32 %v493, %v568
  %v570 = vpop.f32.mrb[0].mxu0
  %v571 = vpop.f32.mrb[0].mxu0
  %v572 = vadd.f32 %v493, %v571
  %v573 = vpop.f32.mrb[0].mxu0
  %574 = vmatprep.mubr.bf16.mxu0 0
  %575 = vmatmul.mubr.bf16.gmra.mrb[0].mxu0 %v516
  %v576 = vpop.f32.mrb[0].mxu0
  %v577 = vadd.f32 %v493, %v576
  %v578 = vpop.f32.mrb[0].mxu0
  %v579 = vpop.f32.mrb[0].mxu0
  %v580 = vadd.f32 %v493, %v579
  %v581 = vpop.f32.mrb[0].mxu0
  %582 = vdwg.mxu0
  %v583 = vpack.c.bf16 %v341, %v340
  %v584 = vpack.c.bf16 %v343, %v342
  %v585 = vpack.c.bf16 %v345, %v344
  %v586 = vpack.c.bf16 %v347, %v346
  %v587 = vpack.c.bf16 %v349, %v348
  %v588 = vpack.c.bf16 %v351, %v350
  %v589 = vpack.c.bf16 %v353, %v352
  %v590 = vpack.c.bf16 %v355, %v354
  %v591 = vlaneseq
  %v592 = vshrl.u32 %v591, 7
  %v593 = vsub.s32 5, %v592
  %v594 = vrot.slane %v78, %v593
  %v597 = vunpack.c.l.b16 %v33
  %v598 = vunpack.c.l.b16 %v34
  %v599 = vpack.c.b16 %v598, %v597
  %v602 = vsel %vm106, %v583, 0
  %v605 = vsel %vm106, %v584, 0
  %v608 = vsel %vm106, %v585, 0
  %v611 = vsel %vm106, %v586, 0
  %v614 = vsel %vm106, %v587, 0
  %v617 = vsel %vm106, %v588, 0
  %v620 = vsel %vm106, %v589, 0
  %v623 = vsel %vm106, %v590, 0
  %625 = vmatprep.subr.bf16.mxu0 0
  %626 = vmatpush1.bf16.msra.mxu0 %v599
  %627 = vmatprep.subr.bf16.mxu0 0
  %628 = vmatpush1.bf16.msra.mxu0 0
  %629 = vmatprep.subr.bf16.mxu0 0
  %630 = vmatpush1.bf16.msra.mxu0 0
  %631 = vmatprep.subr.bf16.mxu0 0
  %632 = vmatpush1.bf16.msra.mxu0 0
  %633 = vmatprep.subr.bf16.mxu0 0
  %634 = vmatpush1.bf16.msra.mxu0 0
  %635 = vmatprep.subr.bf16.mxu0 0
  %636 = vmatpush1.bf16.msra.mxu0 0
  %637 = vmatprep.subr.bf16.mxu0 0
  %638 = vmatpush1.bf16.msra.mxu0 0
  %639 = vmatprep.subr.bf16.mxu0 0
  %640 = vmatpush1.bf16.msra.mxu0 0
  %641 = vmatprep.subr.bf16.mxu0 0
  %642 = vmatpush1.bf16.msra.mxu0 0
  %643 = vmatprep.subr.bf16.mxu0 0
  %644 = vmatpush1.bf16.msra.mxu0 0
  %645 = vmatprep.subr.bf16.mxu0 0
  %646 = vmatpush1.bf16.msra.mxu0 0
  %647 = vmatprep.subr.bf16.mxu0 0
  %648 = vmatpush1.bf16.msra.mxu0 0
  %649 = vmatprep.subr.bf16.mxu0 0
  %650 = vmatpush1.bf16.msra.mxu0 0
  %651 = vmatprep.subr.bf16.mxu0 0
  %652 = vmatpush1.bf16.msra.mxu0 0
  %653 = vmatprep.subr.bf16.mxu0 0
  %654 = vmatpush1.bf16.msra.mxu0 0
  %655 = vmatprep.subr.bf16.mxu0 0
  %656 = vmatpush1.bf16.msra.mxu0 0
  %657 = vmatprep.mubr.bf16.mxu0 0
  %658 = vmatmul.mubr.bf16.gmra.mrb[0].mxu0 %v602
  %v659 = vpop.f32.mrb[0].mxu0
  %v660 = vadd.f32 %v594, %v659
  %v661 = vpop.f32.mrb[0].mxu0
  %v662 = vpop.f32.mrb[0].mxu0
  %v663 = vadd.f32 %v594, %v662
  %v664 = vpop.f32.mrb[0].mxu0
  %665 = vmatprep.mubr.bf16.mxu0 0
  %666 = vmatmul.mubr.bf16.gmra.mrb[0].mxu0 %v605
  %v667 = vpop.f32.mrb[0].mxu0
  %v668 = vadd.f32 %v594, %v667
  %v669 = vpop.f32.mrb[0].mxu0
  %v670 = vpop.f32.mrb[0].mxu0
  %v671 = vadd.f32 %v594, %v670
  %v672 = vpop.f32.mrb[0].mxu0
  %673 = vmatprep.mubr.bf16.mxu0 0
  %674 = vmatmul.mubr.bf16.gmra.mrb[0].mxu0 %v608
  %v675 = vpop.f32.mrb[0].mxu0
  %v676 = vadd.f32 %v594, %v675
  %v677 = vpop.f32.mrb[0].mxu0
  %v678 = vpop.f32.mrb[0].mxu0
  %v679 = vadd.f32 %v594, %v678
  %v680 = vpop.f32.mrb[0].mxu0
  %681 = vmatprep.mubr.bf16.mxu0 0
  %682 = vmatmul.mubr.bf16.gmra.mrb[0].mxu0 %v611
  %v683 = vpop.f32.mrb[0].mxu0
  %v684 = vadd.f32 %v594, %v683
  %v685 = vpop.f32.mrb[0].mxu0
  %v686 = vpop.f32.mrb[0].mxu0
  %v687 = vadd.f32 %v594, %v686
  %v688 = vpop.f32.mrb[0].mxu0
  %689 = vmatprep.mubr.bf16.mxu0 0
  %690 = vmatmul.mubr.bf16.gmra.mrb[0].mxu0 %v614
  %v691 = vpop.f32.mrb[0].mxu0
  %v692 = vadd.f32 %v594, %v691
  %v693 = vpop.f32.mrb[0].mxu0
  %v694 = vpop.f32.mrb[0].mxu0
  %v695 = vadd.f32 %v594, %v694
  %v696 = vpop.f32.mrb[0].mxu0
  %697 = vmatprep.mubr.bf16.mxu0 0
  %698 = vmatmul.mubr.bf16.gmra.mrb[0].mxu0 %v617
  %v699 = vpop.f32.mrb[0].mxu0
  %v700 = vadd.f32 %v594, %v699
  %v701 = vpop.f32.mrb[0].mxu0
  %v702 = vpop.f32.mrb[0].mxu0
  %v703 = vadd.f32 %v594, %v702
  %v704 = vpop.f32.mrb[0].mxu0
  %705 = vmatprep.mubr.bf16.mxu0 0
  %706 = vmatmul.mubr.bf16.gmra.mrb[0].mxu0 %v620
  %v707 = vpop.f32.mrb[0].mxu0
  %v708 = vadd.f32 %v594, %v707
  %v709 = vpop.f32.mrb[0].mxu0
  %v710 = vpop.f32.mrb[0].mxu0
  %v711 = vadd.f32 %v594, %v710
  %v712 = vpop.f32.mrb[0].mxu0
  %713 = vmatprep.mubr.bf16.mxu0 0
  %714 = vmatmul.mubr.bf16.gmra.mrb[0].mxu0 %v623
  %v715 = vpop.f32.mrb[0].mxu0
  %v716 = vadd.f32 %v594, %v715
  %v717 = vpop.f32.mrb[0].mxu0
  %v718 = vpop.f32.mrb[0].mxu0
  %v719 = vadd.f32 %v594, %v718
  %v720 = vpop.f32.mrb[0].mxu0
  %721 = vdwg.mxu0
  %v722 = vlaneseq
  %v723 = vshrl.u32 %v722, 7
  %v724 = vsub.s32 6, %v723
  %v725 = vrot.slane %v78, %v724
  %v728 = vunpack.c.l.b16 %v35
  %v729 = vunpack.c.l.b16 %v36
  %v730 = vpack.c.b16 %v729, %v728
  %732 = vmatprep.subr.bf16.mxu0 0
  %733 = vmatpush1.bf16.msra.mxu0 %v730
  %734 = vmatprep.subr.bf16.mxu0 0
  %735 = vmatpush1.bf16.msra.mxu0 0
  %736 = vmatprep.subr.bf16.mxu0 0
  %737 = vmatpush1.bf16.msra.mxu0 0
  %738 = vmatprep.subr.bf16.mxu0 0
  %739 = vmatpush1.bf16.msra.mxu0 0
  %740 = vmatprep.subr.bf16.mxu0 0
  %741 = vmatpush1.bf16.msra.mxu0 0
  %742 = vmatprep.subr.bf16.mxu0 0
  %743 = vmatpush1.bf16.msra.mxu0 0
  %744 = vmatprep.subr.bf16.mxu0 0
  %745 = vmatpush1.bf16.msra.mxu0 0
  %746 = vmatprep.subr.bf16.mxu0 0
  %747 = vmatpush1.bf16.msra.mxu0 0
  %748 = vmatprep.subr.bf16.mxu0 0
  %749 = vmatpush1.bf16.msra.mxu0 0
  %750 = vmatprep.subr.bf16.mxu0 0
  %751 = vmatpush1.bf16.msra.mxu0 0
  %752 = vmatprep.subr.bf16.mxu0 0
  %753 = vmatpush1.bf16.msra.mxu0 0
  %754 = vmatprep.subr.bf16.mxu0 0
  %755 = vmatpush1.bf16.msra.mxu0 0
  %756 = vmatprep.subr.bf16.mxu0 0
  %757 = vmatpush1.bf16.msra.mxu0 0
  %758 = vmatprep.subr.bf16.mxu0 0
  %759 = vmatpush1.bf16.msra.mxu0 0
  %760 = vmatprep.subr.bf16.mxu0 0
  %761 = vmatpush1.bf16.msra.mxu0 0
  %762 = vmatprep.subr.bf16.mxu0 0
  %763 = vmatpush1.bf16.msra.mxu0 0
  %764 = vmatprep.mubr.bf16.mxu0 0
  %765 = vmatmul.mubr.bf16.gmra.mrb[0].mxu0 %v602
  %v766 = vpop.f32.mrb[0].mxu0
  %v767 = vadd.f32 %v725, %v766
  %v768 = vpop.f32.mrb[0].mxu0
  %v769 = vpop.f32.mrb[0].mxu0
  %v770 = vadd.f32 %v725, %v769
  %v771 = vpop.f32.mrb[0].mxu0
  %772 = vmatprep.mubr.bf16.mxu0 0
  %773 = vmatmul.mubr.bf16.gmra.mrb[0].mxu0 %v605
  %v774 = vpop.f32.mrb[0].mxu0
  %v775 = vadd.f32 %v725, %v774
  %v776 = vpop.f32.mrb[0].mxu0
  %v777 = vpop.f32.mrb[0].mxu0
  %v778 = vadd.f32 %v725, %v777
  %v779 = vpop.f32.mrb[0].mxu0
  %780 = vmatprep.mubr.bf16.mxu0 0
  %781 = vmatmul.mubr.bf16.gmra.mrb[0].mxu0 %v608
  %v782 = vpop.f32.mrb[0].mxu0
  %v783 = vadd.f32 %v725, %v782
  %v784 = vpop.f32.mrb[0].mxu0
  %v785 = vpop.f32.mrb[0].mxu0
  %v786 = vadd.f32 %v725, %v785
  %v787 = vpop.f32.mrb[0].mxu0
  %788 = vmatprep.mubr.bf16.mxu0 0
  %789 = vmatmul.mubr.bf16.gmra.mrb[0].mxu0 %v611
  %v790 = vpop.f32.mrb[0].mxu0
  %v791 = vadd.f32 %v725, %v790
  %v792 = vpop.f32.mrb[0].mxu0
  %v793 = vpop.f32.mrb[0].mxu0
  %v794 = vadd.f32 %v725, %v793
  %v795 = vpop.f32.mrb[0].mxu0
  %796 = vmatprep.mubr.bf16.mxu0 0
  %797 = vmatmul.mubr.bf16.gmra.mrb[0].mxu0 %v614
  %v798 = vpop.f32.mrb[0].mxu0
  %v799 = vadd.f32 %v725, %v798
  %v800 = vpop.f32.mrb[0].mxu0
  %v801 = vpop.f32.mrb[0].mxu0
  %v802 = vadd.f32 %v725, %v801
  %v803 = vpop.f32.mrb[0].mxu0
  %804 = vmatprep.mubr.bf16.mxu0 0
  %805 = vmatmul.mubr.bf16.gmra.mrb[0].mxu0 %v617
  %v806 = vpop.f32.mrb[0].mxu0
  %v807 = vadd.f32 %v725, %v806
  %v808 = vpop.f32.mrb[0].mxu0
  %v809 = vpop.f32.mrb[0].mxu0
  %v810 = vadd.f32 %v725, %v809
  %v811 = vpop.f32.mrb[0].mxu0
  %812 = vmatprep.mubr.bf16.mxu0 0
  %813 = vmatmul.mubr.bf16.gmra.mrb[0].mxu0 %v620
  %v814 = vpop.f32.mrb[0].mxu0
  %v815 = vadd.f32 %v725, %v814
  %v816 = vpop.f32.mrb[0].mxu0
  %v817 = vpop.f32.mrb[0].mxu0
  %v818 = vadd.f32 %v725, %v817
  %v819 = vpop.f32.mrb[0].mxu0
  %820 = vmatprep.mubr.bf16.mxu0 0
  %821 = vmatmul.mubr.bf16.gmra.mrb[0].mxu0 %v623
  %v822 = vpop.f32.mrb[0].mxu0
  %v823 = vadd.f32 %v725, %v822
  %v824 = vpop.f32.mrb[0].mxu0
  %v825 = vpop.f32.mrb[0].mxu0
  %v826 = vadd.f32 %v725, %v825
  %v827 = vpop.f32.mrb[0].mxu0
  %828 = vdwg.mxu0
  %v829 = vmul.f32 %v553, 0.17677669
  %v830 = vmul.f32 %v556, 0.17677669
  %v831 = vmul.f32 %v561, 0.17677669
  %v832 = vmul.f32 %v564, 0.17677669
  %v833 = vmul.f32 %v569, 0.17677669
  %v834 = vmul.f32 %v572, 0.17677669
  %v835 = vmul.f32 %v577, 0.17677669
  %v836 = vmul.f32 %v580, 0.17677669
  %v837 = vpack.c.bf16 %v829, %v829
  %v838 = vpack.c.bf16 %v830, %v830
  %v839 = vpack.c.bf16 %v831, %v831
  %v840 = vpack.c.bf16 %v832, %v832
  %v841 = vpack.c.bf16 %v833, %v833
  %v842 = vpack.c.bf16 %v834, %v834
  %v843 = vpack.c.bf16 %v835, %v835
  %v844 = vpack.c.bf16 %v836, %v836
  %v845 = vpack.c.bf16 %v663, %v660
  %v846 = vpack.c.bf16 %v671, %v668
  %v847 = vpack.c.bf16 %v679, %v676
  %v848 = vpack.c.bf16 %v687, %v684
  %v849 = vpack.c.bf16 %v695, %v692
  %v850 = vpack.c.bf16 %v703, %v700
  %v851 = vpack.c.bf16 %v711, %v708
  %v852 = vpack.c.bf16 %v719, %v716
  %v853 = vpack.c.bf16 %v770, %v767
  %v854 = vpack.c.bf16 %v778, %v775
  %v855 = vpack.c.bf16 %v786, %v783
  %v856 = vpack.c.bf16 %v794, %v791
  %v857 = vpack.c.bf16 %v802, %v799
  %v858 = vpack.c.bf16 %v810, %v807
  %v859 = vpack.c.bf16 %v818, %v815
  %v860 = vpack.c.bf16 %v826, %v823
  %v862 = vsel %vm356, %v837, 0
  %v865 = vsel %vm356, %v845, 0
  %867 = vmatprep.subr.bf16.mxu0 0
  %868 = vmatpush1.bf16.xpose.msra.mxu0 %v865
  %869 = vmatprep.subr.bf16.mxu0 0
  %870 = vmatpush1.bf16.xpose.msra.mxu0 0
  %871 = vmatprep.subr.bf16.mxu0 0
  %872 = vmatpush1.bf16.xpose.msra.mxu0 0
  %873 = vmatprep.subr.bf16.mxu0 0
  %874 = vmatpush1.bf16.xpose.msra.mxu0 0
  %875 = vmatprep.subr.bf16.mxu0 0
  %876 = vmatpush1.bf16.xpose.msra.mxu0 0
  %877 = vmatprep.subr.bf16.mxu0 0
  %878 = vmatpush1.bf16.xpose.msra.mxu0 0
  %879 = vmatprep.subr.bf16.mxu0 0
  %880 = vmatpush1.bf16.xpose.msra.mxu0 0
  %881 = vmatprep.subr.bf16.mxu0 0
  %882 = vmatpush1.bf16.xpose.msra.mxu0 0
  %883 = vmatprep.subr.bf16.mxu0 0
  %884 = vmatpush1.bf16.xpose.msra.mxu0 0
  %885 = vmatprep.subr.bf16.mxu0 0
  %886 = vmatpush1.bf16.xpose.msra.mxu0 0
  %887 = vmatprep.subr.bf16.mxu0 0
  %888 = vmatpush1.bf16.xpose.msra.mxu0 0
  %889 = vmatprep.subr.bf16.mxu0 0
  %890 = vmatpush1.bf16.xpose.msra.mxu0 0
  %891 = vmatprep.subr.bf16.mxu0 0
  %892 = vmatpush1.bf16.xpose.msra.mxu0 0
  %893 = vmatprep.subr.bf16.mxu0 0
  %894 = vmatpush1.bf16.xpose.msra.mxu0 0
  %895 = vmatprep.subr.bf16.mxu0 0
  %896 = vmatpush1.bf16.xpose.msra.mxu0 0
  %897 = vmatprep.subr.bf16.mxu0 0
  %898 = vmatpush1.bf16.xpose.msra.mxu0 0
  %899 = vmatprep.mubr.bf16.mxu0 0
  %900 = vmatmul.mubr.bf16.gmra.mrb[0].mxu0 %v862
  %v901 = vpop.f32.mrb[0].mxu0
  %v902 = vadd.f32 0.0, %v901
  %v903 = vpop.f32.mrb[0].mxu0
  %v904 = vpop.f32.mrb[0].mxu0
  %v905 = vpop.f32.mrb[0].mxu0
  %906 = vdwg.mxu0
  %v908 = vsel %vm356, %v838, 0
  %v911 = vsel %vm356, %v846, 0
  %913 = vmatprep.subr.bf16.mxu0 0
  %914 = vmatpush1.bf16.xpose.msra.mxu0 %v911
  %915 = vmatprep.subr.bf16.mxu0 0
  %916 = vmatpush1.bf16.xpose.msra.mxu0 0
  %917 = vmatprep.subr.bf16.mxu0 0
  %918 = vmatpush1.bf16.xpose.msra.mxu0 0
  %919 = vmatprep.subr.bf16.mxu0 0
  %920 = vmatpush1.bf16.xpose.msra.mxu0 0
  %921 = vmatprep.subr.bf16.mxu0 0
  %922 = vmatpush1.bf16.xpose.msra.mxu0 0
  %923 = vmatprep.subr.bf16.mxu0 0
  %924 = vmatpush1.bf16.xpose.msra.mxu0 0
  %925 = vmatprep.subr.bf16.mxu0 0
  %926 = vmatpush1.bf16.xpose.msra.mxu0 0
  %927 = vmatprep.subr.bf16.mxu0 0
  %928 = vmatpush1.bf16.xpose.msra.mxu0 0
  %929 = vmatprep.subr.bf16.mxu0 0
  %930 = vmatpush1.bf16.xpose.msra.mxu0 0
  %931 = vmatprep.subr.bf16.mxu0 0
  %932 = vmatpush1.bf16.xpose.msra.mxu0 0
  %933 = vmatprep.subr.bf16.mxu0 0
  %934 = vmatpush1.bf16.xpose.msra.mxu0 0
  %935 = vmatprep.subr.bf16.mxu0 0
  %936 = vmatpush1.bf16.xpose.msra.mxu0 0
  %937 = vmatprep.subr.bf16.mxu0 0
  %938 = vmatpush1.bf16.xpose.msra.mxu0 0
  %939 = vmatprep.subr.bf16.mxu0 0
  %940 = vmatpush1.bf16.xpose.msra.mxu0 0
  %941 = vmatprep.subr.bf16.mxu0 0
  %942 = vmatpush1.bf16.xpose.msra.mxu0 0
  %943 = vmatprep.subr.bf16.mxu0 0
  %944 = vmatpush1.bf16.xpose.msra.mxu0 0
  %945 = vmatprep.mubr.bf16.mxu0 0
  %946 = vmatmul.mubr.bf16.gmra.mrb[0].mxu0 %v908
  %v947 = vpop.f32.mrb[0].mxu0
  %v948 = vadd.f32 0.0, %v947
  %v949 = vpop.f32.mrb[0].mxu0
  %v950 = vpop.f32.mrb[0].mxu0
  %v951 = vpop.f32.mrb[0].mxu0
  %952 = vdwg.mxu0
  %v954 = vsel %vm356, %v839, 0
  %v957 = vsel %vm356, %v847, 0
  %959 = vmatprep.subr.bf16.mxu0 0
  %960 = vmatpush1.bf16.xpose.msra.mxu0 %v957
  %961 = vmatprep.subr.bf16.mxu0 0
  %962 = vmatpush1.bf16.xpose.msra.mxu0 0
  %963 = vmatprep.subr.bf16.mxu0 0
  %964 = vmatpush1.bf16.xpose.msra.mxu0 0
  %965 = vmatprep.subr.bf16.mxu0 0
  %966 = vmatpush1.bf16.xpose.msra.mxu0 0
  %967 = vmatprep.subr.bf16.mxu0 0
  %968 = vmatpush1.bf16.xpose.msra.mxu0 0
  %969 = vmatprep.subr.bf16.mxu0 0
  %970 = vmatpush1.bf16.xpose.msra.mxu0 0
  %971 = vmatprep.subr.bf16.mxu0 0
  %972 = vmatpush1.bf16.xpose.msra.mxu0 0
  %973 = vmatprep.subr.bf16.mxu0 0
  %974 = vmatpush1.bf16.xpose.msra.mxu0 0
  %975 = vmatprep.subr.bf16.mxu0 0
  %976 = vmatpush1.bf16.xpose.msra.mxu0 0
  %977 = vmatprep.subr.bf16.mxu0 0
  %978 = vmatpush1.bf16.xpose.msra.mxu0 0
  %979 = vmatprep.subr.bf16.mxu0 0
  %980 = vmatpush1.bf16.xpose.msra.mxu0 0
  %981 = vmatprep.subr.bf16.mxu0 0
  %982 = vmatpush1.bf16.xpose.msra.mxu0 0
  %983 = vmatprep.subr.bf16.mxu0 0
  %984 = vmatpush1.bf16.xpose.msra.mxu0 0
  %985 = vmatprep.subr.bf16.mxu0 0
  %986 = vmatpush1.bf16.xpose.msra.mxu0 0
  %987 = vmatprep.subr.bf16.mxu0 0
  %988 = vmatpush1.bf16.xpose.msra.mxu0 0
  %989 = vmatprep.subr.bf16.mxu0 0
  %990 = vmatpush1.bf16.xpose.msra.mxu0 0
  %991 = vmatprep.mubr.bf16.mxu0 0
  %992 = vmatmul.mubr.bf16.gmra.mrb[0].mxu0 %v954
  %v993 = vpop.f32.mrb[0].mxu0
  %v994 = vadd.f32 0.0, %v993
  %v995 = vpop.f32.mrb[0].mxu0
  %v996 = vpop.f32.mrb[0].mxu0
  %v997 = vpop.f32.mrb[0].mxu0
  %998 = vdwg.mxu0
  %v1000 = vsel %vm356, %v840, 0
  %v1003 = vsel %vm356, %v848, 0
  %1005 = vmatprep.subr.bf16.mxu0 0
  %1006 = vmatpush1.bf16.xpose.msra.mxu0 %v1003
  %1007 = vmatprep.subr.bf16.mxu0 0
  %1008 = vmatpush1.bf16.xpose.msra.mxu0 0
  %1009 = vmatprep.subr.bf16.mxu0 0
  %1010 = vmatpush1.bf16.xpose.msra.mxu0 0
  %1011 = vmatprep.subr.bf16.mxu0 0
  %1012 = vmatpush1.bf16.xpose.msra.mxu0 0
  %1013 = vmatprep.subr.bf16.mxu0 0
  %1014 = vmatpush1.bf16.xpose.msra.mxu0 0
  %1015 = vmatprep.subr.bf16.mxu0 0
  %1016 = vmatpush1.bf16.xpose.msra.mxu0 0
  %1017 = vmatprep.subr.bf16.mxu0 0
  %1018 = vmatpush1.bf16.xpose.msra.mxu0 0
  %1019 = vmatprep.subr.bf16.mxu0 0
  %1020 = vmatpush1.bf16.xpose.msra.mxu0 0
  %1021 = vmatprep.subr.bf16.mxu0 0
  %1022 = vmatpush1.bf16.xpose.msra.mxu0 0
  %1023 = vmatprep.subr.bf16.mxu0 0
  %1024 = vmatpush1.bf16.xpose.msra.mxu0 0
  %1025 = vmatprep.subr.bf16.mxu0 0
  %1026 = vmatpush1.bf16.xpose.msra.mxu0 0
  %1027 = vmatprep.subr.bf16.mxu0 0
  %1028 = vmatpush1.bf16.xpose.msra.mxu0 0
  %1029 = vmatprep.subr.bf16.mxu0 0
  %1030 = vmatpush1.bf16.xpose.msra.mxu0 0
  %1031 = vmatprep.subr.bf16.mxu0 0
  %1032 = vmatpush1.bf16.xpose.msra.mxu0 0
  %1033 = vmatprep.subr.bf16.mxu0 0
  %1034 = vmatpush1.bf16.xpose.msra.mxu0 0
  %1035 = vmatprep.subr.bf16.mxu0 0
  %1036 = vmatpush1.bf16.xpose.msra.mxu0 0
  %1037 = vmatprep.mubr.bf16.mxu0 0
  %1038 = vmatmul.mubr.bf16.gmra.mrb[0].mxu0 %v1000
  %v1039 = vpop.f32.mrb[0].mxu0
  %v1040 = vadd.f32 0.0, %v1039
  %v1041 = vpop.f32.mrb[0].mxu0
  %v1042 = vpop.f32.mrb[0].mxu0
  %v1043 = vpop.f32.mrb[0].mxu0
  %1044 = vdwg.mxu0
  %v1046 = vsel %vm356, %v841, 0
  %v1049 = vsel %vm356, %v849, 0
  %1051 = vmatprep.subr.bf16.mxu0 0
  %1052 = vmatpush1.bf16.xpose.msra.mxu0 %v1049
  %1053 = vmatprep.subr.bf16.mxu0 0
  %1054 = vmatpush1.bf16.xpose.msra.mxu0 0
  %1055 = vmatprep.subr.bf16.mxu0 0
  %1056 = vmatpush1.bf16.xpose.msra.mxu0 0
  %1057 = vmatprep.subr.bf16.mxu0 0
  %1058 = vmatpush1.bf16.xpose.msra.mxu0 0
  %1059 = vmatprep.subr.bf16.mxu0 0
  %1060 = vmatpush1.bf16.xpose.msra.mxu0 0
  %1061 = vmatprep.subr.bf16.mxu0 0
  %1062 = vmatpush1.bf16.xpose.msra.mxu0 0
  %1063 = vmatprep.subr.bf16.mxu0 0
  %1064 = vmatpush1.bf16.xpose.msra.mxu0 0
  %1065 = vmatprep.subr.bf16.mxu0 0
  %1066 = vmatpush1.bf16.xpose.msra.mxu0 0
  %1067 = vmatprep.subr.bf16.mxu0 0
  %1068 = vmatpush1.bf16.xpose.msra.mxu0 0
  %1069 = vmatprep.subr.bf16.mxu0 0
  %1070 = vmatpush1.bf16.xpose.msra.mxu0 0
  %1071 = vmatprep.subr.bf16.mxu0 0
  %1072 = vmatpush1.bf16.xpose.msra.mxu0 0
  %1073 = vmatprep.subr.bf16.mxu0 0
  %1074 = vmatpush1.bf16.xpose.msra.mxu0 0
  %1075 = vmatprep.subr.bf16.mxu0 0
  %1076 = vmatpush1.bf16.xpose.msra.mxu0 0
  %1077 = vmatprep.subr.bf16.mxu0 0
  %1078 = vmatpush1.bf16.xpose.msra.mxu0 0
  %1079 = vmatprep.subr.bf16.mxu0 0
  %1080 = vmatpush1.bf16.xpose.msra.mxu0 0
  %1081 = vmatprep.subr.bf16.mxu0 0
  %1082 = vmatpush1.bf16.xpose.msra.mxu0 0
  %1083 = vmatprep.mubr.bf16.mxu0 0
  %1084 = vmatmul.mubr.bf16.gmra.mrb[0].mxu0 %v1046
  %v1085 = vpop.f32.mrb[0].mxu0
  %v1086 = vadd.f32 0.0, %v1085
  %v1087 = vpop.f32.mrb[0].mxu0
  %v1088 = vpop.f32.mrb[0].mxu0
  %v1089 = vpop.f32.mrb[0].mxu0
  %1090 = vdwg.mxu0
  %v1092 = vsel %vm356, %v842, 0
  %v1095 = vsel %vm356, %v850, 0
  %1097 = vmatprep.subr.bf16.mxu0 0
  %1098 = vmatpush1.bf16.xpose.msra.mxu0 %v1095
  %1099 = vmatprep.subr.bf16.mxu0 0
  %1100 = vmatpush1.bf16.xpose.msra.mxu0 0
  %1101 = vmatprep.subr.bf16.mxu0 0
  %1102 = vmatpush1.bf16.xpose.msra.mxu0 0
  %1103 = vmatprep.subr.bf16.mxu0 0
  %1104 = vmatpush1.bf16.xpose.msra.mxu0 0
  %1105 = vmatprep.subr.bf16.mxu0 0
  %1106 = vmatpush1.bf16.xpose.msra.mxu0 0
  %1107 = vmatprep.subr.bf16.mxu0 0
  %1108 = vmatpush1.bf16.xpose.msra.mxu0 0
  %1109 = vmatprep.subr.bf16.mxu0 0
  %1110 = vmatpush1.bf16.xpose.msra.mxu0 0
  %1111 = vmatprep.subr.bf16.mxu0 0
  %1112 = vmatpush1.bf16.xpose.msra.mxu0 0
  %1113 = vmatprep.subr.bf16.mxu0 0
  %1114 = vmatpush1.bf16.xpose.msra.mxu0 0
  %1115 = vmatprep.subr.bf16.mxu0 0
  %1116 = vmatpush1.bf16.xpose.msra.mxu0 0
  %1117 = vmatprep.subr.bf16.mxu0 0
  %1118 = vmatpush1.bf16.xpose.msra.mxu0 0
  %1119 = vmatprep.subr.bf16.mxu0 0
  %1120 = vmatpush1.bf16.xpose.msra.mxu0 0
  %1121 = vmatprep.subr.bf16.mxu0 0
  %1122 = vmatpush1.bf16.xpose.msra.mxu0 0
  %1123 = vmatprep.subr.bf16.mxu0 0
  %1124 = vmatpush1.bf16.xpose.msra.mxu0 0
  %1125 = vmatprep.subr.bf16.mxu0 0
  %1126 = vmatpush1.bf16.xpose.msra.mxu0 0
  %1127 = vmatprep.subr.bf16.mxu0 0
  %1128 = vmatpush1.bf16.xpose.msra.mxu0 0
  %1129 = vmatprep.mubr.bf16.mxu0 0
  %1130 = vmatmul.mubr.bf16.gmra.mrb[0].mxu0 %v1092
  %v1131 = vpop.f32.mrb[0].mxu0
  %v1132 = vadd.f32 0.0, %v1131
  %v1133 = vpop.f32.mrb[0].mxu0
  %v1134 = vpop.f32.mrb[0].mxu0
  %v1135 = vpop.f32.mrb[0].mxu0
  %1136 = vdwg.mxu0
  %v1138 = vsel %vm356, %v843, 0
  %v1141 = vsel %vm356, %v851, 0
  %1143 = vmatprep.subr.bf16.mxu0 0
  %1144 = vmatpush1.bf16.xpose.msra.mxu0 %v1141
  %1145 = vmatprep.subr.bf16.mxu0 0
  %1146 = vmatpush1.bf16.xpose.msra.mxu0 0
  %1147 = vmatprep.subr.bf16.mxu0 0
  %1148 = vmatpush1.bf16.xpose.msra.mxu0 0
  %1149 = vmatprep.subr.bf16.mxu0 0
  %1150 = vmatpush1.bf16.xpose.msra.mxu0 0
  %1151 = vmatprep.subr.bf16.mxu0 0
  %1152 = vmatpush1.bf16.xpose.msra.mxu0 0
  %1153 = vmatprep.subr.bf16.mxu0 0
  %1154 = vmatpush1.bf16.xpose.msra.mxu0 0
  %1155 = vmatprep.subr.bf16.mxu0 0
  %1156 = vmatpush1.bf16.xpose.msra.mxu0 0
  %1157 = vmatprep.subr.bf16.mxu0 0
  %1158 = vmatpush1.bf16.xpose.msra.mxu0 0
  %1159 = vmatprep.subr.bf16.mxu0 0
  %1160 = vmatpush1.bf16.xpose.msra.mxu0 0
  %1161 = vmatprep.subr.bf16.mxu0 0
  %1162 = vmatpush1.bf16.xpose.msra.mxu0 0
  %1163 = vmatprep.subr.bf16.mxu0 0
  %1164 = vmatpush1.bf16.xpose.msra.mxu0 0
  %1165 = vmatprep.subr.bf16.mxu0 0
  %1166 = vmatpush1.bf16.xpose.msra.mxu0 0
  %1167 = vmatprep.subr.bf16.mxu0 0
  %1168 = vmatpush1.bf16.xpose.msra.mxu0 0
  %1169 = vmatprep.subr.bf16.mxu0 0
  %1170 = vmatpush1.bf16.xpose.msra.mxu0 0
  %1171 = vmatprep.subr.bf16.mxu0 0
  %1172 = vmatpush1.bf16.xpose.msra.mxu0 0
  %1173 = vmatprep.subr.bf16.mxu0 0
  %1174 = vmatpush1.bf16.xpose.msra.mxu0 0
  %1175 = vmatprep.mubr.bf16.mxu0 0
  %1176 = vmatmul.mubr.bf16.gmra.mrb[0].mxu0 %v1138
  %v1177 = vpop.f32.mrb[0].mxu0
  %v1178 = vadd.f32 0.0, %v1177
  %v1179 = vpop.f32.mrb[0].mxu0
  %v1180 = vpop.f32.mrb[0].mxu0
  %v1181 = vpop.f32.mrb[0].mxu0
  %1182 = vdwg.mxu0
  %v1184 = vsel %vm356, %v844, 0
  %v1187 = vsel %vm356, %v852, 0
  %1189 = vmatprep.subr.bf16.mxu0 0
  %1190 = vmatpush1.bf16.xpose.msra.mxu0 %v1187
  %1191 = vmatprep.subr.bf16.mxu0 0
  %1192 = vmatpush1.bf16.xpose.msra.mxu0 0
  %1193 = vmatprep.subr.bf16.mxu0 0
  %1194 = vmatpush1.bf16.xpose.msra.mxu0 0
  %1195 = vmatprep.subr.bf16.mxu0 0
  %1196 = vmatpush1.bf16.xpose.msra.mxu0 0
  %1197 = vmatprep.subr.bf16.mxu0 0
  %1198 = vmatpush1.bf16.xpose.msra.mxu0 0
  %1199 = vmatprep.subr.bf16.mxu0 0
  %1200 = vmatpush1.bf16.xpose.msra.mxu0 0
  %1201 = vmatprep.subr.bf16.mxu0 0
  %1202 = vmatpush1.bf16.xpose.msra.mxu0 0
  %1203 = vmatprep.subr.bf16.mxu0 0
  %1204 = vmatpush1.bf16.xpose.msra.mxu0 0
  %1205 = vmatprep.subr.bf16.mxu0 0
  %1206 = vmatpush1.bf16.xpose.msra.mxu0 0
  %1207 = vmatprep.subr.bf16.mxu0 0
  %1208 = vmatpush1.bf16.xpose.msra.mxu0 0
  %1209 = vmatprep.subr.bf16.mxu0 0
  %1210 = vmatpush1.bf16.xpose.msra.mxu0 0
  %1211 = vmatprep.subr.bf16.mxu0 0
  %1212 = vmatpush1.bf16.xpose.msra.mxu0 0
  %1213 = vmatprep.subr.bf16.mxu0 0
  %1214 = vmatpush1.bf16.xpose.msra.mxu0 0
  %1215 = vmatprep.subr.bf16.mxu0 0
  %1216 = vmatpush1.bf16.xpose.msra.mxu0 0
  %1217 = vmatprep.subr.bf16.mxu0 0
  %1218 = vmatpush1.bf16.xpose.msra.mxu0 0
  %1219 = vmatprep.subr.bf16.mxu0 0
  %1220 = vmatpush1.bf16.xpose.msra.mxu0 0
  %1221 = vmatprep.mubr.bf16.mxu0 0
  %1222 = vmatmul.mubr.bf16.gmra.mrb[0].mxu0 %v1184
  %v1223 = vpop.f32.mrb[0].mxu0
  %v1224 = vadd.f32 0.0, %v1223
  %v1225 = vpop.f32.mrb[0].mxu0
  %v1226 = vpop.f32.mrb[0].mxu0
  %v1227 = vpop.f32.mrb[0].mxu0
  %1228 = vdwg.mxu0
  %v1229 = vsel %vm106, %v902, -inf
  %1230 = vmax.xlane.f32.xlu0 %v1229
  %v1231 = vpop.xlane.xlu0 %1230
  %v1232 = vsel %vm106, %v948, -inf
  %1233 = vmax.xlane.f32.xlu0 %v1232
  %v1234 = vpop.xlane.xlu0 %1233
  %v1235 = vsel %vm106, %v994, -inf
  %1236 = vmax.xlane.f32.xlu0 %v1235
  %v1237 = vpop.xlane.xlu0 %1236
  %v1238 = vsel %vm106, %v1040, -inf
  %1239 = vmax.xlane.f32.xlu0 %v1238
  %v1240 = vpop.xlane.xlu0 %1239
  %v1241 = vsel %vm106, %v1086, -inf
  %1242 = vmax.xlane.f32.xlu0 %v1241
  %v1243 = vpop.xlane.xlu0 %1242
  %v1244 = vsel %vm106, %v1132, -inf
  %1245 = vmax.xlane.f32.xlu0 %v1244
  %v1246 = vpop.xlane.xlu0 %1245
  %v1247 = vsel %vm106, %v1178, -inf
  %1248 = vmax.xlane.f32.xlu0 %v1247
  %v1249 = vpop.xlane.xlu0 %1248
  %v1250 = vsel %vm106, %v1224, -inf
  %1251 = vmax.xlane.f32.xlu0 %v1250
  %v1252 = vpop.xlane.xlu0 %1251
  %v1253 = vsub.f32 %v902, %v1231
  %v1254 = vsub.f32 %v948, %v1234
  %v1255 = vsub.f32 %v994, %v1237
  %v1256 = vsub.f32 %v1040, %v1240
  %v1257 = vsub.f32 %v1086, %v1243
  %v1258 = vsub.f32 %v1132, %v1246
  %v1259 = vsub.f32 %v1178, %v1249
  %v1260 = vsub.f32 %v1224, %v1252
  %v1261 = vmul.f32 %v1253, 1.442695
  %v1262 = vpow.pop %v1261
  %v1263 = vmul.f32 %v1254, 1.442695
  %v1264 = vpow.pop %v1263
  %v1265 = vmul.f32 %v1255, 1.442695
  %v1266 = vpow.pop %v1265
  %v1267 = vmul.f32 %v1256, 1.442695
  %v1268 = vpow.pop %v1267
  %v1269 = vmul.f32 %v1257, 1.442695
  %v1270 = vpow.pop %v1269
  %v1271 = vmul.f32 %v1258, 1.442695
  %v1272 = vpow.pop %v1271
  %v1273 = vmul.f32 %v1259, 1.442695
  %v1274 = vpow.pop %v1273
  %v1275 = vmul.f32 %v1260, 1.442695
  %v1276 = vpow.pop %v1275
  %v1277 = vsel %vm106, %v1262, 0.0
  %1278 = vadd.xlane.f32.xlu0 %v1277
  %v1279 = vpop.xlane.xlu0 %1278
  %v1280 = vsel %vm106, %v1264, 0.0
  %1281 = vadd.xlane.f32.xlu0 %v1280
  %v1282 = vpop.xlane.xlu0 %1281
  %v1283 = vsel %vm106, %v1266, 0.0
  %1284 = vadd.xlane.f32.xlu0 %v1283
  %v1285 = vpop.xlane.xlu0 %1284
  %v1286 = vsel %vm106, %v1268, 0.0
  %1287 = vadd.xlane.f32.xlu0 %v1286
  %v1288 = vpop.xlane.xlu0 %1287
  %v1289 = vsel %vm106, %v1270, 0.0
  %1290 = vadd.xlane.f32.xlu0 %v1289
  %v1291 = vpop.xlane.xlu0 %1290
  %v1292 = vsel %vm106, %v1272, 0.0
  %1293 = vadd.xlane.f32.xlu0 %v1292
  %v1294 = vpop.xlane.xlu0 %1293
  %v1295 = vsel %vm106, %v1274, 0.0
  %1296 = vadd.xlane.f32.xlu0 %v1295
  %v1297 = vpop.xlane.xlu0 %1296
  %v1298 = vsel %vm106, %v1276, 0.0
  %1299 = vadd.xlane.f32.xlu0 %v1298
  %v1300 = vpop.xlane.xlu0 %1299
  %v1301 = vrcp.pop %v1279
  %v1302 = vrcp.pop %v1282
  %v1303 = vrcp.pop %v1285
  %v1304 = vrcp.pop %v1288
  %v1305 = vrcp.pop %v1291
  %v1306 = vrcp.pop %v1294
  %v1307 = vrcp.pop %v1297
  %v1308 = vrcp.pop %v1300
  %v1309 = vmul.f32 %v1262, %v1301
  %v1310 = vmul.f32 %v1264, %v1302
  %v1311 = vmul.f32 %v1266, %v1303
  %v1312 = vmul.f32 %v1268, %v1304
  %v1313 = vmul.f32 %v1270, %v1305
  %v1314 = vmul.f32 %v1272, %v1306
  %v1315 = vmul.f32 %v1274, %v1307
  %v1316 = vmul.f32 %v1276, %v1308
  %v1317 = vpack.c.bf16 %v1309, %v1309
  %v1318 = vpack.c.bf16 %v1310, %v1310
  %v1319 = vpack.c.bf16 %v1311, %v1311
  %v1320 = vpack.c.bf16 %v1312, %v1312
  %v1321 = vpack.c.bf16 %v1313, %v1313
  %v1322 = vpack.c.bf16 %v1314, %v1314
  %v1323 = vpack.c.bf16 %v1315, %v1315
  %v1324 = vpack.c.bf16 %v1316, %v1316
  %v1326 = vsel %vm106, %v1317, 0
  %1328 = vmatprep.subr.bf16.mxu0 0
  %1329 = vmatpush1.bf16.msra.mxu0 %v853
  %1330 = vmatprep.subr.bf16.mxu0 0
  %1331 = vmatpush1.bf16.msra.mxu0 0
  %1332 = vmatprep.subr.bf16.mxu0 0
  %1333 = vmatpush1.bf16.msra.mxu0 0
  %1334 = vmatprep.subr.bf16.mxu0 0
  %1335 = vmatpush1.bf16.msra.mxu0 0
  %1336 = vmatprep.subr.bf16.mxu0 0
  %1337 = vmatpush1.bf16.msra.mxu0 0
  %1338 = vmatprep.subr.bf16.mxu0 0
  %1339 = vmatpush1.bf16.msra.mxu0 0
  %1340 = vmatprep.subr.bf16.mxu0 0
  %1341 = vmatpush1.bf16.msra.mxu0 0
  %1342 = vmatprep.subr.bf16.mxu0 0
  %1343 = vmatpush1.bf16.msra.mxu0 0
  %1344 = vmatprep.subr.bf16.mxu0 0
  %1345 = vmatpush1.bf16.msra.mxu0 0
  %1346 = vmatprep.subr.bf16.mxu0 0
  %1347 = vmatpush1.bf16.msra.mxu0 0
  %1348 = vmatprep.subr.bf16.mxu0 0
  %1349 = vmatpush1.bf16.msra.mxu0 0
  %1350 = vmatprep.subr.bf16.mxu0 0
  %1351 = vmatpush1.bf16.msra.mxu0 0
  %1352 = vmatprep.subr.bf16.mxu0 0
  %1353 = vmatpush1.bf16.msra.mxu0 0
  %1354 = vmatprep.subr.bf16.mxu0 0
  %1355 = vmatpush1.bf16.msra.mxu0 0
  %1356 = vmatprep.subr.bf16.mxu0 0
  %1357 = vmatpush1.bf16.msra.mxu0 0
  %1358 = vmatprep.subr.bf16.mxu0 0
  %1359 = vmatpush1.bf16.msra.mxu0 0
  %1360 = vmatprep.mubr.bf16.mxu0 0
  %1361 = vmatmul.mubr.bf16.gmra.mrb[0].mxu0 %v1326
  %v1362 = vpop.f32.mrb[0].mxu0
  %v1363 = vadd.f32 0.0, %v1362
  %v1364 = vpop.f32.mrb[0].mxu0
  %v1365 = vpop.f32.mrb[0].mxu0
  %v1366 = vpop.f32.mrb[0].mxu0
  %1367 = vdwg.mxu0
  %v1369 = vsel %vm106, %v1318, 0
  %1371 = vmatprep.subr.bf16.mxu0 0
  %1372 = vmatpush1.bf16.msra.mxu0 %v854
  %1373 = vmatprep.subr.bf16.mxu0 0
  %1374 = vmatpush1.bf16.msra.mxu0 0
  %1375 = vmatprep.subr.bf16.mxu0 0
  %1376 = vmatpush1.bf16.msra.mxu0 0
  %1377 = vmatprep.subr.bf16.mxu0 0
  %1378 = vmatpush1.bf16.msra.mxu0 0
  %1379 = vmatprep.subr.bf16.mxu0 0
  %1380 = vmatpush1.bf16.msra.mxu0 0
  %1381 = vmatprep.subr.bf16.mxu0 0
  %1382 = vmatpush1.bf16.msra.mxu0 0
  %1383 = vmatprep.subr.bf16.mxu0 0
  %1384 = vmatpush1.bf16.msra.mxu0 0
  %1385 = vmatprep.subr.bf16.mxu0 0
  %1386 = vmatpush1.bf16.msra.mxu0 0
  %1387 = vmatprep.subr.bf16.mxu0 0
  %1388 = vmatpush1.bf16.msra.mxu0 0
  %1389 = vmatprep.subr.bf16.mxu0 0
  %1390 = vmatpush1.bf16.msra.mxu0 0
  %1391 = vmatprep.subr.bf16.mxu0 0
  %1392 = vmatpush1.bf16.msra.mxu0 0
  %1393 = vmatprep.subr.bf16.mxu0 0
  %1394 = vmatpush1.bf16.msra.mxu0 0
  %1395 = vmatprep.subr.bf16.mxu0 0
  %1396 = vmatpush1.bf16.msra.mxu0 0
  %1397 = vmatprep.subr.bf16.mxu0 0
  %1398 = vmatpush1.bf16.msra.mxu0 0
  %1399 = vmatprep.subr.bf16.mxu0 0
  %1400 = vmatpush1.bf16.msra.mxu0 0
  %1401 = vmatprep.subr.bf16.mxu0 0
  %1402 = vmatpush1.bf16.msra.mxu0 0
  %1403 = vmatprep.mubr.bf16.mxu0 0
  %1404 = vmatmul.mubr.bf16.gmra.mrb[0].mxu0 %v1369
  %v1405 = vpop.f32.mrb[0].mxu0
  %v1406 = vadd.f32 0.0, %v1405
  %v1407 = vpop.f32.mrb[0].mxu0
  %v1408 = vpop.f32.mrb[0].mxu0
  %v1409 = vpop.f32.mrb[0].mxu0
  %1410 = vdwg.mxu0
  %v1412 = vsel %vm106, %v1319, 0
  %1414 = vmatprep.subr.bf16.mxu0 0
  %1415 = vmatpush1.bf16.msra.mxu0 %v855
  %1416 = vmatprep.subr.bf16.mxu0 0
  %1417 = vmatpush1.bf16.msra.mxu0 0
  %1418 = vmatprep.subr.bf16.mxu0 0
  %1419 = vmatpush1.bf16.msra.mxu0 0
  %1420 = vmatprep.subr.bf16.mxu0 0
  %1421 = vmatpush1.bf16.msra.mxu0 0
  %1422 = vmatprep.subr.bf16.mxu0 0
  %1423 = vmatpush1.bf16.msra.mxu0 0
  %1424 = vmatprep.subr.bf16.mxu0 0
  %1425 = vmatpush1.bf16.msra.mxu0 0
  %1426 = vmatprep.subr.bf16.mxu0 0
  %1427 = vmatpush1.bf16.msra.mxu0 0
  %1428 = vmatprep.subr.bf16.mxu0 0
  %1429 = vmatpush1.bf16.msra.mxu0 0
  %1430 = vmatprep.subr.bf16.mxu0 0
  %1431 = vmatpush1.bf16.msra.mxu0 0
  %1432 = vmatprep.subr.bf16.mxu0 0
  %1433 = vmatpush1.bf16.msra.mxu0 0
  %1434 = vmatprep.subr.bf16.mxu0 0
  %1435 = vmatpush1.bf16.msra.mxu0 0
  %1436 = vmatprep.subr.bf16.mxu0 0
  %1437 = vmatpush1.bf16.msra.mxu0 0
  %1438 = vmatprep.subr.bf16.mxu0 0
  %1439 = vmatpush1.bf16.msra.mxu0 0
  %1440 = vmatprep.subr.bf16.mxu0 0
  %1441 = vmatpush1.bf16.msra.mxu0 0
  %1442 = vmatprep.subr.bf16.mxu0 0
  %1443 = vmatpush1.bf16.msra.mxu0 0
  %1444 = vmatprep.subr.bf16.mxu0 0
  %1445 = vmatpush1.bf16.msra.mxu0 0
  %1446 = vmatprep.mubr.bf16.mxu0 0
  %1447 = vmatmul.mubr.bf16.gmra.mrb[0].mxu0 %v1412
  %v1448 = vpop.f32.mrb[0].mxu0
  %v1449 = vadd.f32 0.0, %v1448
  %v1450 = vpop.f32.mrb[0].mxu0
  %v1451 = vpop.f32.mrb[0].mxu0
  %v1452 = vpop.f32.mrb[0].mxu0
  %1453 = vdwg.mxu0
  %v1455 = vsel %vm106, %v1320, 0
  %1457 = vmatprep.subr.bf16.mxu0 0
  %1458 = vmatpush1.bf16.msra.mxu0 %v856
  %1459 = vmatprep.subr.bf16.mxu0 0
  %1460 = vmatpush1.bf16.msra.mxu0 0
  %1461 = vmatprep.subr.bf16.mxu0 0
  %1462 = vmatpush1.bf16.msra.mxu0 0
  %1463 = vmatprep.subr.bf16.mxu0 0
  %1464 = vmatpush1.bf16.msra.mxu0 0
  %1465 = vmatprep.subr.bf16.mxu0 0
  %1466 = vmatpush1.bf16.msra.mxu0 0
  %1467 = vmatprep.subr.bf16.mxu0 0
  %1468 = vmatpush1.bf16.msra.mxu0 0
  %1469 = vmatprep.subr.bf16.mxu0 0
  %1470 = vmatpush1.bf16.msra.mxu0 0
  %1471 = vmatprep.subr.bf16.mxu0 0
  %1472 = vmatpush1.bf16.msra.mxu0 0
  %1473 = vmatprep.subr.bf16.mxu0 0
  %1474 = vmatpush1.bf16.msra.mxu0 0
  %1475 = vmatprep.subr.bf16.mxu0 0
  %1476 = vmatpush1.bf16.msra.mxu0 0
  %1477 = vmatprep.subr.bf16.mxu0 0
  %1478 = vmatpush1.bf16.msra.mxu0 0
  %1479 = vmatprep.subr.bf16.mxu0 0
  %1480 = vmatpush1.bf16.msra.mxu0 0
  %1481 = vmatprep.subr.bf16.mxu0 0
  %1482 = vmatpush1.bf16.msra.mxu0 0
  %1483 = vmatprep.subr.bf16.mxu0 0
  %1484 = vmatpush1.bf16.msra.mxu0 0
  %1485 = vmatprep.subr.bf16.mxu0 0
  %1486 = vmatpush1.bf16.msra.mxu0 0
  %1487 = vmatprep.subr.bf16.mxu0 0
  %1488 = vmatpush1.bf16.msra.mxu0 0
  %1489 = vmatprep.mubr.bf16.mxu0 0
  %1490 = vmatmul.mubr.bf16.gmra.mrb[0].mxu0 %v1455
  %v1491 = vpop.f32.mrb[0].mxu0
  %v1492 = vadd.f32 0.0, %v1491
  %v1493 = vpop.f32.mrb[0].mxu0
  %v1494 = vpop.f32.mrb[0].mxu0
  %v1495 = vpop.f32.mrb[0].mxu0
  %1496 = vdwg.mxu0
  %v1498 = vsel %vm106, %v1321, 0
  %1500 = vmatprep.subr.bf16.mxu0 0
  %1501 = vmatpush1.bf16.msra.mxu0 %v857
  %1502 = vmatprep.subr.bf16.mxu0 0
  %1503 = vmatpush1.bf16.msra.mxu0 0
  %1504 = vmatprep.subr.bf16.mxu0 0
  %1505 = vmatpush1.bf16.msra.mxu0 0
  %1506 = vmatprep.subr.bf16.mxu0 0
  %1507 = vmatpush1.bf16.msra.mxu0 0
  %1508 = vmatprep.subr.bf16.mxu0 0
  %1509 = vmatpush1.bf16.msra.mxu0 0
  %1510 = vmatprep.subr.bf16.mxu0 0
  %1511 = vmatpush1.bf16.msra.mxu0 0
  %1512 = vmatprep.subr.bf16.mxu0 0
  %1513 = vmatpush1.bf16.msra.mxu0 0
  %1514 = vmatprep.subr.bf16.mxu0 0
  %1515 = vmatpush1.bf16.msra.mxu0 0
  %1516 = vmatprep.subr.bf16.mxu0 0
  %1517 = vmatpush1.bf16.msra.mxu0 0
  %1518 = vmatprep.subr.bf16.mxu0 0
  %1519 = vmatpush1.bf16.msra.mxu0 0
  %1520 = vmatprep.subr.bf16.mxu0 0
  %1521 = vmatpush1.bf16.msra.mxu0 0
  %1522 = vmatprep.subr.bf16.mxu0 0
  %1523 = vmatpush1.bf16.msra.mxu0 0
  %1524 = vmatprep.subr.bf16.mxu0 0
  %1525 = vmatpush1.bf16.msra.mxu0 0
  %1526 = vmatprep.subr.bf16.mxu0 0
  %1527 = vmatpush1.bf16.msra.mxu0 0
  %1528 = vmatprep.subr.bf16.mxu0 0
  %1529 = vmatpush1.bf16.msra.mxu0 0
  %1530 = vmatprep.subr.bf16.mxu0 0
  %1531 = vmatpush1.bf16.msra.mxu0 0
  %1532 = vmatprep.mubr.bf16.mxu0 0
  %1533 = vmatmul.mubr.bf16.gmra.mrb[0].mxu0 %v1498
  %v1534 = vpop.f32.mrb[0].mxu0
  %v1535 = vadd.f32 0.0, %v1534
  %v1536 = vpop.f32.mrb[0].mxu0
  %v1537 = vpop.f32.mrb[0].mxu0
  %v1538 = vpop.f32.mrb[0].mxu0
  %1539 = vdwg.mxu0
  %v1541 = vsel %vm106, %v1322, 0
  %1543 = vmatprep.subr.bf16.mxu0 0
  %1544 = vmatpush1.bf16.msra.mxu0 %v858
  %1545 = vmatprep.subr.bf16.mxu0 0
  %1546 = vmatpush1.bf16.msra.mxu0 0
  %1547 = vmatprep.subr.bf16.mxu0 0
  %1548 = vmatpush1.bf16.msra.mxu0 0
  %1549 = vmatprep.subr.bf16.mxu0 0
  %1550 = vmatpush1.bf16.msra.mxu0 0
  %1551 = vmatprep.subr.bf16.mxu0 0
  %1552 = vmatpush1.bf16.msra.mxu0 0
  %1553 = vmatprep.subr.bf16.mxu0 0
  %1554 = vmatpush1.bf16.msra.mxu0 0
  %1555 = vmatprep.subr.bf16.mxu0 0
  %1556 = vmatpush1.bf16.msra.mxu0 0
  %1557 = vmatprep.subr.bf16.mxu0 0
  %1558 = vmatpush1.bf16.msra.mxu0 0
  %1559 = vmatprep.subr.bf16.mxu0 0
  %1560 = vmatpush1.bf16.msra.mxu0 0
  %1561 = vmatprep.subr.bf16.mxu0 0
  %1562 = vmatpush1.bf16.msra.mxu0 0
  %1563 = vmatprep.subr.bf16.mxu0 0
  %1564 = vmatpush1.bf16.msra.mxu0 0
  %1565 = vmatprep.subr.bf16.mxu0 0
  %1566 = vmatpush1.bf16.msra.mxu0 0
  %1567 = vmatprep.subr.bf16.mxu0 0
  %1568 = vmatpush1.bf16.msra.mxu0 0
  %1569 = vmatprep.subr.bf16.mxu0 0
  %1570 = vmatpush1.bf16.msra.mxu0 0
  %1571 = vmatprep.subr.bf16.mxu0 0
  %1572 = vmatpush1.bf16.msra.mxu0 0
  %1573 = vmatprep.subr.bf16.mxu0 0
  %1574 = vmatpush1.bf16.msra.mxu0 0
  %1575 = vmatprep.mubr.bf16.mxu0 0
  %1576 = vmatmul.mubr.bf16.gmra.mrb[0].mxu0 %v1541
  %v1577 = vpop.f32.mrb[0].mxu0
  %v1578 = vadd.f32 0.0, %v1577
  %v1579 = vpop.f32.mrb[0].mxu0
  %v1580 = vpop.f32.mrb[0].mxu0
  %v1581 = vpop.f32.mrb[0].mxu0
  %1582 = vdwg.mxu0
  %v1584 = vsel %vm106, %v1323, 0
  %1586 = vmatprep.subr.bf16.mxu0 0
  %1587 = vmatpush1.bf16.msra.mxu0 %v859
  %1588 = vmatprep.subr.bf16.mxu0 0
  %1589 = vmatpush1.bf16.msra.mxu0 0
  %1590 = vmatprep.subr.bf16.mxu0 0
  %1591 = vmatpush1.bf16.msra.mxu0 0
  %1592 = vmatprep.subr.bf16.mxu0 0
  %1593 = vmatpush1.bf16.msra.mxu0 0
  %1594 = vmatprep.subr.bf16.mxu0 0
  %1595 = vmatpush1.bf16.msra.mxu0 0
  %1596 = vmatprep.subr.bf16.mxu0 0
  %1597 = vmatpush1.bf16.msra.mxu0 0
  %1598 = vmatprep.subr.bf16.mxu0 0
  %1599 = vmatpush1.bf16.msra.mxu0 0
  %1600 = vmatprep.subr.bf16.mxu0 0
  %1601 = vmatpush1.bf16.msra.mxu0 0
  %1602 = vmatprep.subr.bf16.mxu0 0
  %1603 = vmatpush1.bf16.msra.mxu0 0
  %1604 = vmatprep.subr.bf16.mxu0 0
  %1605 = vmatpush1.bf16.msra.mxu0 0
  %1606 = vmatprep.subr.bf16.mxu0 0
  %1607 = vmatpush1.bf16.msra.mxu0 0
  %1608 = vmatprep.subr.bf16.mxu0 0
  %1609 = vmatpush1.bf16.msra.mxu0 0
  %1610 = vmatprep.subr.bf16.mxu0 0
  %1611 = vmatpush1.bf16.msra.mxu0 0
  %1612 = vmatprep.subr.bf16.mxu0 0
  %1613 = vmatpush1.bf16.msra.mxu0 0
  %1614 = vmatprep.subr.bf16.mxu0 0
  %1615 = vmatpush1.bf16.msra.mxu0 0
  %1616 = vmatprep.subr.bf16.mxu0 0
  %1617 = vmatpush1.bf16.msra.mxu0 0
  %1618 = vmatprep.mubr.bf16.mxu0 0
  %1619 = vmatmul.mubr.bf16.gmra.mrb[0].mxu0 %v1584
  %v1620 = vpop.f32.mrb[0].mxu0
  %v1621 = vadd.f32 0.0, %v1620
  %v1622 = vpop.f32.mrb[0].mxu0
  %v1623 = vpop.f32.mrb[0].mxu0
  %v1624 = vpop.f32.mrb[0].mxu0
  %1625 = vdwg.mxu0
  %v1627 = vsel %vm106, %v1324, 0
  %1629 = vmatprep.subr.bf16.mxu0 0
  %1630 = vmatpush1.bf16.msra.mxu0 %v860
  %1631 = vmatprep.subr.bf16.mxu0 0
  %1632 = vmatpush1.bf16.msra.mxu0 0
  %1633 = vmatprep.subr.bf16.mxu0 0
  %1634 = vmatpush1.bf16.msra.mxu0 0
  %1635 = vmatprep.subr.bf16.mxu0 0
  %1636 = vmatpush1.bf16.msra.mxu0 0
  %1637 = vmatprep.subr.bf16.mxu0 0
  %1638 = vmatpush1.bf16.msra.mxu0 0
  %1639 = vmatprep.subr.bf16.mxu0 0
  %1640 = vmatpush1.bf16.msra.mxu0 0
  %1641 = vmatprep.subr.bf16.mxu0 0
  %1642 = vmatpush1.bf16.msra.mxu0 0
  %1643 = vmatprep.subr.bf16.mxu0 0
  %1644 = vmatpush1.bf16.msra.mxu0 0
  %1645 = vmatprep.subr.bf16.mxu0 0
  %1646 = vmatpush1.bf16.msra.mxu0 0
  %1647 = vmatprep.subr.bf16.mxu0 0
  %1648 = vmatpush1.bf16.msra.mxu0 0
  %1649 = vmatprep.subr.bf16.mxu0 0
  %1650 = vmatpush1.bf16.msra.mxu0 0
  %1651 = vmatprep.subr.bf16.mxu0 0
  %1652 = vmatpush1.bf16.msra.mxu0 0
  %1653 = vmatprep.subr.bf16.mxu0 0
  %1654 = vmatpush1.bf16.msra.mxu0 0
  %1655 = vmatprep.subr.bf16.mxu0 0
  %1656 = vmatpush1.bf16.msra.mxu0 0
  %1657 = vmatprep.subr.bf16.mxu0 0
  %1658 = vmatpush1.bf16.msra.mxu0 0
  %1659 = vmatprep.subr.bf16.mxu0 0
  %1660 = vmatpush1.bf16.msra.mxu0 0
  %1661 = vmatprep.mubr.bf16.mxu0 0
  %1662 = vmatmul.mubr.bf16.gmra.mrb[0].mxu0 %v1627
  %v1663 = vpop.f32.mrb[0].mxu0
  %v1664 = vadd.f32 0.0, %v1663
  %v1665 = vpop.f32.mrb[0].mxu0
  %v1666 = vpop.f32.mrb[0].mxu0
  %v1667 = vpop.f32.mrb[0].mxu0
  %1668 = vdwg.mxu0
  %v1669 = vpack.c.bf16 %v1406, %v1363
  %v1670 = vpack.c.bf16 %v1492, %v1449
  %v1671 = vpack.c.bf16 %v1578, %v1535
  %v1672 = vpack.c.bf16 %v1664, %v1621
  %v1673 = vlaneseq
  %v1674 = vshrl.u32 %v1673, 7
  %v1675 = vsub.s32 7, %v1674
  %v1676 = vrot.slane %v78, %v1675
  %v1681 = vunpack.c.l.b16 %v41
  %v1682 = vunpack.c.l.b16 %v42
  %v1683 = vunpack.c.l.b16 %v43
  %v1684 = vunpack.c.l.b16 %v44
  %v1685 = vpack.c.b16 %v1682, %v1681
  %v1686 = vpack.c.b16 %v1684, %v1683
  %v1690 = vsel %vm356, %v1669, 0
  %v1693 = vsel %vm356, %v1670, 0
  %v1696 = vsel %vm356, %v1671, 0
  %v1699 = vsel %vm356, %v1672, 0
  %1701 = vmatprep.subr.bf16.mxu0 0
  %1702 = vmatpush1.bf16.msra.mxu0 %v1685
  %1703 = vmatprep.subr.bf16.mxu0 0
  %1704 = vmatpush1.bf16.msra.mxu0 %v1686
  %1705 = vmatprep.subr.bf16.mxu0 0
  %1706 = vmatpush1.bf16.msra.mxu0 0
  %1707 = vmatprep.subr.bf16.mxu0 0
  %1708 = vmatpush1.bf16.msra.mxu0 0
  %1709 = vmatprep.subr.bf16.mxu0 0
  %1710 = vmatpush1.bf16.msra.mxu0 0
  %1711 = vmatprep.subr.bf16.mxu0 0
  %1712 = vmatpush1.bf16.msra.mxu0 0
  %1713 = vmatprep.subr.bf16.mxu0 0
  %1714 = vmatpush1.bf16.msra.mxu0 0
  %1715 = vmatprep.subr.bf16.mxu0 0
  %1716 = vmatpush1.bf16.msra.mxu0 0
  %1717 = vmatprep.subr.bf16.mxu0 0
  %1718 = vmatpush1.bf16.msra.mxu0 0
  %1719 = vmatprep.subr.bf16.mxu0 0
  %1720 = vmatpush1.bf16.msra.mxu0 0
  %1721 = vmatprep.subr.bf16.mxu0 0
  %1722 = vmatpush1.bf16.msra.mxu0 0
  %1723 = vmatprep.subr.bf16.mxu0 0
  %1724 = vmatpush1.bf16.msra.mxu0 0
  %1725 = vmatprep.subr.bf16.mxu0 0
  %1726 = vmatpush1.bf16.msra.mxu0 0
  %1727 = vmatprep.subr.bf16.mxu0 0
  %1728 = vmatpush1.bf16.msra.mxu0 0
  %1729 = vmatprep.subr.bf16.mxu0 0
  %1730 = vmatpush1.bf16.msra.mxu0 0
  %1731 = vmatprep.subr.bf16.mxu0 0
  %1732 = vmatpush1.bf16.msra.mxu0 0
  %1733 = vmatprep.mubr.bf16.mxu0 0
  %1734 = vmatmul.mubr.bf16.gmra.mrb[0].mxu0 %v1690
  %v1735 = vpop.f32.mrb[0].mxu0
  %v1736 = vadd.f32 %v1676, %v1735
  %v1737 = vpop.f32.mrb[0].mxu0
  %v1738 = vpop.f32.mrb[0].mxu0
  %v1739 = vadd.f32 %v1676, %v1738
  %v1740 = vpop.f32.mrb[0].mxu0
  %1741 = vmatprep.mubr.bf16.mxu0 0
  %1742 = vmatmul.mubr.bf16.gmra.mrb[0].mxu0 %v1693
  %v1743 = vpop.f32.mrb[0].mxu0
  %v1744 = vadd.f32 %v1676, %v1743
  %v1745 = vpop.f32.mrb[0].mxu0
  %v1746 = vpop.f32.mrb[0].mxu0
  %v1747 = vadd.f32 %v1676, %v1746
  %v1748 = vpop.f32.mrb[0].mxu0
  %1749 = vmatprep.mubr.bf16.mxu0 0
  %1750 = vmatmul.mubr.bf16.gmra.mrb[0].mxu0 %v1696
  %v1751 = vpop.f32.mrb[0].mxu0
  %v1752 = vadd.f32 %v1676, %v1751
  %v1753 = vpop.f32.mrb[0].mxu0
  %v1754 = vpop.f32.mrb[0].mxu0
  %v1755 = vadd.f32 %v1676, %v1754
  %v1756 = vpop.f32.mrb[0].mxu0
  %1757 = vmatprep.mubr.bf16.mxu0 0
  %1758 = vmatmul.mubr.bf16.gmra.mrb[0].mxu0 %v1699
  %v1759 = vpop.f32.mrb[0].mxu0
  %v1760 = vadd.f32 %v1676, %v1759
  %v1761 = vpop.f32.mrb[0].mxu0
  %v1762 = vpop.f32.mrb[0].mxu0
  %v1763 = vadd.f32 %v1676, %v1762
  %v1764 = vpop.f32.mrb[0].mxu0
  %1765 = vdwg.mxu0
  %v1766 = vadd.f32 %v98, %v1736
  %v1767 = vadd.f32 %v99, %v1739
  %v1768 = vadd.f32 %v100, %v1744
  %v1769 = vadd.f32 %v101, %v1747
  %v1770 = vadd.f32 %v102, %v1752
  %v1771 = vadd.f32 %v103, %v1755
  %v1772 = vadd.f32 %v104, %v1760
  %v1773 = vadd.f32 %v105, %v1763
  %v1774 = vsel %vm356, %v1766, 0.0
  %1775 = vadd.xlane.f32.xlu0 %v1774
  %v1776 = vpop.xlane.xlu0 %1775
  %v1777 = vsel %vm356, %v1767, 0.0
  %1778 = vadd.xlane.f32.xlu0 %v1777
  %v1779 = vpop.xlane.xlu0 %1778
  %v1780 = vsel %vm356, %v1768, 0.0
  %1781 = vadd.xlane.f32.xlu0 %v1780
  %v1782 = vpop.xlane.xlu0 %1781
  %v1783 = vsel %vm356, %v1769, 0.0
  %1784 = vadd.xlane.f32.xlu0 %v1783
  %v1785 = vpop.xlane.xlu0 %1784
  %v1786 = vsel %vm356, %v1770, 0.0
  %1787 = vadd.xlane.f32.xlu0 %v1786
  %v1788 = vpop.xlane.xlu0 %1787
  %v1789 = vsel %vm356, %v1771, 0.0
  %1790 = vadd.xlane.f32.xlu0 %v1789
  %v1791 = vpop.xlane.xlu0 %1790
  %v1792 = vsel %vm356, %v1772, 0.0
  %1793 = vadd.xlane.f32.xlu0 %v1792
  %v1794 = vpop.xlane.xlu0 %1793
  %v1795 = vsel %vm356, %v1773, 0.0
  %1796 = vadd.xlane.f32.xlu0 %v1795
  %v1797 = vpop.xlane.xlu0 %1796
  %v1798 = vmul.f32 %v1776, %v381
  %v1799 = vmul.f32 %v1779, %v381
  %v1800 = vmul.f32 %v1782, %v381
  %v1801 = vmul.f32 %v1785, %v381
  %v1802 = vmul.f32 %v1788, %v381
  %v1803 = vmul.f32 %v1791, %v381
  %v1804 = vmul.f32 %v1794, %v381
  %v1805 = vmul.f32 %v1797, %v381
  %v1806 = vsub.f32 %v1766, %v1798
  %v1807 = vsub.f32 %v1767, %v1799
  %v1808 = vsub.f32 %v1768, %v1800
  %v1809 = vsub.f32 %v1769, %v1801
  %v1810 = vsub.f32 %v1770, %v1802
  %v1811 = vsub.f32 %v1771, %v1803
  %v1812 = vsub.f32 %v1772, %v1804
  %v1813 = vsub.f32 %v1773, %v1805
  %v1814 = vmul.f32 %v1806, %v1806
  %v1815 = vmul.f32 %v1807, %v1807
  %v1816 = vmul.f32 %v1808, %v1808
  %v1817 = vmul.f32 %v1809, %v1809
  %v1818 = vmul.f32 %v1810, %v1810
  %v1819 = vmul.f32 %v1811, %v1811
  %v1820 = vmul.f32 %v1812, %v1812
  %v1821 = vmul.f32 %v1813, %v1813
  %v1822 = vsel %vm356, %v1814, 0.0
  %1823 = vadd.xlane.f32.xlu0 %v1822
  %v1824 = vpop.xlane.xlu0 %1823
  %v1825 = vsel %vm356, %v1815, 0.0
  %1826 = vadd.xlane.f32.xlu0 %v1825
  %v1827 = vpop.xlane.xlu0 %1826
  %v1828 = vsel %vm356, %v1816, 0.0
  %1829 = vadd.xlane.f32.xlu0 %v1828
  %v1830 = vpop.xlane.xlu0 %1829
  %v1831 = vsel %vm356, %v1817, 0.0
  %1832 = vadd.xlane.f32.xlu0 %v1831
  %v1833 = vpop.xlane.xlu0 %1832
  %v1834 = vsel %vm356, %v1818, 0.0
  %1835 = vadd.xlane.f32.xlu0 %v1834
  %v1836 = vpop.xlane.xlu0 %1835
  %v1837 = vsel %vm356, %v1819, 0.0
  %1838 = vadd.xlane.f32.xlu0 %v1837
  %v1839 = vpop.xlane.xlu0 %1838
  %v1840 = vsel %vm356, %v1820, 0.0
  %1841 = vadd.xlane.f32.xlu0 %v1840
  %v1842 = vpop.xlane.xlu0 %1841
  %v1843 = vsel %vm356, %v1821, 0.0
  %1844 = vadd.xlane.f32.xlu0 %v1843
  %v1845 = vpop.xlane.xlu0 %1844
  %v1846 = vmul.f32 %v1824, %v381
  %v1847 = vmul.f32 %v1827, %v381
  %v1848 = vmul.f32 %v1830, %v381
  %v1849 = vmul.f32 %v1833, %v381
  %v1850 = vmul.f32 %v1836, %v381
  %v1851 = vmul.f32 %v1839, %v381
  %v1852 = vmul.f32 %v1842, %v381
  %v1853 = vmul.f32 %v1845, %v381
  %v1854 = vadd.f32 %v1846, 1e-05
  %v1855 = vadd.f32 %v1847, 1e-05
  %v1856 = vadd.f32 %v1848, 1e-05
  %v1857 = vadd.f32 %v1849, 1e-05
  %v1858 = vadd.f32 %v1850, 1e-05
  %v1859 = vadd.f32 %v1851, 1e-05
  %v1860 = vadd.f32 %v1852, 1e-05
  %v1861 = vadd.f32 %v1853, 1e-05
  %v1862 = vrsqrt.pop %v1854
  %v1863 = vrsqrt.pop %v1855
  %v1864 = vrsqrt.pop %v1856
  %v1865 = vrsqrt.pop %v1857
  %v1866 = vrsqrt.pop %v1858
  %v1867 = vrsqrt.pop %v1859
  %v1868 = vrsqrt.pop %v1860
  %v1869 = vrsqrt.pop %v1861
  %v1870 = vmul.f32 %v1806, %v1862
  %v1871 = vmul.f32 %v1807, %v1863
  %v1872 = vmul.f32 %v1808, %v1864
  %v1873 = vmul.f32 %v1809, %v1865
  %v1874 = vmul.f32 %v1810, %v1866
  %v1875 = vmul.f32 %v1811, %v1867
  %v1876 = vmul.f32 %v1812, %v1868
  %v1877 = vmul.f32 %v1813, %v1869
  %v1878 = vlaneseq
  %v1879 = vshrl.u32 %v1878, 7
  %v1880 = vsub.s32 2, %v1879
  %v1881 = vrot.slane %v78, %v1880
  %v1882 = vmul.f32 %v1870, %v1881
  %v1883 = vmul.f32 %v1871, %v1881
  %v1884 = vmul.f32 %v1872, %v1881
  %v1885 = vmul.f32 %v1873, %v1881
  %v1886 = vmul.f32 %v1874, %v1881
  %v1887 = vmul.f32 %v1875, %v1881
  %v1888 = vmul.f32 %v1876, %v1881
  %v1889 = vmul.f32 %v1877, %v1881
  %v1890 = vlaneseq
  %v1891 = vshrl.u32 %v1890, 7
  %v1892 = vsub.s32 3, %v1891
  %v1893 = vrot.slane %v78, %v1892
  %v1894 = vadd.f32 %v1882, %v1893
  %v1895 = vadd.f32 %v1883, %v1893
  %v1896 = vadd.f32 %v1884, %v1893
  %v1897 = vadd.f32 %v1885, %v1893
  %v1898 = vadd.f32 %v1886, %v1893
  %v1899 = vadd.f32 %v1887, %v1893
  %v1900 = vadd.f32 %v1888, %v1893
  %v1901 = vadd.f32 %v1889, %v1893
  %v1902 = vpack.c.bf16 %v1895, %v1894
  %v1903 = vpack.c.bf16 %v1897, %v1896
  %v1904 = vpack.c.bf16 %v1899, %v1898
  %v1905 = vpack.c.bf16 %v1901, %v1900
  %v1906 = vlaneseq
  %v1907 = vshrl.u32 %v1906, 7
  %v1908 = vsub.s32 0, %v1907
  %v1909 = vrot.slane %v81, %v1908
  %v1914 = vunpack.c.l.b16 %v61
  %v1915 = vunpack.c.l.b16 %v62
  %v1916 = vunpack.c.l.b16 %v63
  %v1917 = vunpack.c.l.b16 %v64
  %v1918 = vpack.c.b16 %v1915, %v1914
  %v1919 = vpack.c.b16 %v1917, %v1916
  %v1923 = vsel %vm356, %v1902, 0
  %v1926 = vsel %vm356, %v1903, 0
  %v1929 = vsel %vm356, %v1904, 0
  %v1932 = vsel %vm356, %v1905, 0
  %1934 = vmatprep.subr.bf16.mxu0 0
  %1935 = vmatpush1.bf16.msra.mxu0 %v1918
  %1936 = vmatprep.subr.bf16.mxu0 0
  %1937 = vmatpush1.bf16.msra.mxu0 %v1919
  %1938 = vmatprep.subr.bf16.mxu0 0
  %1939 = vmatpush1.bf16.msra.mxu0 0
  %1940 = vmatprep.subr.bf16.mxu0 0
  %1941 = vmatpush1.bf16.msra.mxu0 0
  %1942 = vmatprep.subr.bf16.mxu0 0
  %1943 = vmatpush1.bf16.msra.mxu0 0
  %1944 = vmatprep.subr.bf16.mxu0 0
  %1945 = vmatpush1.bf16.msra.mxu0 0
  %1946 = vmatprep.subr.bf16.mxu0 0
  %1947 = vmatpush1.bf16.msra.mxu0 0
  %1948 = vmatprep.subr.bf16.mxu0 0
  %1949 = vmatpush1.bf16.msra.mxu0 0
  %1950 = vmatprep.subr.bf16.mxu0 0
  %1951 = vmatpush1.bf16.msra.mxu0 0
  %1952 = vmatprep.subr.bf16.mxu0 0
  %1953 = vmatpush1.bf16.msra.mxu0 0
  %1954 = vmatprep.subr.bf16.mxu0 0
  %1955 = vmatpush1.bf16.msra.mxu0 0
  %1956 = vmatprep.subr.bf16.mxu0 0
  %1957 = vmatpush1.bf16.msra.mxu0 0
  %1958 = vmatprep.subr.bf16.mxu0 0
  %1959 = vmatpush1.bf16.msra.mxu0 0
  %1960 = vmatprep.subr.bf16.mxu0 0
  %1961 = vmatpush1.bf16.msra.mxu0 0
  %1962 = vmatprep.subr.bf16.mxu0 0
  %1963 = vmatpush1.bf16.msra.mxu0 0
  %1964 = vmatprep.subr.bf16.mxu0 0
  %1965 = vmatpush1.bf16.msra.mxu0 0
  %1966 = vmatprep.mubr.bf16.mxu0 0
  %1967 = vmatmul.mubr.bf16.gmra.mrb[0].mxu0 %v1923
  %v1968 = vpop.f32.mrb[0].mxu0
  %v1969 = vadd.f32 %v1909, %v1968
  %v1970 = vpop.f32.mrb[0].mxu0
  %v1971 = vpop.f32.mrb[0].mxu0
  %v1972 = vadd.f32 %v1909, %v1971
  %v1973 = vpop.f32.mrb[0].mxu0
  %1974 = vmatprep.mubr.bf16.mxu0 0
  %1975 = vmatmul.mubr.bf16.gmra.mrb[0].mxu0 %v1926
  %v1976 = vpop.f32.mrb[0].mxu0
  %v1977 = vadd.f32 %v1909, %v1976
  %v1978 = vpop.f32.mrb[0].mxu0
  %v1979 = vpop.f32.mrb[0].mxu0
  %v1980 = vadd.f32 %v1909, %v1979
  %v1981 = vpop.f32.mrb[0].mxu0
  %1982 = vmatprep.mubr.bf16.mxu0 0
  %1983 = vmatmul.mubr.bf16.gmra.mrb[0].mxu0 %v1929
  %v1984 = vpop.f32.mrb[0].mxu0
  %v1985 = vadd.f32 %v1909, %v1984
  %v1986 = vpop.f32.mrb[0].mxu0
  %v1987 = vpop.f32.mrb[0].mxu0
  %v1988 = vadd.f32 %v1909, %v1987
  %v1989 = vpop.f32.mrb[0].mxu0
  %1990 = vmatprep.mubr.bf16.mxu0 0
  %1991 = vmatmul.mubr.bf16.gmra.mrb[0].mxu0 %v1932
  %v1992 = vpop.f32.mrb[0].mxu0
  %v1993 = vadd.f32 %v1909, %v1992
  %v1994 = vpop.f32.mrb[0].mxu0
  %v1995 = vpop.f32.mrb[0].mxu0
  %v1996 = vadd.f32 %v1909, %v1995
  %v1997 = vpop.f32.mrb[0].mxu0
  %1998 = vdwg.mxu0
  %v1999 = vmul.f32 %v1969, %v1969
  %v2000 = vmul.f32 %v1972, %v1972
  %v2001 = vmul.f32 %v1977, %v1977
  %v2002 = vmul.f32 %v1980, %v1980
  %v2003 = vmul.f32 %v1985, %v1985
  %v2004 = vmul.f32 %v1988, %v1988
  %v2005 = vmul.f32 %v1993, %v1993
  %v2006 = vmul.f32 %v1996, %v1996
  %v2007 = vmul.f32 %v1969, %v1999
  %v2008 = vmul.f32 %v1972, %v2000
  %v2009 = vmul.f32 %v1977, %v2001
  %v2010 = vmul.f32 %v1980, %v2002
  %v2011 = vmul.f32 %v1985, %v2003
  %v2012 = vmul.f32 %v1988, %v2004
  %v2013 = vmul.f32 %v1993, %v2005
  %v2014 = vmul.f32 %v1996, %v2006
  %v2015 = vmul.f32 %v2007, 0.044715
  %v2016 = vmul.f32 %v2008, 0.044715
  %v2017 = vmul.f32 %v2009, 0.044715
  %v2018 = vmul.f32 %v2010, 0.044715
  %v2019 = vmul.f32 %v2011, 0.044715
  %v2020 = vmul.f32 %v2012, 0.044715
  %v2021 = vmul.f32 %v2013, 0.044715
  %v2022 = vmul.f32 %v2014, 0.044715
  %v2023 = vadd.f32 %v1969, %v2015
  %v2024 = vadd.f32 %v1972, %v2016
  %v2025 = vadd.f32 %v1977, %v2017
  %v2026 = vadd.f32 %v1980, %v2018
  %v2027 = vadd.f32 %v1985, %v2019
  %v2028 = vadd.f32 %v1988, %v2020
  %v2029 = vadd.f32 %v1993, %v2021
  %v2030 = vadd.f32 %v1996, %v2022
  %v2031 = vmul.f32 %v2023, 0.7978846
  %v2032 = vmul.f32 %v2024, 0.7978846
  %v2033 = vmul.f32 %v2025, 0.7978846
  %v2034 = vmul.f32 %v2026, 0.7978846
  %v2035 = vmul.f32 %v2027, 0.7978846
  %v2036 = vmul.f32 %v2028, 0.7978846
  %v2037 = vmul.f32 %v2029, 0.7978846
  %v2038 = vmul.f32 %v2030, 0.7978846
  %v2039 = vtanh.pop %v2031
  %v2040 = vtanh.pop %v2032
  %v2041 = vtanh.pop %v2033
  %v2042 = vtanh.pop %v2034
  %v2043 = vtanh.pop %v2035
  %v2044 = vtanh.pop %v2036
  %v2045 = vtanh.pop %v2037
  %v2046 = vtanh.pop %v2038
  %v2047 = vadd.f32 %v2039, 1.0
  %v2048 = vadd.f32 %v2040, 1.0
  %v2049 = vadd.f32 %v2041, 1.0
  %v2050 = vadd.f32 %v2042, 1.0
  %v2051 = vadd.f32 %v2043, 1.0
  %v2052 = vadd.f32 %v2044, 1.0
  %v2053 = vadd.f32 %v2045, 1.0
  %v2054 = vadd.f32 %v2046, 1.0
  %v2055 = vmul.f32 %v2047, 0.5
  %v2056 = vmul.f32 %v2048, 0.5
  %v2057 = vmul.f32 %v2049, 0.5
  %v2058 = vmul.f32 %v2050, 0.5
  %v2059 = vmul.f32 %v2051, 0.5
  %v2060 = vmul.f32 %v2052, 0.5
  %v2061 = vmul.f32 %v2053, 0.5
  %v2062 = vmul.f32 %v2054, 0.5
  %v2063 = vmul.f32 %v1969, %v2055
  %v2064 = vmul.f32 %v1972, %v2056
  %v2065 = vmul.f32 %v1977, %v2057
  %v2066 = vmul.f32 %v1980, %v2058
  %v2067 = vmul.f32 %v1985, %v2059
  %v2068 = vmul.f32 %v1988, %v2060
  %v2069 = vmul.f32 %v1993, %v2061
  %v2070 = vmul.f32 %v1996, %v2062
  %v2071 = vpack.c.bf16 %v2064, %v2063
  %v2072 = vpack.c.bf16 %v2066, %v2065
  %v2073 = vpack.c.bf16 %v2068, %v2067
  %v2074 = vpack.c.bf16 %v2070, %v2069
  %v2075 = vlaneseq
  %v2076 = vshrl.u32 %v2075, 7
  %v2077 = vsub.s32 0, %v2076
  %v2078 = vrot.slane %v79, %v2077
  %v2083 = vunpack.c.l.b16 %v69
  %v2084 = vunpack.c.l.b16 %v70
  %v2085 = vunpack.c.l.b16 %v71
  %v2086 = vunpack.c.l.b16 %v72
  %v2087 = vpack.c.b16 %v2084, %v2083
  %v2088 = vpack.c.b16 %v2086, %v2085
  %v2092 = vsel %vm356, %v2071, 0
  %v2095 = vsel %vm356, %v2072, 0
  %v2098 = vsel %vm356, %v2073, 0
  %v2101 = vsel %vm356, %v2074, 0
  %2103 = vmatprep.subr.bf16.mxu0 0
  %2104 = vmatpush1.bf16.msra.mxu0 %v2087
  %2105 = vmatprep.subr.bf16.mxu0 0
  %2106 = vmatpush1.bf16.msra.mxu0 %v2088
  %2107 = vmatprep.subr.bf16.mxu0 0
  %2108 = vmatpush1.bf16.msra.mxu0 0
  %2109 = vmatprep.subr.bf16.mxu0 0
  %2110 = vmatpush1.bf16.msra.mxu0 0
  %2111 = vmatprep.subr.bf16.mxu0 0
  %2112 = vmatpush1.bf16.msra.mxu0 0
  %2113 = vmatprep.subr.bf16.mxu0 0
  %2114 = vmatpush1.bf16.msra.mxu0 0
  %2115 = vmatprep.subr.bf16.mxu0 0
  %2116 = vmatpush1.bf16.msra.mxu0 0
  %2117 = vmatprep.subr.bf16.mxu0 0
  %2118 = vmatpush1.bf16.msra.mxu0 0
  %2119 = vmatprep.subr.bf16.mxu0 0
  %2120 = vmatpush1.bf16.msra.mxu0 0
  %2121 = vmatprep.subr.bf16.mxu0 0
  %2122 = vmatpush1.bf16.msra.mxu0 0
  %2123 = vmatprep.subr.bf16.mxu0 0
  %2124 = vmatpush1.bf16.msra.mxu0 0
  %2125 = vmatprep.subr.bf16.mxu0 0
  %2126 = vmatpush1.bf16.msra.mxu0 0
  %2127 = vmatprep.subr.bf16.mxu0 0
  %2128 = vmatpush1.bf16.msra.mxu0 0
  %2129 = vmatprep.subr.bf16.mxu0 0
  %2130 = vmatpush1.bf16.msra.mxu0 0
  %2131 = vmatprep.subr.bf16.mxu0 0
  %2132 = vmatpush1.bf16.msra.mxu0 0
  %2133 = vmatprep.subr.bf16.mxu0 0
  %2134 = vmatpush1.bf16.msra.mxu0 0
  %2135 = vmatprep.mubr.bf16.mxu0 0
  %2136 = vmatmul.mubr.bf16.gmra.mrb[0].mxu0 %v2092
  %v2137 = vpop.f32.mrb[0].mxu0
  %v2138 = vadd.f32 %v2078, %v2137
  %v2139 = vpop.f32.mrb[0].mxu0
  %v2140 = vpop.f32.mrb[0].mxu0
  %v2141 = vadd.f32 %v2078, %v2140
  %v2142 = vpop.f32.mrb[0].mxu0
  %2143 = vmatprep.mubr.bf16.mxu0 0
  %2144 = vmatmul.mubr.bf16.gmra.mrb[0].mxu0 %v2095
  %v2145 = vpop.f32.mrb[0].mxu0
  %v2146 = vadd.f32 %v2078, %v2145
  %v2147 = vpop.f32.mrb[0].mxu0
  %v2148 = vpop.f32.mrb[0].mxu0
  %v2149 = vadd.f32 %v2078, %v2148
  %v2150 = vpop.f32.mrb[0].mxu0
  %2151 = vmatprep.mubr.bf16.mxu0 0
  %2152 = vmatmul.mubr.bf16.gmra.mrb[0].mxu0 %v2098
  %v2153 = vpop.f32.mrb[0].mxu0
  %v2154 = vadd.f32 %v2078, %v2153
  %v2155 = vpop.f32.mrb[0].mxu0
  %v2156 = vpop.f32.mrb[0].mxu0
  %v2157 = vadd.f32 %v2078, %v2156
  %v2158 = vpop.f32.mrb[0].mxu0
  %2159 = vmatprep.mubr.bf16.mxu0 0
  %2160 = vmatmul.mubr.bf16.gmra.mrb[0].mxu0 %v2101
  %v2161 = vpop.f32.mrb[0].mxu0
  %v2162 = vadd.f32 %v2078, %v2161
  %v2163 = vpop.f32.mrb[0].mxu0
  %v2164 = vpop.f32.mrb[0].mxu0
  %v2165 = vadd.f32 %v2078, %v2164
  %v2166 = vpop.f32.mrb[0].mxu0
  %2167 = vdwg.mxu0
  %v2168 = vadd.f32 %v1766, %v2138
  %v2169 = vadd.f32 %v1767, %v2141
  %v2170 = vadd.f32 %v1768, %v2146
  %v2171 = vadd.f32 %v1769, %v2149
  %v2172 = vadd.f32 %v1770, %v2154
  %v2173 = vadd.f32 %v1771, %v2157
  %v2174 = vadd.f32 %v1772, %v2162
  %v2175 = vadd.f32 %v1773, %v2165
  %v2176 = vsel %vm356, %v2168, 0.0
  %2177 = vadd.xlane.f32.xlu0 %v2176
  %v2178 = vpop.xlane.xlu0 %2177
  %v2179 = vsel %vm356, %v2169, 0.0
  %2180 = vadd.xlane.f32.xlu0 %v2179
  %v2181 = vpop.xlane.xlu0 %2180
  %v2182 = vsel %vm356, %v2170, 0.0
  %2183 = vadd.xlane.f32.xlu0 %v2182
  %v2184 = vpop.xlane.xlu0 %2183
  %v2185 = vsel %vm356, %v2171, 0.0
  %2186 = vadd.xlane.f32.xlu0 %v2185
  %v2187 = vpop.xlane.xlu0 %2186
  %v2188 = vsel %vm356, %v2172, 0.0
  %2189 = vadd.xlane.f32.xlu0 %v2188
  %v2190 = vpop.xlane.xlu0 %2189
  %v2191 = vsel %vm356, %v2173, 0.0
  %2192 = vadd.xlane.f32.xlu0 %v2191
  %v2193 = vpop.xlane.xlu0 %2192
  %v2194 = vsel %vm356, %v2174, 0.0
  %2195 = vadd.xlane.f32.xlu0 %v2194
  %v2196 = vpop.xlane.xlu0 %2195
  %v2197 = vsel %vm356, %v2175, 0.0
  %2198 = vadd.xlane.f32.xlu0 %v2197
  %v2199 = vpop.xlane.xlu0 %2198
  %v2200 = vmul.f32 %v2178, %v381
  %v2201 = vmul.f32 %v2181, %v381
  %v2202 = vmul.f32 %v2184, %v381
  %v2203 = vmul.f32 %v2187, %v381
  %v2204 = vmul.f32 %v2190, %v381
  %v2205 = vmul.f32 %v2193, %v381
  %v2206 = vmul.f32 %v2196, %v381
  %v2207 = vmul.f32 %v2199, %v381
  %v2208 = vsub.f32 %v2168, %v2200
  %v2209 = vsub.f32 %v2169, %v2201
  %v2210 = vsub.f32 %v2170, %v2202
  %v2211 = vsub.f32 %v2171, %v2203
  %v2212 = vsub.f32 %v2172, %v2204
  %v2213 = vsub.f32 %v2173, %v2205
  %v2214 = vsub.f32 %v2174, %v2206
  %v2215 = vsub.f32 %v2175, %v2207
  %v2216 = vmul.f32 %v2208, %v2208
  %v2217 = vmul.f32 %v2209, %v2209
  %v2218 = vmul.f32 %v2210, %v2210
  %v2219 = vmul.f32 %v2211, %v2211
  %v2220 = vmul.f32 %v2212, %v2212
  %v2221 = vmul.f32 %v2213, %v2213
  %v2222 = vmul.f32 %v2214, %v2214
  %v2223 = vmul.f32 %v2215, %v2215
  %v2224 = vsel %vm356, %v2216, 0.0
  %2225 = vadd.xlane.f32.xlu0 %v2224
  %v2226 = vpop.xlane.xlu0 %2225
  %v2227 = vsel %vm356, %v2217, 0.0
  %2228 = vadd.xlane.f32.xlu0 %v2227
  %v2229 = vpop.xlane.xlu0 %2228
  %v2230 = vsel %vm356, %v2218, 0.0
  %2231 = vadd.xlane.f32.xlu0 %v2230
  %v2232 = vpop.xlane.xlu0 %2231
  %v2233 = vsel %vm356, %v2219, 0.0
  %2234 = vadd.xlane.f32.xlu0 %v2233
  %v2235 = vpop.xlane.xlu0 %2234
  %v2236 = vsel %vm356, %v2220, 0.0
  %2237 = vadd.xlane.f32.xlu0 %v2236
  %v2238 = vpop.xlane.xlu0 %2237
  %v2239 = vsel %vm356, %v2221, 0.0
  %2240 = vadd.xlane.f32.xlu0 %v2239
  %v2241 = vpop.xlane.xlu0 %2240
  %v2242 = vsel %vm356, %v2222, 0.0
  %2243 = vadd.xlane.f32.xlu0 %v2242
  %v2244 = vpop.xlane.xlu0 %2243
  %v2245 = vsel %vm356, %v2223, 0.0
  %2246 = vadd.xlane.f32.xlu0 %v2245
  %v2247 = vpop.xlane.xlu0 %2246
  %v2248 = vmul.f32 %v2226, %v381
  %v2249 = vmul.f32 %v2229, %v381
  %v2250 = vmul.f32 %v2232, %v381
  %v2251 = vmul.f32 %v2235, %v381
  %v2252 = vmul.f32 %v2238, %v381
  %v2253 = vmul.f32 %v2241, %v381
  %v2254 = vmul.f32 %v2244, %v381
  %v2255 = vmul.f32 %v2247, %v381
  %v2256 = vadd.f32 %v2248, 1e-05
  %v2257 = vadd.f32 %v2249, 1e-05
  %v2258 = vadd.f32 %v2250, 1e-05
  %v2259 = vadd.f32 %v2251, 1e-05
  %v2260 = vadd.f32 %v2252, 1e-05
  %v2261 = vadd.f32 %v2253, 1e-05
  %v2262 = vadd.f32 %v2254, 1e-05
  %v2263 = vadd.f32 %v2255, 1e-05
  %v2264 = vrsqrt.pop %v2256
  %v2265 = vrsqrt.pop %v2257
  %v2266 = vrsqrt.pop %v2258
  %v2267 = vrsqrt.pop %v2259
  %v2268 = vrsqrt.pop %v2260
  %v2269 = vrsqrt.pop %v2261
  %v2270 = vrsqrt.pop %v2262
  %v2271 = vrsqrt.pop %v2263
  %v2272 = vmul.f32 %v2208, %v2264
  %v2273 = vmul.f32 %v2209, %v2265
  %v2274 = vmul.f32 %v2210, %v2266
  %v2275 = vmul.f32 %v2211, %v2267
  %v2276 = vmul.f32 %v2212, %v2268
  %v2277 = vmul.f32 %v2213, %v2269
  %v2278 = vmul.f32 %v2214, %v2270
  %v2279 = vmul.f32 %v2215, %v2271
  %v2280 = vlaneseq
  %v2281 = vshrl.u32 %v2280, 7
  %v2282 = vsub.s32 1, %v2281
  %v2283 = vrot.slane %v79, %v2282
  %v2284 = vmul.f32 %v2272, %v2283
  %v2285 = vmul.f32 %v2273, %v2283
  %v2286 = vmul.f32 %v2274, %v2283
  %v2287 = vmul.f32 %v2275, %v2283
  %v2288 = vmul.f32 %v2276, %v2283
  %v2289 = vmul.f32 %v2277, %v2283
  %v2290 = vmul.f32 %v2278, %v2283
  %v2291 = vmul.f32 %v2279, %v2283
  %v2292 = vlaneseq
  %v2293 = vshrl.u32 %v2292, 7
  %v2294 = vsub.s32 2, %v2293
  %v2295 = vrot.slane %v79, %v2294
  %v2296 = vadd.f32 %v2284, %v2295
  %v2297 = vadd.f32 %v2285, %v2295
  %v2298 = vadd.f32 %v2286, %v2295
  %v2299 = vadd.f32 %v2287, %v2295
  %v2300 = vadd.f32 %v2288, %v2295
  %v2301 = vadd.f32 %v2289, %v2295
  %v2302 = vadd.f32 %v2290, %v2295
  %v2303 = vadd.f32 %v2291, %v2295
  %v2304 = vpack.c.bf16 %v2297, %v2296
  %v2305 = vpack.c.bf16 %v2299, %v2298
  %v2306 = vpack.c.bf16 %v2301, %v2300
  %v2307 = vpack.c.bf16 %v2303, %v2302
  %v2308 = vlaneseq
  %v2309 = vshrl.u32 %v2308, 7
  %v2310 = vsub.s32 5, %v2309
  %v2311 = vrot.slane %v79, %v2310
  %v2316 = vunpack.c.l.b16 %v45
  %v2317 = vunpack.c.l.b16 %v46
  %v2318 = vunpack.c.l.b16 %v47
  %v2319 = vunpack.c.l.b16 %v48
  %v2320 = vpack.c.b16 %v2317, %v2316
  %v2321 = vpack.c.b16 %v2319, %v2318
  %v2325 = vsel %vm356, %v2304, 0
  %v2328 = vsel %vm356, %v2305, 0
  %v2331 = vsel %vm356, %v2306, 0
  %v2334 = vsel %vm356, %v2307, 0
  %2336 = vmatprep.subr.bf16.mxu0 0
  %2337 = vmatpush1.bf16.msra.mxu0 %v2320
  %2338 = vmatprep.subr.bf16.mxu0 0
  %2339 = vmatpush1.bf16.msra.mxu0 %v2321
  %2340 = vmatprep.subr.bf16.mxu0 0
  %2341 = vmatpush1.bf16.msra.mxu0 0
  %2342 = vmatprep.subr.bf16.mxu0 0
  %2343 = vmatpush1.bf16.msra.mxu0 0
  %2344 = vmatprep.subr.bf16.mxu0 0
  %2345 = vmatpush1.bf16.msra.mxu0 0
  %2346 = vmatprep.subr.bf16.mxu0 0
  %2347 = vmatpush1.bf16.msra.mxu0 0
  %2348 = vmatprep.subr.bf16.mxu0 0
  %2349 = vmatpush1.bf16.msra.mxu0 0
  %2350 = vmatprep.subr.bf16.mxu0 0
  %2351 = vmatpush1.bf16.msra.mxu0 0
  %2352 = vmatprep.subr.bf16.mxu0 0
  %2353 = vmatpush1.bf16.msra.mxu0 0
  %2354 = vmatprep.subr.bf16.mxu0 0
  %2355 = vmatpush1.bf16.msra.mxu0 0
  %2356 = vmatprep.subr.bf16.mxu0 0
  %2357 = vmatpush1.bf16.msra.mxu0 0
  %2358 = vmatprep.subr.bf16.mxu0 0
  %2359 = vmatpush1.bf16.msra.mxu0 0
  %2360 = vmatprep.subr.bf16.mxu0 0
  %2361 = vmatpush1.bf16.msra.mxu0 0
  %2362 = vmatprep.subr.bf16.mxu0 0
  %2363 = vmatpush1.bf16.msra.mxu0 0
  %2364 = vmatprep.subr.bf16.mxu0 0
  %2365 = vmatpush1.bf16.msra.mxu0 0
  %2366 = vmatprep.subr.bf16.mxu0 0
  %2367 = vmatpush1.bf16.msra.mxu0 0
  %2368 = vmatprep.mubr.bf16.mxu0 0
  %2369 = vmatmul.mubr.bf16.gmra.mrb[0].mxu0 %v2325
  %v2370 = vpop.f32.mrb[0].mxu0
  %v2371 = vadd.f32 %v2311, %v2370
  %v2372 = vpop.f32.mrb[0].mxu0
  %v2373 = vpop.f32.mrb[0].mxu0
  %v2374 = vadd.f32 %v2311, %v2373
  %v2375 = vpop.f32.mrb[0].mxu0
  %2376 = vmatprep.mubr.bf16.mxu0 0
  %2377 = vmatmul.mubr.bf16.gmra.mrb[0].mxu0 %v2328
  %v2378 = vpop.f32.mrb[0].mxu0
  %v2379 = vadd.f32 %v2311, %v2378
  %v2380 = vpop.f32.mrb[0].mxu0
  %v2381 = vpop.f32.mrb[0].mxu0
  %v2382 = vadd.f32 %v2311, %v2381
  %v2383 = vpop.f32.mrb[0].mxu0
  %2384 = vmatprep.mubr.bf16.mxu0 0
  %2385 = vmatmul.mubr.bf16.gmra.mrb[0].mxu0 %v2331
  %v2386 = vpop.f32.mrb[0].mxu0
  %v2387 = vadd.f32 %v2311, %v2386
  %v2388 = vpop.f32.mrb[0].mxu0
  %v2389 = vpop.f32.mrb[0].mxu0
  %v2390 = vadd.f32 %v2311, %v2389
  %v2391 = vpop.f32.mrb[0].mxu0
  %2392 = vmatprep.mubr.bf16.mxu0 0
  %2393 = vmatmul.mubr.bf16.gmra.mrb[0].mxu0 %v2334
  %v2394 = vpop.f32.mrb[0].mxu0
  %v2395 = vadd.f32 %v2311, %v2394
  %v2396 = vpop.f32.mrb[0].mxu0
  %v2397 = vpop.f32.mrb[0].mxu0
  %v2398 = vadd.f32 %v2311, %v2397
  %v2399 = vpop.f32.mrb[0].mxu0
  %2400 = vdwg.mxu0
  %v2401 = vlaneseq
  %v2402 = vshrl.u32 %v2401, 7
  %v2403 = vsub.s32 6, %v2402
  %v2404 = vrot.slane %v79, %v2403
  %v2409 = vunpack.c.l.b16 %v49
  %v2410 = vunpack.c.l.b16 %v50
  %v2411 = vunpack.c.l.b16 %v51
  %v2412 = vunpack.c.l.b16 %v52
  %v2413 = vpack.c.b16 %v2410, %v2409
  %v2414 = vpack.c.b16 %v2412, %v2411
  %2417 = vmatprep.subr.bf16.mxu0 0
  %2418 = vmatpush1.bf16.msra.mxu0 %v2413
  %2419 = vmatprep.subr.bf16.mxu0 0
  %2420 = vmatpush1.bf16.msra.mxu0 %v2414
  %2421 = vmatprep.subr.bf16.mxu0 0
  %2422 = vmatpush1.bf16.msra.mxu0 0
  %2423 = vmatprep.subr.bf16.mxu0 0
  %2424 = vmatpush1.bf16.msra.mxu0 0
  %2425 = vmatprep.subr.bf16.mxu0 0
  %2426 = vmatpush1.bf16.msra.mxu0 0
  %2427 = vmatprep.subr.bf16.mxu0 0
  %2428 = vmatpush1.bf16.msra.mxu0 0
  %2429 = vmatprep.subr.bf16.mxu0 0
  %2430 = vmatpush1.bf16.msra.mxu0 0
  %2431 = vmatprep.subr.bf16.mxu0 0
  %2432 = vmatpush1.bf16.msra.mxu0 0
  %2433 = vmatprep.subr.bf16.mxu0 0
  %2434 = vmatpush1.bf16.msra.mxu0 0
  %2435 = vmatprep.subr.bf16.mxu0 0
  %2436 = vmatpush1.bf16.msra.mxu0 0
  %2437 = vmatprep.subr.bf16.mxu0 0
  %2438 = vmatpush1.bf16.msra.mxu0 0
  %2439 = vmatprep.subr.bf16.mxu0 0
  %2440 = vmatpush1.bf16.msra.mxu0 0
  %2441 = vmatprep.subr.bf16.mxu0 0
  %2442 = vmatpush1.bf16.msra.mxu0 0
  %2443 = vmatprep.subr.bf16.mxu0 0
  %2444 = vmatpush1.bf16.msra.mxu0 0
  %2445 = vmatprep.subr.bf16.mxu0 0
  %2446 = vmatpush1.bf16.msra.mxu0 0
  %2447 = vmatprep.subr.bf16.mxu0 0
  %2448 = vmatpush1.bf16.msra.mxu0 0
  %2449 = vmatprep.mubr.bf16.mxu0 0
  %2450 = vmatmul.mubr.bf16.gmra.mrb[0].mxu0 %v2325
  %v2451 = vpop.f32.mrb[0].mxu0
  %v2452 = vadd.f32 %v2404, %v2451
  %v2453 = vpop.f32.mrb[0].mxu0
  %v2454 = vpop.f32.mrb[0].mxu0
  %v2455 = vadd.f32 %v2404, %v2454
  %v2456 = vpop.f32.mrb[0].mxu0
  %2457 = vmatprep.mubr.bf16.mxu0 0
  %2458 = vmatmul.mubr.bf16.gmra.mrb[0].mxu0 %v2328
  %v2459 = vpop.f32.mrb[0].mxu0
  %v2460 = vadd.f32 %v2404, %v2459
  %v2461 = vpop.f32.mrb[0].mxu0
  %v2462 = vpop.f32.mrb[0].mxu0
  %v2463 = vadd.f32 %v2404, %v2462
  %v2464 = vpop.f32.mrb[0].mxu0
  %2465 = vmatprep.mubr.bf16.mxu0 0
  %2466 = vmatmul.mubr.bf16.gmra.mrb[0].mxu0 %v2331
  %v2467 = vpop.f32.mrb[0].mxu0
  %v2468 = vadd.f32 %v2404, %v2467
  %v2469 = vpop.f32.mrb[0].mxu0
  %v2470 = vpop.f32.mrb[0].mxu0
  %v2471 = vadd.f32 %v2404, %v2470
  %v2472 = vpop.f32.mrb[0].mxu0
  %2473 = vmatprep.mubr.bf16.mxu0 0
  %2474 = vmatmul.mubr.bf16.gmra.mrb[0].mxu0 %v2334
  %v2475 = vpop.f32.mrb[0].mxu0
  %v2476 = vadd.f32 %v2404, %v2475
  %v2477 = vpop.f32.mrb[0].mxu0
  %v2478 = vpop.f32.mrb[0].mxu0
  %v2479 = vadd.f32 %v2404, %v2478
  %v2480 = vpop.f32.mrb[0].mxu0
  %2481 = vdwg.mxu0
  %v2482 = vlaneseq
  %v2483 = vshrl.u32 %v2482, 7
  %v2484 = vsub.s32 7, %v2483
  %v2485 = vrot.slane %v79, %v2484
  %v2490 = vunpack.c.l.b16 %v53
  %v2491 = vunpack.c.l.b16 %v54
  %v2492 = vunpack.c.l.b16 %v55
  %v2493 = vunpack.c.l.b16 %v56
  %v2494 = vpack.c.b16 %v2491, %v2490
  %v2495 = vpack.c.b16 %v2493, %v2492
  %2498 = vmatprep.subr.bf16.mxu0 0
  %2499 = vmatpush1.bf16.msra.mxu0 %v2494
  %2500 = vmatprep.subr.bf16.mxu0 0
  %2501 = vmatpush1.bf16.msra.mxu0 %v2495
  %2502 = vmatprep.subr.bf16.mxu0 0
  %2503 = vmatpush1.bf16.msra.mxu0 0
  %2504 = vmatprep.subr.bf16.mxu0 0
  %2505 = vmatpush1.bf16.msra.mxu0 0
  %2506 = vmatprep.subr.bf16.mxu0 0
  %2507 = vmatpush1.bf16.msra.mxu0 0
  %2508 = vmatprep.subr.bf16.mxu0 0
  %2509 = vmatpush1.bf16.msra.mxu0 0
  %2510 = vmatprep.subr.bf16.mxu0 0
  %2511 = vmatpush1.bf16.msra.mxu0 0
  %2512 = vmatprep.subr.bf16.mxu0 0
  %2513 = vmatpush1.bf16.msra.mxu0 0
  %2514 = vmatprep.subr.bf16.mxu0 0
  %2515 = vmatpush1.bf16.msra.mxu0 0
  %2516 = vmatprep.subr.bf16.mxu0 0
  %2517 = vmatpush1.bf16.msra.mxu0 0
  %2518 = vmatprep.subr.bf16.mxu0 0
  %2519 = vmatpush1.bf16.msra.mxu0 0
  %2520 = vmatprep.subr.bf16.mxu0 0
  %2521 = vmatpush1.bf16.msra.mxu0 0
  %2522 = vmatprep.subr.bf16.mxu0 0
  %2523 = vmatpush1.bf16.msra.mxu0 0
  %2524 = vmatprep.subr.bf16.mxu0 0
  %2525 = vmatpush1.bf16.msra.mxu0 0
  %2526 = vmatprep.subr.bf16.mxu0 0
  %2527 = vmatpush1.bf16.msra.mxu0 0
  %2528 = vmatprep.subr.bf16.mxu0 0
  %2529 = vmatpush1.bf16.msra.mxu0 0
  %2530 = vmatprep.mubr.bf16.mxu0 0
  %2531 = vmatmul.mubr.bf16.gmra.mrb[0].mxu0 %v2325
  %v2532 = vpop.f32.mrb[0].mxu0
  %v2533 = vadd.f32 %v2485, %v2532
  %v2534 = vpop.f32.mrb[0].mxu0
  %v2535 = vpop.f32.mrb[0].mxu0
  %v2536 = vadd.f32 %v2485, %v2535
  %v2537 = vpop.f32.mrb[0].mxu0
  %2538 = vmatprep.mubr.bf16.mxu0 0
  %2539 = vmatmul.mubr.bf16.gmra.mrb[0].mxu0 %v2328
  %v2540 = vpop.f32.mrb[0].mxu0
  %v2541 = vadd.f32 %v2485, %v2540
  %v2542 = vpop.f32.mrb[0].mxu0
  %v2543 = vpop.f32.mrb[0].mxu0
  %v2544 = vadd.f32 %v2485, %v2543
  %v2545 = vpop.f32.mrb[0].mxu0
  %2546 = vmatprep.mubr.bf16.mxu0 0
  %2547 = vmatmul.mubr.bf16.gmra.mrb[0].mxu0 %v2331
  %v2548 = vpop.f32.mrb[0].mxu0
  %v2549 = vadd.f32 %v2485, %v2548
  %v2550 = vpop.f32.mrb[0].mxu0
  %v2551 = vpop.f32.mrb[0].mxu0
  %v2552 = vadd.f32 %v2485, %v2551
  %v2553 = vpop.f32.mrb[0].mxu0
  %2554 = vmatprep.mubr.bf16.mxu0 0
  %2555 = vmatmul.mubr.bf16.gmra.mrb[0].mxu0 %v2334
  %v2556 = vpop.f32.mrb[0].mxu0
  %v2557 = vadd.f32 %v2485, %v2556
  %v2558 = vpop.f32.mrb[0].mxu0
  %v2559 = vpop.f32.mrb[0].mxu0
  %v2560 = vadd.f32 %v2485, %v2559
  %v2561 = vpop.f32.mrb[0].mxu0
  %2562 = vdwg.mxu0
  %v2563 = vmul.f32 %v2371, 0.17677669
  %v2564 = vmul.f32 %v2374, 0.17677669
  %v2565 = vmul.f32 %v2379, 0.17677669
  %v2566 = vmul.f32 %v2382, 0.17677669
  %v2567 = vmul.f32 %v2387, 0.17677669
  %v2568 = vmul.f32 %v2390, 0.17677669
  %v2569 = vmul.f32 %v2395, 0.17677669
  %v2570 = vmul.f32 %v2398, 0.17677669
  %v2571 = vpack.c.bf16 %v2563, %v2563
  %v2572 = vpack.c.bf16 %v2564, %v2564
  %v2573 = vpack.c.bf16 %v2565, %v2565
  %v2574 = vpack.c.bf16 %v2566, %v2566
  %v2575 = vpack.c.bf16 %v2567, %v2567
  %v2576 = vpack.c.bf16 %v2568, %v2568
  %v2577 = vpack.c.bf16 %v2569, %v2569
  %v2578 = vpack.c.bf16 %v2570, %v2570
  %v2579 = vpack.c.bf16 %v2452, %v2452
  %v2580 = vpack.c.bf16 %v2455, %v2455
  %v2581 = vpack.c.bf16 %v2460, %v2460
  %v2582 = vpack.c.bf16 %v2463, %v2463
  %v2583 = vpack.c.bf16 %v2468, %v2468
  %v2584 = vpack.c.bf16 %v2471, %v2471
  %v2585 = vpack.c.bf16 %v2476, %v2476
  %v2586 = vpack.c.bf16 %v2479, %v2479
  %v2587 = vpack.c.bf16 %v2533, %v2533
  %v2588 = vpack.c.bf16 %v2536, %v2536
  %v2589 = vpack.c.bf16 %v2541, %v2541
  %v2590 = vpack.c.bf16 %v2544, %v2544
  %v2591 = vpack.c.bf16 %v2549, %v2549
  %v2592 = vpack.c.bf16 %v2552, %v2552
  %v2593 = vpack.c.bf16 %v2557, %v2557
  %v2594 = vpack.c.bf16 %v2560, %v2560
  %v2596 = vsel %vm356, %v2571, 0
  %v2599 = vsel %vm356, %v2579, 0
  %2601 = vmatprep.subr.bf16.mxu0 0
  %2602 = vmatpush1.bf16.xpose.msra.mxu0 %v2599
  %2603 = vmatprep.subr.bf16.mxu0 0
  %2604 = vmatpush1.bf16.xpose.msra.mxu0 0
  %2605 = vmatprep.subr.bf16.mxu0 0
  %2606 = vmatpush1.bf16.xpose.msra.mxu0 0
  %2607 = vmatprep.subr.bf16.mxu0 0
  %2608 = vmatpush1.bf16.xpose.msra.mxu0 0
  %2609 = vmatprep.subr.bf16.mxu0 0
  %2610 = vmatpush1.bf16.xpose.msra.mxu0 0
  %2611 = vmatprep.subr.bf16.mxu0 0
  %2612 = vmatpush1.bf16.xpose.msra.mxu0 0
  %2613 = vmatprep.subr.bf16.mxu0 0
  %2614 = vmatpush1.bf16.xpose.msra.mxu0 0
  %2615 = vmatprep.subr.bf16.mxu0 0
  %2616 = vmatpush1.bf16.xpose.msra.mxu0 0
  %2617 = vmatprep.subr.bf16.mxu0 0
  %2618 = vmatpush1.bf16.xpose.msra.mxu0 0
  %2619 = vmatprep.subr.bf16.mxu0 0
  %2620 = vmatpush1.bf16.xpose.msra.mxu0 0
  %2621 = vmatprep.subr.bf16.mxu0 0
  %2622 = vmatpush1.bf16.xpose.msra.mxu0 0
  %2623 = vmatprep.subr.bf16.mxu0 0
  %2624 = vmatpush1.bf16.xpose.msra.mxu0 0
  %2625 = vmatprep.subr.bf16.mxu0 0
  %2626 = vmatpush1.bf16.xpose.msra.mxu0 0
  %2627 = vmatprep.subr.bf16.mxu0 0
  %2628 = vmatpush1.bf16.xpose.msra.mxu0 0
  %2629 = vmatprep.subr.bf16.mxu0 0
  %2630 = vmatpush1.bf16.xpose.msra.mxu0 0
  %2631 = vmatprep.subr.bf16.mxu0 0
  %2632 = vmatpush1.bf16.xpose.msra.mxu0 0
  %2633 = vmatprep.mubr.bf16.mxu0 0
  %2634 = vmatmul.mubr.bf16.gmra.mrb[0].mxu0 %v2596
  %v2635 = vpop.f32.mrb[0].mxu0
  %v2636 = vadd.f32 0.0, %v2635
  %v2637 = vpop.f32.mrb[0].mxu0
  %v2638 = vpop.f32.mrb[0].mxu0
  %v2639 = vpop.f32.mrb[0].mxu0
  %2640 = vdwg.mxu0
  %v2642 = vsel %vm356, %v2572, 0
  %v2645 = vsel %vm356, %v2580, 0
  %2647 = vmatprep.subr.bf16.mxu0 0
  %2648 = vmatpush1.bf16.xpose.msra.mxu0 %v2645
  %2649 = vmatprep.subr.bf16.mxu0 0
  %2650 = vmatpush1.bf16.xpose.msra.mxu0 0
  %2651 = vmatprep.subr.bf16.mxu0 0
  %2652 = vmatpush1.bf16.xpose.msra.mxu0 0
  %2653 = vmatprep.subr.bf16.mxu0 0
  %2654 = vmatpush1.bf16.xpose.msra.mxu0 0
  %2655 = vmatprep.subr.bf16.mxu0 0
  %2656 = vmatpush1.bf16.xpose.msra.mxu0 0
  %2657 = vmatprep.subr.bf16.mxu0 0
  %2658 = vmatpush1.bf16.xpose.msra.mxu0 0
  %2659 = vmatprep.subr.bf16.mxu0 0
  %2660 = vmatpush1.bf16.xpose.msra.mxu0 0
  %2661 = vmatprep.subr.bf16.mxu0 0
  %2662 = vmatpush1.bf16.xpose.msra.mxu0 0
  %2663 = vmatprep.subr.bf16.mxu0 0
  %2664 = vmatpush1.bf16.xpose.msra.mxu0 0
  %2665 = vmatprep.subr.bf16.mxu0 0
  %2666 = vmatpush1.bf16.xpose.msra.mxu0 0
  %2667 = vmatprep.subr.bf16.mxu0 0
  %2668 = vmatpush1.bf16.xpose.msra.mxu0 0
  %2669 = vmatprep.subr.bf16.mxu0 0
  %2670 = vmatpush1.bf16.xpose.msra.mxu0 0
  %2671 = vmatprep.subr.bf16.mxu0 0
  %2672 = vmatpush1.bf16.xpose.msra.mxu0 0
  %2673 = vmatprep.subr.bf16.mxu0 0
  %2674 = vmatpush1.bf16.xpose.msra.mxu0 0
  %2675 = vmatprep.subr.bf16.mxu0 0
  %2676 = vmatpush1.bf16.xpose.msra.mxu0 0
  %2677 = vmatprep.subr.bf16.mxu0 0
  %2678 = vmatpush1.bf16.xpose.msra.mxu0 0
  %2679 = vmatprep.mubr.bf16.mxu0 0
  %2680 = vmatmul.mubr.bf16.gmra.mrb[0].mxu0 %v2642
  %v2681 = vpop.f32.mrb[0].mxu0
  %v2682 = vadd.f32 0.0, %v2681
  %v2683 = vpop.f32.mrb[0].mxu0
  %v2684 = vpop.f32.mrb[0].mxu0
  %v2685 = vpop.f32.mrb[0].mxu0
  %2686 = vdwg.mxu0
  %v2688 = vsel %vm356, %v2573, 0
  %v2691 = vsel %vm356, %v2581, 0
  %2693 = vmatprep.subr.bf16.mxu0 0
  %2694 = vmatpush1.bf16.xpose.msra.mxu0 %v2691
  %2695 = vmatprep.subr.bf16.mxu0 0
  %2696 = vmatpush1.bf16.xpose.msra.mxu0 0
  %2697 = vmatprep.subr.bf16.mxu0 0
  %2698 = vmatpush1.bf16.xpose.msra.mxu0 0
  %2699 = vmatprep.subr.bf16.mxu0 0
  %2700 = vmatpush1.bf16.xpose.msra.mxu0 0
  %2701 = vmatprep.subr.bf16.mxu0 0
  %2702 = vmatpush1.bf16.xpose.msra.mxu0 0
  %2703 = vmatprep.subr.bf16.mxu0 0
  %2704 = vmatpush1.bf16.xpose.msra.mxu0 0
  %2705 = vmatprep.subr.bf16.mxu0 0
  %2706 = vmatpush1.bf16.xpose.msra.mxu0 0
  %2707 = vmatprep.subr.bf16.mxu0 0
  %2708 = vmatpush1.bf16.xpose.msra.mxu0 0
  %2709 = vmatprep.subr.bf16.mxu0 0
  %2710 = vmatpush1.bf16.xpose.msra.mxu0 0
  %2711 = vmatprep.subr.bf16.mxu0 0
  %2712 = vmatpush1.bf16.xpose.msra.mxu0 0
  %2713 = vmatprep.subr.bf16.mxu0 0
  %2714 = vmatpush1.bf16.xpose.msra.mxu0 0
  %2715 = vmatprep.subr.bf16.mxu0 0
  %2716 = vmatpush1.bf16.xpose.msra.mxu0 0
  %2717 = vmatprep.subr.bf16.mxu0 0
  %2718 = vmatpush1.bf16.xpose.msra.mxu0 0
  %2719 = vmatprep.subr.bf16.mxu0 0
  %2720 = vmatpush1.bf16.xpose.msra.mxu0 0
  %2721 = vmatprep.subr.bf16.mxu0 0
  %2722 = vmatpush1.bf16.xpose.msra.mxu0 0
  %2723 = vmatprep.subr.bf16.mxu0 0
  %2724 = vmatpush1.bf16.xpose.msra.mxu0 0
  %2725 = vmatprep.mubr.bf16.mxu0 0
  %2726 = vmatmul.mubr.bf16.gmra.mrb[0].mxu0 %v2688
  %v2727 = vpop.f32.mrb[0].mxu0
  %v2728 = vadd.f32 0.0, %v2727
  %v2729 = vpop.f32.mrb[0].mxu0
  %v2730 = vpop.f32.mrb[0].mxu0
  %v2731 = vpop.f32.mrb[0].mxu0
  %2732 = vdwg.mxu0
  %v2734 = vsel %vm356, %v2574, 0
  %v2737 = vsel %vm356, %v2582, 0
  %2739 = vmatprep.subr.bf16.mxu0 0
  %2740 = vmatpush1.bf16.xpose.msra.mxu0 %v2737
  %2741 = vmatprep.subr.bf16.mxu0 0
  %2742 = vmatpush1.bf16.xpose.msra.mxu0 0
  %2743 = vmatprep.subr.bf16.mxu0 0
  %2744 = vmatpush1.bf16.xpose.msra.mxu0 0
  %2745 = vmatprep.subr.bf16.mxu0 0
  %2746 = vmatpush1.bf16.xpose.msra.mxu0 0
  %2747 = vmatprep.subr.bf16.mxu0 0
  %2748 = vmatpush1.bf16.xpose.msra.mxu0 0
  %2749 = vmatprep.subr.bf16.mxu0 0
  %2750 = vmatpush1.bf16.xpose.msra.mxu0 0
  %2751 = vmatprep.subr.bf16.mxu0 0
  %2752 = vmatpush1.bf16.xpose.msra.mxu0 0
  %2753 = vmatprep.subr.bf16.mxu0 0
  %2754 = vmatpush1.bf16.xpose.msra.mxu0 0
  %2755 = vmatprep.subr.bf16.mxu0 0
  %2756 = vmatpush1.bf16.xpose.msra.mxu0 0
  %2757 = vmatprep.subr.bf16.mxu0 0
  %2758 = vmatpush1.bf16.xpose.msra.mxu0 0
  %2759 = vmatprep.subr.bf16.mxu0 0
  %2760 = vmatpush1.bf16.xpose.msra.mxu0 0
  %2761 = vmatprep.subr.bf16.mxu0 0
  %2762 = vmatpush1.bf16.xpose.msra.mxu0 0
  %2763 = vmatprep.subr.bf16.mxu0 0
  %2764 = vmatpush1.bf16.xpose.msra.mxu0 0
  %2765 = vmatprep.subr.bf16.mxu0 0
  %2766 = vmatpush1.bf16.xpose.msra.mxu0 0
  %2767 = vmatprep.subr.bf16.mxu0 0
  %2768 = vmatpush1.bf16.xpose.msra.mxu0 0
  %2769 = vmatprep.subr.bf16.mxu0 0
  %2770 = vmatpush1.bf16.xpose.msra.mxu0 0
  %2771 = vmatprep.mubr.bf16.mxu0 0
  %2772 = vmatmul.mubr.bf16.gmra.mrb[0].mxu0 %v2734
  %v2773 = vpop.f32.mrb[0].mxu0
  %v2774 = vadd.f32 0.0, %v2773
  %v2775 = vpop.f32.mrb[0].mxu0
  %v2776 = vpop.f32.mrb[0].mxu0
  %v2777 = vpop.f32.mrb[0].mxu0
  %2778 = vdwg.mxu0
  %v2780 = vsel %vm356, %v2575, 0
  %v2783 = vsel %vm356, %v2583, 0
  %2785 = vmatprep.subr.bf16.mxu0 0
  %2786 = vmatpush1.bf16.xpose.msra.mxu0 %v2783
  %2787 = vmatprep.subr.bf16.mxu0 0
  %2788 = vmatpush1.bf16.xpose.msra.mxu0 0
  %2789 = vmatprep.subr.bf16.mxu0 0
  %2790 = vmatpush1.bf16.xpose.msra.mxu0 0
  %2791 = vmatprep.subr.bf16.mxu0 0
  %2792 = vmatpush1.bf16.xpose.msra.mxu0 0
  %2793 = vmatprep.subr.bf16.mxu0 0
  %2794 = vmatpush1.bf16.xpose.msra.mxu0 0
  %2795 = vmatprep.subr.bf16.mxu0 0
  %2796 = vmatpush1.bf16.xpose.msra.mxu0 0
  %2797 = vmatprep.subr.bf16.mxu0 0
  %2798 = vmatpush1.bf16.xpose.msra.mxu0 0
  %2799 = vmatprep.subr.bf16.mxu0 0
  %2800 = vmatpush1.bf16.xpose.msra.mxu0 0
  %2801 = vmatprep.subr.bf16.mxu0 0
  %2802 = vmatpush1.bf16.xpose.msra.mxu0 0
  %2803 = vmatprep.subr.bf16.mxu0 0
  %2804 = vmatpush1.bf16.xpose.msra.mxu0 0
  %2805 = vmatprep.subr.bf16.mxu0 0
  %2806 = vmatpush1.bf16.xpose.msra.mxu0 0
  %2807 = vmatprep.subr.bf16.mxu0 0
  %2808 = vmatpush1.bf16.xpose.msra.mxu0 0
  %2809 = vmatprep.subr.bf16.mxu0 0
  %2810 = vmatpush1.bf16.xpose.msra.mxu0 0
  %2811 = vmatprep.subr.bf16.mxu0 0
  %2812 = vmatpush1.bf16.xpose.msra.mxu0 0
  %2813 = vmatprep.subr.bf16.mxu0 0
  %2814 = vmatpush1.bf16.xpose.msra.mxu0 0
  %2815 = vmatprep.subr.bf16.mxu0 0
  %2816 = vmatpush1.bf16.xpose.msra.mxu0 0
  %2817 = vmatprep.mubr.bf16.mxu0 0
  %2818 = vmatmul.mubr.bf16.gmra.mrb[0].mxu0 %v2780
  %v2819 = vpop.f32.mrb[0].mxu0
  %v2820 = vadd.f32 0.0, %v2819
  %v2821 = vpop.f32.mrb[0].mxu0
  %v2822 = vpop.f32.mrb[0].mxu0
  %v2823 = vpop.f32.mrb[0].mxu0
  %2824 = vdwg.mxu0
  %v2826 = vsel %vm356, %v2576, 0
  %v2829 = vsel %vm356, %v2584, 0
  %2831 = vmatprep.subr.bf16.mxu0 0
  %2832 = vmatpush1.bf16.xpose.msra.mxu0 %v2829
  %2833 = vmatprep.subr.bf16.mxu0 0
  %2834 = vmatpush1.bf16.xpose.msra.mxu0 0
  %2835 = vmatprep.subr.bf16.mxu0 0
  %2836 = vmatpush1.bf16.xpose.msra.mxu0 0
  %2837 = vmatprep.subr.bf16.mxu0 0
  %2838 = vmatpush1.bf16.xpose.msra.mxu0 0
  %2839 = vmatprep.subr.bf16.mxu0 0
  %2840 = vmatpush1.bf16.xpose.msra.mxu0 0
  %2841 = vmatprep.subr.bf16.mxu0 0
  %2842 = vmatpush1.bf16.xpose.msra.mxu0 0
  %2843 = vmatprep.subr.bf16.mxu0 0
  %2844 = vmatpush1.bf16.xpose.msra.mxu0 0
  %2845 = vmatprep.subr.bf16.mxu0 0
  %2846 = vmatpush1.bf16.xpose.msra.mxu0 0
  %2847 = vmatprep.subr.bf16.mxu0 0
  %2848 = vmatpush1.bf16.xpose.msra.mxu0 0
  %2849 = vmatprep.subr.bf16.mxu0 0
  %2850 = vmatpush1.bf16.xpose.msra.mxu0 0
  %2851 = vmatprep.subr.bf16.mxu0 0
  %2852 = vmatpush1.bf16.xpose.msra.mxu0 0
  %2853 = vmatprep.subr.bf16.mxu0 0
  %2854 = vmatpush1.bf16.xpose.msra.mxu0 0
  %2855 = vmatprep.subr.bf16.mxu0 0
  %2856 = vmatpush1.bf16.xpose.msra.mxu0 0
  %2857 = vmatprep.subr.bf16.mxu0 0
  %2858 = vmatpush1.bf16.xpose.msra.mxu0 0
  %2859 = vmatprep.subr.bf16.mxu0 0
  %2860 = vmatpush1.bf16.xpose.msra.mxu0 0
  %2861 = vmatprep.subr.bf16.mxu0 0
  %2862 = vmatpush1.bf16.xpose.msra.mxu0 0
  %2863 = vmatprep.mubr.bf16.mxu0 0
  %2864 = vmatmul.mubr.bf16.gmra.mrb[0].mxu0 %v2826
  %v2865 = vpop.f32.mrb[0].mxu0
  %v2866 = vadd.f32 0.0, %v2865
  %v2867 = vpop.f32.mrb[0].mxu0
  %v2868 = vpop.f32.mrb[0].mxu0
  %v2869 = vpop.f32.mrb[0].mxu0
  %2870 = vdwg.mxu0
  %v2872 = vsel %vm356, %v2577, 0
  %v2875 = vsel %vm356, %v2585, 0
  %2877 = vmatprep.subr.bf16.mxu0 0
  %2878 = vmatpush1.bf16.xpose.msra.mxu0 %v2875
  %2879 = vmatprep.subr.bf16.mxu0 0
  %2880 = vmatpush1.bf16.xpose.msra.mxu0 0
  %2881 = vmatprep.subr.bf16.mxu0 0
  %2882 = vmatpush1.bf16.xpose.msra.mxu0 0
  %2883 = vmatprep.subr.bf16.mxu0 0
  %2884 = vmatpush1.bf16.xpose.msra.mxu0 0
  %2885 = vmatprep.subr.bf16.mxu0 0
  %2886 = vmatpush1.bf16.xpose.msra.mxu0 0
  %2887 = vmatprep.subr.bf16.mxu0 0
  %2888 = vmatpush1.bf16.xpose.msra.mxu0 0
  %2889 = vmatprep.subr.bf16.mxu0 0
  %2890 = vmatpush1.bf16.xpose.msra.mxu0 0
  %2891 = vmatprep.subr.bf16.mxu0 0
  %2892 = vmatpush1.bf16.xpose.msra.mxu0 0
  %2893 = vmatprep.subr.bf16.mxu0 0
  %2894 = vmatpush1.bf16.xpose.msra.mxu0 0
  %2895 = vmatprep.subr.bf16.mxu0 0
  %2896 = vmatpush1.bf16.xpose.msra.mxu0 0
  %2897 = vmatprep.subr.bf16.mxu0 0
  %2898 = vmatpush1.bf16.xpose.msra.mxu0 0
  %2899 = vmatprep.subr.bf16.mxu0 0
  %2900 = vmatpush1.bf16.xpose.msra.mxu0 0
  %2901 = vmatprep.subr.bf16.mxu0 0
  %2902 = vmatpush1.bf16.xpose.msra.mxu0 0
  %2903 = vmatprep.subr.bf16.mxu0 0
  %2904 = vmatpush1.bf16.xpose.msra.mxu0 0
  %2905 = vmatprep.subr.bf16.mxu0 0
  %2906 = vmatpush1.bf16.xpose.msra.mxu0 0
  %2907 = vmatprep.subr.bf16.mxu0 0
  %2908 = vmatpush1.bf16.xpose.msra.mxu0 0
  %2909 = vmatprep.mubr.bf16.mxu0 0
  %2910 = vmatmul.mubr.bf16.gmra.mrb[0].mxu0 %v2872
  %v2911 = vpop.f32.mrb[0].mxu0
  %v2912 = vadd.f32 0.0, %v2911
  %v2913 = vpop.f32.mrb[0].mxu0
  %v2914 = vpop.f32.mrb[0].mxu0
  %v2915 = vpop.f32.mrb[0].mxu0
  %2916 = vdwg.mxu0
  %v2918 = vsel %vm356, %v2578, 0
  %v2921 = vsel %vm356, %v2586, 0
  %2923 = vmatprep.subr.bf16.mxu0 0
  %2924 = vmatpush1.bf16.xpose.msra.mxu0 %v2921
  %2925 = vmatprep.subr.bf16.mxu0 0
  %2926 = vmatpush1.bf16.xpose.msra.mxu0 0
  %2927 = vmatprep.subr.bf16.mxu0 0
  %2928 = vmatpush1.bf16.xpose.msra.mxu0 0
  %2929 = vmatprep.subr.bf16.mxu0 0
  %2930 = vmatpush1.bf16.xpose.msra.mxu0 0
  %2931 = vmatprep.subr.bf16.mxu0 0
  %2932 = vmatpush1.bf16.xpose.msra.mxu0 0
  %2933 = vmatprep.subr.bf16.mxu0 0
  %2934 = vmatpush1.bf16.xpose.msra.mxu0 0
  %2935 = vmatprep.subr.bf16.mxu0 0
  %2936 = vmatpush1.bf16.xpose.msra.mxu0 0
  %2937 = vmatprep.subr.bf16.mxu0 0
  %2938 = vmatpush1.bf16.xpose.msra.mxu0 0
  %2939 = vmatprep.subr.bf16.mxu0 0
  %2940 = vmatpush1.bf16.xpose.msra.mxu0 0
  %2941 = vmatprep.subr.bf16.mxu0 0
  %2942 = vmatpush1.bf16.xpose.msra.mxu0 0
  %2943 = vmatprep.subr.bf16.mxu0 0
  %2944 = vmatpush1.bf16.xpose.msra.mxu0 0
  %2945 = vmatprep.subr.bf16.mxu0 0
  %2946 = vmatpush1.bf16.xpose.msra.mxu0 0
  %2947 = vmatprep.subr.bf16.mxu0 0
  %2948 = vmatpush1.bf16.xpose.msra.mxu0 0
  %2949 = vmatprep.subr.bf16.mxu0 0
  %2950 = vmatpush1.bf16.xpose.msra.mxu0 0
  %2951 = vmatprep.subr.bf16.mxu0 0
  %2952 = vmatpush1.bf16.xpose.msra.mxu0 0
  %2953 = vmatprep.subr.bf16.mxu0 0
  %2954 = vmatpush1.bf16.xpose.msra.mxu0 0
  %2955 = vmatprep.mubr.bf16.mxu0 0
  %2956 = vmatmul.mubr.bf16.gmra.mrb[0].mxu0 %v2918
  %v2957 = vpop.f32.mrb[0].mxu0
  %v2958 = vadd.f32 0.0, %v2957
  %v2959 = vpop.f32.mrb[0].mxu0
  %v2960 = vpop.f32.mrb[0].mxu0
  %v2961 = vpop.f32.mrb[0].mxu0
  %2962 = vdwg.mxu0
  %vm2963 = vcmask 64512
  %v2964 = vsel %vm2963, %v2636, -inf
  %2965 = vmax.xlane.f32.xlu0 %v2964
  %v2966 = vpop.xlane.xlu0 %2965
  %v2967 = vsel %vm2963, %v2682, -inf
  %2968 = vmax.xlane.f32.xlu0 %v2967
  %v2969 = vpop.xlane.xlu0 %2968
  %v2970 = vsel %vm2963, %v2728, -inf
  %2971 = vmax.xlane.f32.xlu0 %v2970
  %v2972 = vpop.xlane.xlu0 %2971
  %v2973 = vsel %vm2963, %v2774, -inf
  %2974 = vmax.xlane.f32.xlu0 %v2973
  %v2975 = vpop.xlane.xlu0 %2974
  %v2976 = vsel %vm2963, %v2820, -inf
  %2977 = vmax.xlane.f32.xlu0 %v2976
  %v2978 = vpop.xlane.xlu0 %2977
  %v2979 = vsel %vm2963, %v2866, -inf
  %2980 = vmax.xlane.f32.xlu0 %v2979
  %v2981 = vpop.xlane.xlu0 %2980
  %v2982 = vsel %vm2963, %v2912, -inf
  %2983 = vmax.xlane.f32.xlu0 %v2982
  %v2984 = vpop.xlane.xlu0 %2983
  %v2985 = vsel %vm2963, %v2958, -inf
  %2986 = vmax.xlane.f32.xlu0 %v2985
  %v2987 = vpop.xlane.xlu0 %2986
  %v2988 = vsub.f32 %v2636, %v2966
  %v2989 = vsub.f32 %v2682, %v2969
  %v2990 = vsub.f32 %v2728, %v2972
  %v2991 = vsub.f32 %v2774, %v2975
  %v2992 = vsub.f32 %v2820, %v2978
  %v2993 = vsub.f32 %v2866, %v2981
  %v2994 = vsub.f32 %v2912, %v2984
  %v2995 = vsub.f32 %v2958, %v2987
  %v2996 = vmul.f32 %v2988, 1.442695
  %v2997 = vpow.pop %v2996
  %v2998 = vmul.f32 %v2989, 1.442695
  %v2999 = vpow.pop %v2998
  %v3000 = vmul.f32 %v2990, 1.442695
  %v3001 = vpow.pop %v3000
  %v3002 = vmul.f32 %v2991, 1.442695
  %v3003 = vpow.pop %v3002
  %v3004 = vmul.f32 %v2992, 1.442695
  %v3005 = vpow.pop %v3004
  %v3006 = vmul.f32 %v2993, 1.442695
  %v3007 = vpow.pop %v3006
  %v3008 = vmul.f32 %v2994, 1.442695
  %v3009 = vpow.pop %v3008
  %v3010 = vmul.f32 %v2995, 1.442695
  %v3011 = vpow.pop %v3010
  %v3012 = vsel %vm2963, %v2997, 0.0
  %3013 = vadd.xlane.f32.xlu0 %v3012
  %v3014 = vpop.xlane.xlu0 %3013
  %v3015 = vsel %vm2963, %v2999, 0.0
  %3016 = vadd.xlane.f32.xlu0 %v3015
  %v3017 = vpop.xlane.xlu0 %3016
  %v3018 = vsel %vm2963, %v3001, 0.0
  %3019 = vadd.xlane.f32.xlu0 %v3018
  %v3020 = vpop.xlane.xlu0 %3019
  %v3021 = vsel %vm2963, %v3003, 0.0
  %3022 = vadd.xlane.f32.xlu0 %v3021
  %v3023 = vpop.xlane.xlu0 %3022
  %v3024 = vsel %vm2963, %v3005, 0.0
  %3025 = vadd.xlane.f32.xlu0 %v3024
  %v3026 = vpop.xlane.xlu0 %3025
  %v3027 = vsel %vm2963, %v3007, 0.0
  %3028 = vadd.xlane.f32.xlu0 %v3027
  %v3029 = vpop.xlane.xlu0 %3028
  %v3030 = vsel %vm2963, %v3009, 0.0
  %3031 = vadd.xlane.f32.xlu0 %v3030
  %v3032 = vpop.xlane.xlu0 %3031
  %v3033 = vsel %vm2963, %v3011, 0.0
  %3034 = vadd.xlane.f32.xlu0 %v3033
  %v3035 = vpop.xlane.xlu0 %3034
  %v3036 = vrcp.pop %v3014
  %v3037 = vrcp.pop %v3017
  %v3038 = vrcp.pop %v3020
  %v3039 = vrcp.pop %v3023
  %v3040 = vrcp.pop %v3026
  %v3041 = vrcp.pop %v3029
  %v3042 = vrcp.pop %v3032
  %v3043 = vrcp.pop %v3035
  %v3044 = vmul.f32 %v2997, %v3036
  %v3045 = vmul.f32 %v2999, %v3037
  %v3046 = vmul.f32 %v3001, %v3038
  %v3047 = vmul.f32 %v3003, %v3039
  %v3048 = vmul.f32 %v3005, %v3040
  %v3049 = vmul.f32 %v3007, %v3041
  %v3050 = vmul.f32 %v3009, %v3042
  %v3051 = vmul.f32 %v3011, %v3043
  %v3052 = vpack.c.bf16 %v3044, %v3044
  %v3053 = vpack.c.bf16 %v3045, %v3045
  %v3054 = vpack.c.bf16 %v3046, %v3046
  %v3055 = vpack.c.bf16 %v3047, %v3047
  %v3056 = vpack.c.bf16 %v3048, %v3048
  %v3057 = vpack.c.bf16 %v3049, %v3049
  %v3058 = vpack.c.bf16 %v3050, %v3050
  %v3059 = vpack.c.bf16 %v3051, %v3051
  %v3061 = vsel %vm2963, %v3052, 0
  %vm3063 = vcmask 1043456
  %v3065 = vsel %vm3063, %v2587, 0
  %3067 = vmatprep.subr.bf16.mxu0 0
  %3068 = vmatpush1.bf16.msra.mxu0 %v3065
  %3069 = vmatprep.subr.bf16.mxu0 0
  %3070 = vmatpush1.bf16.msra.mxu0 0
  %3071 = vmatprep.subr.bf16.mxu0 0
  %3072 = vmatpush1.bf16.msra.mxu0 0
  %3073 = vmatprep.subr.bf16.mxu0 0
  %3074 = vmatpush1.bf16.msra.mxu0 0
  %3075 = vmatprep.subr.bf16.mxu0 0
  %3076 = vmatpush1.bf16.msra.mxu0 0
  %3077 = vmatprep.subr.bf16.mxu0 0
  %3078 = vmatpush1.bf16.msra.mxu0 0
  %3079 = vmatprep.subr.bf16.mxu0 0
  %3080 = vmatpush1.bf16.msra.mxu0 0
  %3081 = vmatprep.subr.bf16.mxu0 0
  %3082 = vmatpush1.bf16.msra.mxu0 0
  %3083 = vmatprep.subr.bf16.mxu0 0
  %3084 = vmatpush1.bf16.msra.mxu0 0
  %3085 = vmatprep.subr.bf16.mxu0 0
  %3086 = vmatpush1.bf16.msra.mxu0 0
  %3087 = vmatprep.subr.bf16.mxu0 0
  %3088 = vmatpush1.bf16.msra.mxu0 0
  %3089 = vmatprep.subr.bf16.mxu0 0
  %3090 = vmatpush1.bf16.msra.mxu0 0
  %3091 = vmatprep.subr.bf16.mxu0 0
  %3092 = vmatpush1.bf16.msra.mxu0 0
  %3093 = vmatprep.subr.bf16.mxu0 0
  %3094 = vmatpush1.bf16.msra.mxu0 0
  %3095 = vmatprep.subr.bf16.mxu0 0
  %3096 = vmatpush1.bf16.msra.mxu0 0
  %3097 = vmatprep.subr.bf16.mxu0 0
  %3098 = vmatpush1.bf16.msra.mxu0 0
  %3099 = vmatprep.mubr.bf16.mxu0 0
  %3100 = vmatmul.mubr.bf16.gmra.mrb[0].mxu0 %v3061
  %v3101 = vpop.f32.mrb[0].mxu0
  %v3102 = vadd.f32 0.0, %v3101
  %v3103 = vpop.f32.mrb[0].mxu0
  %v3104 = vpop.f32.mrb[0].mxu0
  %v3105 = vpop.f32.mrb[0].mxu0
  %3106 = vdwg.mxu0
  %v3108 = vsel %vm2963, %v3053, 0
  %v3111 = vsel %vm3063, %v2588, 0
  %3113 = vmatprep.subr.bf16.mxu0 0
  %3114 = vmatpush1.bf16.msra.mxu0 %v3111
  %3115 = vmatprep.subr.bf16.mxu0 0
  %3116 = vmatpush1.bf16.msra.mxu0 0
  %3117 = vmatprep.subr.bf16.mxu0 0
  %3118 = vmatpush1.bf16.msra.mxu0 0
  %3119 = vmatprep.subr.bf16.mxu0 0
  %3120 = vmatpush1.bf16.msra.mxu0 0
  %3121 = vmatprep.subr.bf16.mxu0 0
  %3122 = vmatpush1.bf16.msra.mxu0 0
  %3123 = vmatprep.subr.bf16.mxu0 0
  %3124 = vmatpush1.bf16.msra.mxu0 0
  %3125 = vmatprep.subr.bf16.mxu0 0
  %3126 = vmatpush1.bf16.msra.mxu0 0
  %3127 = vmatprep.subr.bf16.mxu0 0
  %3128 = vmatpush1.bf16.msra.mxu0 0
  %3129 = vmatprep.subr.bf16.mxu0 0
  %3130 = vmatpush1.bf16.msra.mxu0 0
  %3131 = vmatprep.subr.bf16.mxu0 0
  %3132 = vmatpush1.bf16.msra.mxu0 0
  %3133 = vmatprep.subr.bf16.mxu0 0
  %3134 = vmatpush1.bf16.msra.mxu0 0
  %3135 = vmatprep.subr.bf16.mxu0 0
  %3136 = vmatpush1.bf16.msra.mxu0 0
  %3137 = vmatprep.subr.bf16.mxu0 0
  %3138 = vmatpush1.bf16.msra.mxu0 0
  %3139 = vmatprep.subr.bf16.mxu0 0
  %3140 = vmatpush1.bf16.msra.mxu0 0
  %3141 = vmatprep.subr.bf16.mxu0 0
  %3142 = vmatpush1.bf16.msra.mxu0 0
  %3143 = vmatprep.subr.bf16.mxu0 0
  %3144 = vmatpush1.bf16.msra.mxu0 0
  %3145 = vmatprep.mubr.bf16.mxu0 0
  %3146 = vmatmul.mubr.bf16.gmra.mrb[0].mxu0 %v3108
  %v3147 = vpop.f32.mrb[0].mxu0
  %v3148 = vadd.f32 0.0, %v3147
  %v3149 = vpop.f32.mrb[0].mxu0
  %v3150 = vpop.f32.mrb[0].mxu0
  %v3151 = vpop.f32.mrb[0].mxu0
  %3152 = vdwg.mxu0
  %v3154 = vsel %vm2963, %v3054, 0
  %v3157 = vsel %vm3063, %v2589, 0
  %3159 = vmatprep.subr.bf16.mxu0 0
  %3160 = vmatpush1.bf16.msra.mxu0 %v3157
  %3161 = vmatprep.subr.bf16.mxu0 0
  %3162 = vmatpush1.bf16.msra.mxu0 0
  %3163 = vmatprep.subr.bf16.mxu0 0
  %3164 = vmatpush1.bf16.msra.mxu0 0
  %3165 = vmatprep.subr.bf16.mxu0 0
  %3166 = vmatpush1.bf16.msra.mxu0 0
  %3167 = vmatprep.subr.bf16.mxu0 0
  %3168 = vmatpush1.bf16.msra.mxu0 0
  %3169 = vmatprep.subr.bf16.mxu0 0
  %3170 = vmatpush1.bf16.msra.mxu0 0
  %3171 = vmatprep.subr.bf16.mxu0 0
  %3172 = vmatpush1.bf16.msra.mxu0 0
  %3173 = vmatprep.subr.bf16.mxu0 0
  %3174 = vmatpush1.bf16.msra.mxu0 0
  %3175 = vmatprep.subr.bf16.mxu0 0
  %3176 = vmatpush1.bf16.msra.mxu0 0
  %3177 = vmatprep.subr.bf16.mxu0 0
  %3178 = vmatpush1.bf16.msra.mxu0 0
  %3179 = vmatprep.subr.bf16.mxu0 0
  %3180 = vmatpush1.bf16.msra.mxu0 0
  %3181 = vmatprep.subr.bf16.mxu0 0
  %3182 = vmatpush1.bf16.msra.mxu0 0
  %3183 = vmatprep.subr.bf16.mxu0 0
  %3184 = vmatpush1.bf16.msra.mxu0 0
  %3185 = vmatprep.subr.bf16.mxu0 0
  %3186 = vmatpush1.bf16.msra.mxu0 0
  %3187 = vmatprep.subr.bf16.mxu0 0
  %3188 = vmatpush1.bf16.msra.mxu0 0
  %3189 = vmatprep.subr.bf16.mxu0 0
  %3190 = vmatpush1.bf16.msra.mxu0 0
  %3191 = vmatprep.mubr.bf16.mxu0 0
  %3192 = vmatmul.mubr.bf16.gmra.mrb[0].mxu0 %v3154
  %v3193 = vpop.f32.mrb[0].mxu0
  %v3194 = vadd.f32 0.0, %v3193
  %v3195 = vpop.f32.mrb[0].mxu0
  %v3196 = vpop.f32.mrb[0].mxu0
  %v3197 = vpop.f32.mrb[0].mxu0
  %3198 = vdwg.mxu0
  %v3200 = vsel %vm2963, %v3055, 0
  %v3203 = vsel %vm3063, %v2590, 0
  %3205 = vmatprep.subr.bf16.mxu0 0
  %3206 = vmatpush1.bf16.msra.mxu0 %v3203
  %3207 = vmatprep.subr.bf16.mxu0 0
  %3208 = vmatpush1.bf16.msra.mxu0 0
  %3209 = vmatprep.subr.bf16.mxu0 0
  %3210 = vmatpush1.bf16.msra.mxu0 0
  %3211 = vmatprep.subr.bf16.mxu0 0
  %3212 = vmatpush1.bf16.msra.mxu0 0
  %3213 = vmatprep.subr.bf16.mxu0 0
  %3214 = vmatpush1.bf16.msra.mxu0 0
  %3215 = vmatprep.subr.bf16.mxu0 0
  %3216 = vmatpush1.bf16.msra.mxu0 0
  %3217 = vmatprep.subr.bf16.mxu0 0
  %3218 = vmatpush1.bf16.msra.mxu0 0
  %3219 = vmatprep.subr.bf16.mxu0 0
  %3220 = vmatpush1.bf16.msra.mxu0 0
  %3221 = vmatprep.subr.bf16.mxu0 0
  %3222 = vmatpush1.bf16.msra.mxu0 0
  %3223 = vmatprep.subr.bf16.mxu0 0
  %3224 = vmatpush1.bf16.msra.mxu0 0
  %3225 = vmatprep.subr.bf16.mxu0 0
  %3226 = vmatpush1.bf16.msra.mxu0 0
  %3227 = vmatprep.subr.bf16.mxu0 0
  %3228 = vmatpush1.bf16.msra.mxu0 0
  %3229 = vmatprep.subr.bf16.mxu0 0
  %3230 = vmatpush1.bf16.msra.mxu0 0
  %3231 = vmatprep.subr.bf16.mxu0 0
  %3232 = vmatpush1.bf16.msra.mxu0 0
  %3233 = vmatprep.subr.bf16.mxu0 0
  %3234 = vmatpush1.bf16.msra.mxu0 0
  %3235 = vmatprep.subr.bf16.mxu0 0
  %3236 = vmatpush1.bf16.msra.mxu0 0
  %3237 = vmatprep.mubr.bf16.mxu0 0
  %3238 = vmatmul.mubr.bf16.gmra.mrb[0].mxu0 %v3200
  %v3239 = vpop.f32.mrb[0].mxu0
  %v3240 = vadd.f32 0.0, %v3239
  %v3241 = vpop.f32.mrb[0].mxu0
  %v3242 = vpop.f32.mrb[0].mxu0
  %v3243 = vpop.f32.mrb[0].mxu0
  %3244 = vdwg.mxu0
  %v3246 = vsel %vm2963, %v3056, 0
  %v3249 = vsel %vm3063, %v2591, 0
  %3251 = vmatprep.subr.bf16.mxu0 0
  %3252 = vmatpush1.bf16.msra.mxu0 %v3249
  %3253 = vmatprep.subr.bf16.mxu0 0
  %3254 = vmatpush1.bf16.msra.mxu0 0
  %3255 = vmatprep.subr.bf16.mxu0 0
  %3256 = vmatpush1.bf16.msra.mxu0 0
  %3257 = vmatprep.subr.bf16.mxu0 0
  %3258 = vmatpush1.bf16.msra.mxu0 0
  %3259 = vmatprep.subr.bf16.mxu0 0
  %3260 = vmatpush1.bf16.msra.mxu0 0
  %3261 = vmatprep.subr.bf16.mxu0 0
  %3262 = vmatpush1.bf16.msra.mxu0 0
  %3263 = vmatprep.subr.bf16.mxu0 0
  %3264 = vmatpush1.bf16.msra.mxu0 0
  %3265 = vmatprep.subr.bf16.mxu0 0
  %3266 = vmatpush1.bf16.msra.mxu0 0
  %3267 = vmatprep.subr.bf16.mxu0 0
  %3268 = vmatpush1.bf16.msra.mxu0 0
  %3269 = vmatprep.subr.bf16.mxu0 0
  %3270 = vmatpush1.bf16.msra.mxu0 0
  %3271 = vmatprep.subr.bf16.mxu0 0
  %3272 = vmatpush1.bf16.msra.mxu0 0
  %3273 = vmatprep.subr.bf16.mxu0 0
  %3274 = vmatpush1.bf16.msra.mxu0 0
  %3275 = vmatprep.subr.bf16.mxu0 0
  %3276 = vmatpush1.bf16.msra.mxu0 0
  %3277 = vmatprep.subr.bf16.mxu0 0
  %3278 = vmatpush1.bf16.msra.mxu0 0
  %3279 = vmatprep.subr.bf16.mxu0 0
  %3280 = vmatpush1.bf16.msra.mxu0 0
  %3281 = vmatprep.subr.bf16.mxu0 0
  %3282 = vmatpush1.bf16.msra.mxu0 0
  %3283 = vmatprep.mubr.bf16.mxu0 0
  %3284 = vmatmul.mubr.bf16.gmra.mrb[0].mxu0 %v3246
  %v3285 = vpop.f32.mrb[0].mxu0
  %v3286 = vadd.f32 0.0, %v3285
  %v3287 = vpop.f32.mrb[0].mxu0
  %v3288 = vpop.f32.mrb[0].mxu0
  %v3289 = vpop.f32.mrb[0].mxu0
  %3290 = vdwg.mxu0
  %v3292 = vsel %vm2963, %v3057, 0
  %v3295 = vsel %vm3063, %v2592, 0
  %3297 = vmatprep.subr.bf16.mxu0 0
  %3298 = vmatpush1.bf16.msra.mxu0 %v3295
  %3299 = vmatprep.subr.bf16.mxu0 0
  %3300 = vmatpush1.bf16.msra.mxu0 0
  %3301 = vmatprep.subr.bf16.mxu0 0
  %3302 = vmatpush1.bf16.msra.mxu0 0
  %3303 = vmatprep.subr.bf16.mxu0 0
  %3304 = vmatpush1.bf16.msra.mxu0 0
  %3305 = vmatprep.subr.bf16.mxu0 0
  %3306 = vmatpush1.bf16.msra.mxu0 0
  %3307 = vmatprep.subr.bf16.mxu0 0
  %3308 = vmatpush1.bf16.msra.mxu0 0
  %3309 = vmatprep.subr.bf16.mxu0 0
  %3310 = vmatpush1.bf16.msra.mxu0 0
  %3311 = vmatprep.subr.bf16.mxu0 0
  %3312 = vmatpush1.bf16.msra.mxu0 0
  %3313 = vmatprep.subr.bf16.mxu0 0
  %3314 = vmatpush1.bf16.msra.mxu0 0
  %3315 = vmatprep.subr.bf16.mxu0 0
  %3316 = vmatpush1.bf16.msra.mxu0 0
  %3317 = vmatprep.subr.bf16.mxu0 0
  %3318 = vmatpush1.bf16.msra.mxu0 0
  %3319 = vmatprep.subr.bf16.mxu0 0
  %3320 = vmatpush1.bf16.msra.mxu0 0
  %3321 = vmatprep.subr.bf16.mxu0 0
  %3322 = vmatpush1.bf16.msra.mxu0 0
  %3323 = vmatprep.subr.bf16.mxu0 0
  %3324 = vmatpush1.bf16.msra.mxu0 0
  %3325 = vmatprep.subr.bf16.mxu0 0
  %3326 = vmatpush1.bf16.msra.mxu0 0
  %3327 = vmatprep.subr.bf16.mxu0 0
  %3328 = vmatpush1.bf16.msra.mxu0 0
  %3329 = vmatprep.mubr.bf16.mxu0 0
  %3330 = vmatmul.mubr.bf16.gmra.mrb[0].mxu0 %v3292
  %v3331 = vpop.f32.mrb[0].mxu0
  %v3332 = vadd.f32 0.0, %v3331
  %v3333 = vpop.f32.mrb[0].mxu0
  %v3334 = vpop.f32.mrb[0].mxu0
  %v3335 = vpop.f32.mrb[0].mxu0
  %3336 = vdwg.mxu0
  %v3338 = vsel %vm2963, %v3058, 0
  %v3341 = vsel %vm3063, %v2593, 0
  %3343 = vmatprep.subr.bf16.mxu0 0
  %3344 = vmatpush1.bf16.msra.mxu0 %v3341
  %3345 = vmatprep.subr.bf16.mxu0 0
  %3346 = vmatpush1.bf16.msra.mxu0 0
  %3347 = vmatprep.subr.bf16.mxu0 0
  %3348 = vmatpush1.bf16.msra.mxu0 0
  %3349 = vmatprep.subr.bf16.mxu0 0
  %3350 = vmatpush1.bf16.msra.mxu0 0
  %3351 = vmatprep.subr.bf16.mxu0 0
  %3352 = vmatpush1.bf16.msra.mxu0 0
  %3353 = vmatprep.subr.bf16.mxu0 0
  %3354 = vmatpush1.bf16.msra.mxu0 0
  %3355 = vmatprep.subr.bf16.mxu0 0
  %3356 = vmatpush1.bf16.msra.mxu0 0
  %3357 = vmatprep.subr.bf16.mxu0 0
  %3358 = vmatpush1.bf16.msra.mxu0 0
  %3359 = vmatprep.subr.bf16.mxu0 0
  %3360 = vmatpush1.bf16.msra.mxu0 0
  %3361 = vmatprep.subr.bf16.mxu0 0
  %3362 = vmatpush1.bf16.msra.mxu0 0
  %3363 = vmatprep.subr.bf16.mxu0 0
  %3364 = vmatpush1.bf16.msra.mxu0 0
  %3365 = vmatprep.subr.bf16.mxu0 0
  %3366 = vmatpush1.bf16.msra.mxu0 0
  %3367 = vmatprep.subr.bf16.mxu0 0
  %3368 = vmatpush1.bf16.msra.mxu0 0
  %3369 = vmatprep.subr.bf16.mxu0 0
  %3370 = vmatpush1.bf16.msra.mxu0 0
  %3371 = vmatprep.subr.bf16.mxu0 0
  %3372 = vmatpush1.bf16.msra.mxu0 0
  %3373 = vmatprep.subr.bf16.mxu0 0
  %3374 = vmatpush1.bf16.msra.mxu0 0
  %3375 = vmatprep.mubr.bf16.mxu0 0
  %3376 = vmatmul.mubr.bf16.gmra.mrb[0].mxu0 %v3338
  %v3377 = vpop.f32.mrb[0].mxu0
  %v3378 = vadd.f32 0.0, %v3377
  %v3379 = vpop.f32.mrb[0].mxu0
  %v3380 = vpop.f32.mrb[0].mxu0
  %v3381 = vpop.f32.mrb[0].mxu0
  %3382 = vdwg.mxu0
  %v3384 = vsel %vm2963, %v3059, 0
  %v3387 = vsel %vm3063, %v2594, 0
  %3389 = vmatprep.subr.bf16.mxu0 0
  %3390 = vmatpush1.bf16.msra.mxu0 %v3387
  %3391 = vmatprep.subr.bf16.mxu0 0
  %3392 = vmatpush1.bf16.msra.mxu0 0
  %3393 = vmatprep.subr.bf16.mxu0 0
  %3394 = vmatpush1.bf16.msra.mxu0 0
  %3395 = vmatprep.subr.bf16.mxu0 0
  %3396 = vmatpush1.bf16.msra.mxu0 0
  %3397 = vmatprep.subr.bf16.mxu0 0
  %3398 = vmatpush1.bf16.msra.mxu0 0
  %3399 = vmatprep.subr.bf16.mxu0 0
  %3400 = vmatpush1.bf16.msra.mxu0 0
  %3401 = vmatprep.subr.bf16.mxu0 0
  %3402 = vmatpush1.bf16.msra.mxu0 0
  %3403 = vmatprep.subr.bf16.mxu0 0
  %3404 = vmatpush1.bf16.msra.mxu0 0
  %3405 = vmatprep.subr.bf16.mxu0 0
  %3406 = vmatpush1.bf16.msra.mxu0 0
  %3407 = vmatprep.subr.bf16.mxu0 0
  %3408 = vmatpush1.bf16.msra.mxu0 0
  %3409 = vmatprep.subr.bf16.mxu0 0
  %3410 = vmatpush1.bf16.msra.mxu0 0
  %3411 = vmatprep.subr.bf16.mxu0 0
  %3412 = vmatpush1.bf16.msra.mxu0 0
  %3413 = vmatprep.subr.bf16.mxu0 0
  %3414 = vmatpush1.bf16.msra.mxu0 0
  %3415 = vmatprep.subr.bf16.mxu0 0
  %3416 = vmatpush1.bf16.msra.mxu0 0
  %3417 = vmatprep.subr.bf16.mxu0 0
  %3418 = vmatpush1.bf16.msra.mxu0 0
  %3419 = vmatprep.subr.bf16.mxu0 0
  %3420 = vmatpush1.bf16.msra.mxu0 0
  %3421 = vmatprep.mubr.bf16.mxu0 0
  %3422 = vmatmul.mubr.bf16.gmra.mrb[0].mxu0 %v3384
  %v3423 = vpop.f32.mrb[0].mxu0
  %v3424 = vadd.f32 0.0, %v3423
  %v3425 = vpop.f32.mrb[0].mxu0
  %v3426 = vpop.f32.mrb[0].mxu0
  %v3427 = vpop.f32.mrb[0].mxu0
  %3428 = vdwg.mxu0
  %v3429 = vpack.c.bf16 %v3148, %v3102
  %v3430 = vpack.c.bf16 %v3240, %v3194
  %v3431 = vpack.c.bf16 %v3332, %v3286
  %v3432 = vpack.c.bf16 %v3424, %v3378
  %v3433 = vlaneseq
  %v3434 = vshrl.u32 %v3433, 7
  %v3435 = vsub.s32 0, %v3434
  %v3436 = vrot.slane %v80, %v3435
  %v3441 = vunpack.c.l.b16 %v57
  %v3442 = vunpack.c.l.b16 %v58
  %v3443 = vunpack.c.l.b16 %v59
  %v3444 = vunpack.c.l.b16 %v60
  %v3445 = vpack.c.b16 %v3442, %v3441
  %v3446 = vpack.c.b16 %v3444, %v3443
  %v3450 = vsel %vm356, %v3429, 0
  %v3453 = vsel %vm356, %v3430, 0
  %v3456 = vsel %vm356, %v3431, 0
  %v3459 = vsel %vm356, %v3432, 0
  %3461 = vmatprep.subr.bf16.mxu0 0
  %3462 = vmatpush1.bf16.msra.mxu0 %v3445
  %3463 = vmatprep.subr.bf16.mxu0 0
  %3464 = vmatpush1.bf16.msra.mxu0 %v3446
  %3465 = vmatprep.subr.bf16.mxu0 0
  %3466 = vmatpush1.bf16.msra.mxu0 0
  %3467 = vmatprep.subr.bf16.mxu0 0
  %3468 = vmatpush1.bf16.msra.mxu0 0
  %3469 = vmatprep.subr.bf16.mxu0 0
  %3470 = vmatpush1.bf16.msra.mxu0 0
  %3471 = vmatprep.subr.bf16.mxu0 0
  %3472 = vmatpush1.bf16.msra.mxu0 0
  %3473 = vmatprep.subr.bf16.mxu0 0
  %3474 = vmatpush1.bf16.msra.mxu0 0
  %3475 = vmatprep.subr.bf16.mxu0 0
  %3476 = vmatpush1.bf16.msra.mxu0 0
  %3477 = vmatprep.subr.bf16.mxu0 0
  %3478 = vmatpush1.bf16.msra.mxu0 0
  %3479 = vmatprep.subr.bf16.mxu0 0
  %3480 = vmatpush1.bf16.msra.mxu0 0
  %3481 = vmatprep.subr.bf16.mxu0 0
  %3482 = vmatpush1.bf16.msra.mxu0 0
  %3483 = vmatprep.subr.bf16.mxu0 0
  %3484 = vmatpush1.bf16.msra.mxu0 0
  %3485 = vmatprep.subr.bf16.mxu0 0
  %3486 = vmatpush1.bf16.msra.mxu0 0
  %3487 = vmatprep.subr.bf16.mxu0 0
  %3488 = vmatpush1.bf16.msra.mxu0 0
  %3489 = vmatprep.subr.bf16.mxu0 0
  %3490 = vmatpush1.bf16.msra.mxu0 0
  %3491 = vmatprep.subr.bf16.mxu0 0
  %3492 = vmatpush1.bf16.msra.mxu0 0
  %3493 = vmatprep.mubr.bf16.mxu0 0
  %3494 = vmatmul.mubr.bf16.gmra.mrb[0].mxu0 %v3450
  %v3495 = vpop.f32.mrb[0].mxu0
  %v3496 = vadd.f32 %v3436, %v3495
  %v3497 = vpop.f32.mrb[0].mxu0
  %v3498 = vpop.f32.mrb[0].mxu0
  %v3499 = vadd.f32 %v3436, %v3498
  %v3500 = vpop.f32.mrb[0].mxu0
  %3501 = vmatprep.mubr.bf16.mxu0 0
  %3502 = vmatmul.mubr.bf16.gmra.mrb[0].mxu0 %v3453
  %v3503 = vpop.f32.mrb[0].mxu0
  %v3504 = vadd.f32 %v3436, %v3503
  %v3505 = vpop.f32.mrb[0].mxu0
  %v3506 = vpop.f32.mrb[0].mxu0
  %v3507 = vadd.f32 %v3436, %v3506
  %v3508 = vpop.f32.mrb[0].mxu0
  %3509 = vmatprep.mubr.bf16.mxu0 0
  %3510 = vmatmul.mubr.bf16.gmra.mrb[0].mxu0 %v3456
  %v3511 = vpop.f32.mrb[0].mxu0
  %v3512 = vadd.f32 %v3436, %v3511
  %v3513 = vpop.f32.mrb[0].mxu0
  %v3514 = vpop.f32.mrb[0].mxu0
  %v3515 = vadd.f32 %v3436, %v3514
  %v3516 = vpop.f32.mrb[0].mxu0
  %3517 = vmatprep.mubr.bf16.mxu0 0
  %3518 = vmatmul.mubr.bf16.gmra.mrb[0].mxu0 %v3459
  %v3519 = vpop.f32.mrb[0].mxu0
  %v3520 = vadd.f32 %v3436, %v3519
  %v3521 = vpop.f32.mrb[0].mxu0
  %v3522 = vpop.f32.mrb[0].mxu0
  %v3523 = vadd.f32 %v3436, %v3522
  %v3524 = vpop.f32.mrb[0].mxu0
  %3525 = vdwg.mxu0
  %v3526 = vadd.f32 %v2168, %v3496
  %v3527 = vadd.f32 %v2169, %v3499
  %v3528 = vadd.f32 %v2170, %v3504
  %v3529 = vadd.f32 %v2171, %v3507
  %v3530 = vadd.f32 %v2172, %v3512
  %v3531 = vadd.f32 %v2173, %v3515
  %v3532 = vadd.f32 %v2174, %v3520
  %v3533 = vadd.f32 %v2175, %v3523
  %v3534 = vsel %vm356, %v3526, 0.0
  %3535 = vadd.xlane.f32.xlu0 %v3534
  %v3536 = vpop.xlane.xlu0 %3535
  %v3537 = vsel %vm356, %v3527, 0.0
  %3538 = vadd.xlane.f32.xlu0 %v3537
  %v3539 = vpop.xlane.xlu0 %3538
  %v3540 = vsel %vm356, %v3528, 0.0
  %3541 = vadd.xlane.f32.xlu0 %v3540
  %v3542 = vpop.xlane.xlu0 %3541
  %v3543 = vsel %vm356, %v3529, 0.0
  %3544 = vadd.xlane.f32.xlu0 %v3543
  %v3545 = vpop.xlane.xlu0 %3544
  %v3546 = vsel %vm356, %v3530, 0.0
  %3547 = vadd.xlane.f32.xlu0 %v3546
  %v3548 = vpop.xlane.xlu0 %3547
  %v3549 = vsel %vm356, %v3531, 0.0
  %3550 = vadd.xlane.f32.xlu0 %v3549
  %v3551 = vpop.xlane.xlu0 %3550
  %v3552 = vsel %vm356, %v3532, 0.0
  %3553 = vadd.xlane.f32.xlu0 %v3552
  %v3554 = vpop.xlane.xlu0 %3553
  %v3555 = vsel %vm356, %v3533, 0.0
  %3556 = vadd.xlane.f32.xlu0 %v3555
  %v3557 = vpop.xlane.xlu0 %3556
  %v3558 = vmul.f32 %v3536, %v381
  %v3559 = vmul.f32 %v3539, %v381
  %v3560 = vmul.f32 %v3542, %v381
  %v3561 = vmul.f32 %v3545, %v381
  %v3562 = vmul.f32 %v3548, %v381
  %v3563 = vmul.f32 %v3551, %v381
  %v3564 = vmul.f32 %v3554, %v381
  %v3565 = vmul.f32 %v3557, %v381
  %v3566 = vsub.f32 %v3526, %v3558
  %v3567 = vsub.f32 %v3527, %v3559
  %v3568 = vsub.f32 %v3528, %v3560
  %v3569 = vsub.f32 %v3529, %v3561
  %v3570 = vsub.f32 %v3530, %v3562
  %v3571 = vsub.f32 %v3531, %v3563
  %v3572 = vsub.f32 %v3532, %v3564
  %v3573 = vsub.f32 %v3533, %v3565
  %v3574 = vmul.f32 %v3566, %v3566
  %v3575 = vmul.f32 %v3567, %v3567
  %v3576 = vmul.f32 %v3568, %v3568
  %v3577 = vmul.f32 %v3569, %v3569
  %v3578 = vmul.f32 %v3570, %v3570
  %v3579 = vmul.f32 %v3571, %v3571
  %v3580 = vmul.f32 %v3572, %v3572
  %v3581 = vmul.f32 %v3573, %v3573
  %v3582 = vsel %vm356, %v3574, 0.0
  %3583 = vadd.xlane.f32.xlu0 %v3582
  %v3584 = vpop.xlane.xlu0 %3583
  %v3585 = vsel %vm356, %v3575, 0.0
  %3586 = vadd.xlane.f32.xlu0 %v3585
  %v3587 = vpop.xlane.xlu0 %3586
  %v3588 = vsel %vm356, %v3576, 0.0
  %3589 = vadd.xlane.f32.xlu0 %v3588
  %v3590 = vpop.xlane.xlu0 %3589
  %v3591 = vsel %vm356, %v3577, 0.0
  %3592 = vadd.xlane.f32.xlu0 %v3591
  %v3593 = vpop.xlane.xlu0 %3592
  %v3594 = vsel %vm356, %v3578, 0.0
  %3595 = vadd.xlane.f32.xlu0 %v3594
  %v3596 = vpop.xlane.xlu0 %3595
  %v3597 = vsel %vm356, %v3579, 0.0
  %3598 = vadd.xlane.f32.xlu0 %v3597
  %v3599 = vpop.xlane.xlu0 %3598
  %v3600 = vsel %vm356, %v3580, 0.0
  %3601 = vadd.xlane.f32.xlu0 %v3600
  %v3602 = vpop.xlane.xlu0 %3601
  %v3603 = vsel %vm356, %v3581, 0.0
  %3604 = vadd.xlane.f32.xlu0 %v3603
  %v3605 = vpop.xlane.xlu0 %3604
  %v3606 = vmul.f32 %v3584, %v381
  %v3607 = vmul.f32 %v3587, %v381
  %v3608 = vmul.f32 %v3590, %v381
  %v3609 = vmul.f32 %v3593, %v381
  %v3610 = vmul.f32 %v3596, %v381
  %v3611 = vmul.f32 %v3599, %v381
  %v3612 = vmul.f32 %v3602, %v381
  %v3613 = vmul.f32 %v3605, %v381
  %v3614 = vadd.f32 %v3606, 1e-05
  %v3615 = vadd.f32 %v3607, 1e-05
  %v3616 = vadd.f32 %v3608, 1e-05
  %v3617 = vadd.f32 %v3609, 1e-05
  %v3618 = vadd.f32 %v3610, 1e-05
  %v3619 = vadd.f32 %v3611, 1e-05
  %v3620 = vadd.f32 %v3612, 1e-05
  %v3621 = vadd.f32 %v3613, 1e-05
  %v3622 = vrsqrt.pop %v3614
  %v3623 = vrsqrt.pop %v3615
  %v3624 = vrsqrt.pop %v3616
  %v3625 = vrsqrt.pop %v3617
  %v3626 = vrsqrt.pop %v3618
  %v3627 = vrsqrt.pop %v3619
  %v3628 = vrsqrt.pop %v3620
  %v3629 = vrsqrt.pop %v3621
  %v3630 = vmul.f32 %v3566, %v3622
  %v3631 = vmul.f32 %v3567, %v3623
  %v3632 = vmul.f32 %v3568, %v3624
  %v3633 = vmul.f32 %v3569, %v3625
  %v3634 = vmul.f32 %v3570, %v3626
  %v3635 = vmul.f32 %v3571, %v3627
  %v3636 = vmul.f32 %v3572, %v3628
  %v3637 = vmul.f32 %v3573, %v3629
  %v3638 = vlaneseq
  %v3639 = vshrl.u32 %v3638, 7
  %v3640 = vsub.s32 3, %v3639
  %v3641 = vrot.slane %v79, %v3640
  %v3642 = vmul.f32 %v3630, %v3641
  %v3643 = vmul.f32 %v3631, %v3641
  %v3644 = vmul.f32 %v3632, %v3641
  %v3645 = vmul.f32 %v3633, %v3641
  %v3646 = vmul.f32 %v3634, %v3641
  %v3647 = vmul.f32 %v3635, %v3641
  %v3648 = vmul.f32 %v3636, %v3641
  %v3649 = vmul.f32 %v3637, %v3641
  %v3650 = vlaneseq
  %v3651 = vshrl.u32 %v3650, 7
  %v3652 = vsub.s32 4, %v3651
  %v3653 = vrot.slane %v79, %v3652
  %v3654 = vadd.f32 %v3642, %v3653
  %v3655 = vadd.f32 %v3643, %v3653
  %v3656 = vadd.f32 %v3644, %v3653
  %v3657 = vadd.f32 %v3645, %v3653
  %v3658 = vadd.f32 %v3646, %v3653
  %v3659 = vadd.f32 %v3647, %v3653
  %v3660 = vadd.f32 %v3648, %v3653
  %v3661 = vadd.f32 %v3649, %v3653
  %v3662 = vpack.c.bf16 %v3655, %v3654
  %v3663 = vpack.c.bf16 %v3657, %v3656
  %v3664 = vpack.c.bf16 %v3659, %v3658
  %v3665 = vpack.c.bf16 %v3661, %v3660
  %v3666 = vlaneseq
  %v3667 = vshrl.u32 %v3666, 7
  %v3668 = vsub.s32 1, %v3667
  %v3669 = vrot.slane %v81, %v3668
  %v3674 = vunpack.c.l.b16 %v65
  %v3675 = vunpack.c.l.b16 %v66
  %v3676 = vunpack.c.l.b16 %v67
  %v3677 = vunpack.c.l.b16 %v68
  %v3678 = vpack.c.b16 %v3675, %v3674
  %v3679 = vpack.c.b16 %v3677, %v3676
  %v3683 = vsel %vm356, %v3662, 0
  %v3686 = vsel %vm356, %v3663, 0
  %v3689 = vsel %vm356, %v3664, 0
  %v3692 = vsel %vm356, %v3665, 0
  %3694 = vmatprep.subr.bf16.mxu0 0
  %3695 = vmatpush1.bf16.msra.mxu0 %v3678
  %3696 = vmatprep.subr.bf16.mxu0 0
  %3697 = vmatpush1.bf16.msra.mxu0 %v3679
  %3698 = vmatprep.subr.bf16.mxu0 0
  %3699 = vmatpush1.bf16.msra.mxu0 0
  %3700 = vmatprep.subr.bf16.mxu0 0
  %3701 = vmatpush1.bf16.msra.mxu0 0
  %3702 = vmatprep.subr.bf16.mxu0 0
  %3703 = vmatpush1.bf16.msra.mxu0 0
  %3704 = vmatprep.subr.bf16.mxu0 0
  %3705 = vmatpush1.bf16.msra.mxu0 0
  %3706 = vmatprep.subr.bf16.mxu0 0
  %3707 = vmatpush1.bf16.msra.mxu0 0
  %3708 = vmatprep.subr.bf16.mxu0 0
  %3709 = vmatpush1.bf16.msra.mxu0 0
  %3710 = vmatprep.subr.bf16.mxu0 0
  %3711 = vmatpush1.bf16.msra.mxu0 0
  %3712 = vmatprep.subr.bf16.mxu0 0
  %3713 = vmatpush1.bf16.msra.mxu0 0
  %3714 = vmatprep.subr.bf16.mxu0 0
  %3715 = vmatpush1.bf16.msra.mxu0 0
  %3716 = vmatprep.subr.bf16.mxu0 0
  %3717 = vmatpush1.bf16.msra.mxu0 0
  %3718 = vmatprep.subr.bf16.mxu0 0
  %3719 = vmatpush1.bf16.msra.mxu0 0
  %3720 = vmatprep.subr.bf16.mxu0 0
  %3721 = vmatpush1.bf16.msra.mxu0 0
  %3722 = vmatprep.subr.bf16.mxu0 0
  %3723 = vmatpush1.bf16.msra.mxu0 0
  %3724 = vmatprep.subr.bf16.mxu0 0
  %3725 = vmatpush1.bf16.msra.mxu0 0
  %3726 = vmatprep.mubr.bf16.mxu0 0
  %3727 = vmatmul.mubr.bf16.gmra.mrb[0].mxu0 %v3683
  %v3728 = vpop.f32.mrb[0].mxu0
  %v3729 = vadd.f32 %v3669, %v3728
  %v3730 = vpop.f32.mrb[0].mxu0
  %v3731 = vpop.f32.mrb[0].mxu0
  %v3732 = vadd.f32 %v3669, %v3731
  %v3733 = vpop.f32.mrb[0].mxu0
  %3734 = vmatprep.mubr.bf16.mxu0 0
  %3735 = vmatmul.mubr.bf16.gmra.mrb[0].mxu0 %v3686
  %v3736 = vpop.f32.mrb[0].mxu0
  %v3737 = vadd.f32 %v3669, %v3736
  %v3738 = vpop.f32.mrb[0].mxu0
  %v3739 = vpop.f32.mrb[0].mxu0
  %v3740 = vadd.f32 %v3669, %v3739
  %v3741 = vpop.f32.mrb[0].mxu0
  %3742 = vmatprep.mubr.bf16.mxu0 0
  %3743 = vmatmul.mubr.bf16.gmra.mrb[0].mxu0 %v3689
  %v3744 = vpop.f32.mrb[0].mxu0
  %v3745 = vadd.f32 %v3669, %v3744
  %v3746 = vpop.f32.mrb[0].mxu0
  %v3747 = vpop.f32.mrb[0].mxu0
  %v3748 = vadd.f32 %v3669, %v3747
  %v3749 = vpop.f32.mrb[0].mxu0
  %3750 = vmatprep.mubr.bf16.mxu0 0
  %3751 = vmatmul.mubr.bf16.gmra.mrb[0].mxu0 %v3692
  %v3752 = vpop.f32.mrb[0].mxu0
  %v3753 = vadd.f32 %v3669, %v3752
  %v3754 = vpop.f32.mrb[0].mxu0
  %v3755 = vpop.f32.mrb[0].mxu0
  %v3756 = vadd.f32 %v3669, %v3755
  %v3757 = vpop.f32.mrb[0].mxu0
  %3758 = vdwg.mxu0
  %v3759 = vmul.f32 %v3729, %v3729
  %v3760 = vmul.f32 %v3732, %v3732
  %v3761 = vmul.f32 %v3737, %v3737
  %v3762 = vmul.f32 %v3740, %v3740
  %v3763 = vmul.f32 %v3745, %v3745
  %v3764 = vmul.f32 %v3748, %v3748
  %v3765 = vmul.f32 %v3753, %v3753
  %v3766 = vmul.f32 %v3756, %v3756
  %v3767 = vmul.f32 %v3729, %v3759
  %v3768 = vmul.f32 %v3732, %v3760
  %v3769 = vmul.f32 %v3737, %v3761
  %v3770 = vmul.f32 %v3740, %v3762
  %v3771 = vmul.f32 %v3745, %v3763
  %v3772 = vmul.f32 %v3748, %v3764
  %v3773 = vmul.f32 %v3753, %v3765
  %v3774 = vmul.f32 %v3756, %v3766
  %v3775 = vmul.f32 %v3767, 0.044715
  %v3776 = vmul.f32 %v3768, 0.044715
  %v3777 = vmul.f32 %v3769, 0.044715
  %v3778 = vmul.f32 %v3770, 0.044715
  %v3779 = vmul.f32 %v3771, 0.044715
  %v3780 = vmul.f32 %v3772, 0.044715
  %v3781 = vmul.f32 %v3773, 0.044715
  %v3782 = vmul.f32 %v3774, 0.044715
  %v3783 = vadd.f32 %v3729, %v3775
  %v3784 = vadd.f32 %v3732, %v3776
  %v3785 = vadd.f32 %v3737, %v3777
  %v3786 = vadd.f32 %v3740, %v3778
  %v3787 = vadd.f32 %v3745, %v3779
  %v3788 = vadd.f32 %v3748, %v3780
  %v3789 = vadd.f32 %v3753, %v3781
  %v3790 = vadd.f32 %v3756, %v3782
  %v3791 = vmul.f32 %v3783, 0.7978846
  %v3792 = vmul.f32 %v3784, 0.7978846
  %v3793 = vmul.f32 %v3785, 0.7978846
  %v3794 = vmul.f32 %v3786, 0.7978846
  %v3795 = vmul.f32 %v3787, 0.7978846
  %v3796 = vmul.f32 %v3788, 0.7978846
  %v3797 = vmul.f32 %v3789, 0.7978846
  %v3798 = vmul.f32 %v3790, 0.7978846
  %v3799 = vtanh.pop %v3791
  %v3800 = vtanh.pop %v3792
  %v3801 = vtanh.pop %v3793
  %v3802 = vtanh.pop %v3794
  %v3803 = vtanh.pop %v3795
  %v3804 = vtanh.pop %v3796
  %v3805 = vtanh.pop %v3797
  %v3806 = vtanh.pop %v3798
  %v3807 = vadd.f32 %v3799, 1.0
  %v3808 = vadd.f32 %v3800, 1.0
  %v3809 = vadd.f32 %v3801, 1.0
  %v3810 = vadd.f32 %v3802, 1.0
  %v3811 = vadd.f32 %v3803, 1.0
  %v3812 = vadd.f32 %v3804, 1.0
  %v3813 = vadd.f32 %v3805, 1.0
  %v3814 = vadd.f32 %v3806, 1.0
  %v3815 = vmul.f32 %v3807, 0.5
  %v3816 = vmul.f32 %v3808, 0.5
  %v3817 = vmul.f32 %v3809, 0.5
  %v3818 = vmul.f32 %v3810, 0.5
  %v3819 = vmul.f32 %v3811, 0.5
  %v3820 = vmul.f32 %v3812, 0.5
  %v3821 = vmul.f32 %v3813, 0.5
  %v3822 = vmul.f32 %v3814, 0.5
  %v3823 = vmul.f32 %v3729, %v3815
  %v3824 = vmul.f32 %v3732, %v3816
  %v3825 = vmul.f32 %v3737, %v3817
  %v3826 = vmul.f32 %v3740, %v3818
  %v3827 = vmul.f32 %v3745, %v3819
  %v3828 = vmul.f32 %v3748, %v3820
  %v3829 = vmul.f32 %v3753, %v3821
  %v3830 = vmul.f32 %v3756, %v3822
  %v3831 = vpack.c.bf16 %v3824, %v3823
  %v3832 = vpack.c.bf16 %v3826, %v3825
  %v3833 = vpack.c.bf16 %v3828, %v3827
  %v3834 = vpack.c.bf16 %v3830, %v3829
  %v3835 = vlaneseq
  %v3836 = vshrl.u32 %v3835, 7
  %v3837 = vsub.s32 1, %v3836
  %v3838 = vrot.slane %v80, %v3837
  %v3843 = vunpack.c.l.b16 %v73
  %v3844 = vunpack.c.l.b16 %v74
  %v3845 = vunpack.c.l.b16 %v75
  %v3846 = vunpack.c.l.b16 %v76
  %v3847 = vpack.c.b16 %v3844, %v3843
  %v3848 = vpack.c.b16 %v3846, %v3845
  %v3852 = vsel %vm356, %v3831, 0
  %v3855 = vsel %vm356, %v3832, 0
  %v3858 = vsel %vm356, %v3833, 0
  %v3861 = vsel %vm356, %v3834, 0
  %3863 = vmatprep.subr.bf16.mxu0 0
  %3864 = vmatpush1.bf16.msra.mxu0 %v3847
  %3865 = vmatprep.subr.bf16.mxu0 0
  %3866 = vmatpush1.bf16.msra.mxu0 %v3848
  %3867 = vmatprep.subr.bf16.mxu0 0
  %3868 = vmatpush1.bf16.msra.mxu0 0
  %3869 = vmatprep.subr.bf16.mxu0 0
  %3870 = vmatpush1.bf16.msra.mxu0 0
  %3871 = vmatprep.subr.bf16.mxu0 0
  %3872 = vmatpush1.bf16.msra.mxu0 0
  %3873 = vmatprep.subr.bf16.mxu0 0
  %3874 = vmatpush1.bf16.msra.mxu0 0
  %3875 = vmatprep.subr.bf16.mxu0 0
  %3876 = vmatpush1.bf16.msra.mxu0 0
  %3877 = vmatprep.subr.bf16.mxu0 0
  %3878 = vmatpush1.bf16.msra.mxu0 0
  %3879 = vmatprep.subr.bf16.mxu0 0
  %3880 = vmatpush1.bf16.msra.mxu0 0
  %3881 = vmatprep.subr.bf16.mxu0 0
  %3882 = vmatpush1.bf16.msra.mxu0 0
  %3883 = vmatprep.subr.bf16.mxu0 0
  %3884 = vmatpush1.bf16.msra.mxu0 0
  %3885 = vmatprep.subr.bf16.mxu0 0
  %3886 = vmatpush1.bf16.msra.mxu0 0
  %3887 = vmatprep.subr.bf16.mxu0 0
  %3888 = vmatpush1.bf16.msra.mxu0 0
  %3889 = vmatprep.subr.bf16.mxu0 0
  %3890 = vmatpush1.bf16.msra.mxu0 0
  %3891 = vmatprep.subr.bf16.mxu0 0
  %3892 = vmatpush1.bf16.msra.mxu0 0
  %3893 = vmatprep.subr.bf16.mxu0 0
  %3894 = vmatpush1.bf16.msra.mxu0 0
  %3895 = vmatprep.mubr.bf16.mxu0 0
  %3896 = vmatmul.mubr.bf16.gmra.mrb[0].mxu0 %v3852
  %v3897 = vpop.f32.mrb[0].mxu0
  %v3898 = vadd.f32 %v3838, %v3897
  %v3899 = vpop.f32.mrb[0].mxu0
  %v3900 = vpop.f32.mrb[0].mxu0
  %v3901 = vadd.f32 %v3838, %v3900
  %v3902 = vpop.f32.mrb[0].mxu0
  %3903 = vmatprep.mubr.bf16.mxu0 0
  %3904 = vmatmul.mubr.bf16.gmra.mrb[0].mxu0 %v3855
  %v3905 = vpop.f32.mrb[0].mxu0
  %v3906 = vadd.f32 %v3838, %v3905
  %v3907 = vpop.f32.mrb[0].mxu0
  %v3908 = vpop.f32.mrb[0].mxu0
  %v3909 = vadd.f32 %v3838, %v3908
  %v3910 = vpop.f32.mrb[0].mxu0
  %3911 = vmatprep.mubr.bf16.mxu0 0
  %3912 = vmatmul.mubr.bf16.gmra.mrb[0].mxu0 %v3858
  %v3913 = vpop.f32.mrb[0].mxu0
  %v3914 = vadd.f32 %v3838, %v3913
  %v3915 = vpop.f32.mrb[0].mxu0
  %v3916 = vpop.f32.mrb[0].mxu0
  %v3917 = vadd.f32 %v3838, %v3916
  %v3918 = vpop.f32.mrb[0].mxu0
  %3919 = vmatprep.mubr.bf16.mxu0 0
  %3920 = vmatmul.mubr.bf16.gmra.mrb[0].mxu0 %v3861
  %v3921 = vpop.f32.mrb[0].mxu0
  %v3922 = vadd.f32 %v3838, %v3921
  %v3923 = vpop.f32.mrb[0].mxu0
  %v3924 = vpop.f32.mrb[0].mxu0
  %v3925 = vadd.f32 %v3838, %v3924
  %v3926 = vpop.f32.mrb[0].mxu0
  %3927 = vdwg.mxu0
  %v3928 = vadd.f32 %v3526, %v3898
  %v3929 = vadd.f32 %v3527, %v3901
  %v3930 = vadd.f32 %v3528, %v3906
  %v3931 = vadd.f32 %v3529, %v3909
  %v3932 = vadd.f32 %v3530, %v3914
  %v3933 = vadd.f32 %v3531, %v3917
  %v3934 = vadd.f32 %v3532, %v3922
  %v3935 = vadd.f32 %v3533, %v3925
  %3936 = vst.msk [vmem:[%s9] sm:$0xff] %vm356, %v3928
  %3937 = vst.msk [vmem:[%s9 + $0x8] sm:$0xff] %vm356, %v3929
  %3938 = vst.msk [vmem:[%s9 + $0x10] sm:$0xff] %vm356, %v3930
  %3939 = vst.msk [vmem:[%s9 + $0x18] sm:$0xff] %vm356, %v3931
  %3940 = vst.msk [vmem:[%s9 + $0x20] sm:$0xff] %vm356, %v3932
  %3941 = vst.msk [vmem:[%s9 + $0x28] sm:$0xff] %vm356, %v3933
  %3942 = vst.msk [vmem:[%s9 + $0x30] sm:$0xff] %vm356, %v3934
  %3943 = vst.msk [vmem:[%s9 + $0x38] sm:$0xff] %vm356, %v3935
  // Predicated region
  $region38: #{tpu_custom_call.1} parent=0 // pred_check
    _
  $region39: #{tpu_custom_call.1} parent=0 // pred_check_branch
    %3945 = sbr.rel (0) target = $region41
  $region40: #{tpu_custom_call.1} parent=0 // pred_region
    _
  $region41: #{tpu_custom_call.1} parent=0 // pred_fallthru
    _
  // Predicated region
  $region42: #{tpu_custom_call.1} parent=0 // pred_check
    _
  $region43: #{tpu_custom_call.1} parent=0 // pred_check_branch
    %3947 = sbr.rel (0) target = $region45
  $region44: #{tpu_custom_call.1} parent=0 // pred_region
    _
  $region45: #{tpu_custom_call.1} parent=0 // pred_fallthru
    _

</llo_original>
